<compile_context>
chip_gen: v7x
topology: tpu7x:2x2x1
jax: 0.10.0
libtpu: 0.0.40
codegen_flags: <defaults>
</compile_context>

<pallas_src>
import functools

import jax
import jax.numpy as jnp
from jax import lax
from jax.experimental import pallas as pl
from jax.experimental.pallas import tpu as pltpu

FEATURE_DIM = 40
HIDDEN_DIM = 128
NUM_LAYERS = 2
SUBLANE = 8
LANE = 128


def _round_up(n, m):
    return ((n + m - 1) // m) * m


# ----------------------------------------------------------------------------
# Fused Pallas kernel: skewed GRU layer-1 + layer-2 recurrence -> Linear head
# ----------------------------------------------------------------------------
def _fused_gru_kernel(x_ref, wih1_ref, wrec_ref, bx1_ref, bhn1_ref,
                      b2rz_ref, b2xn_ref, bhn2_ref, wout_ref, bout_ref,
                      out_ref, gx_scr, *, T, Bp, H):
    """Grid-less kernel; every ref is the full array resident in VMEM.

    x_ref    : (T*Bp, Dp)  bf16, time-major, batch padded to Bp, features to Dp
    wih1_ref : (Dp, 3H)    bf16, layer-1 input weights (transposed, padded)
    wrec_ref : (2H, 7H)    bf16, fused block-diagonal recurrent weights
    bx1_ref  : (1, 3H)     f32, b_ih1 with b_hh1 folded in for r/z columns
    bhn1_ref : (1, H)      f32, layer-1 n-gate hidden bias
    b2rz_ref : (1, 2H)     f32, layer-2 r/z bias (b_ih + b_hh)
    b2xn_ref : (1, H)      f32, layer-2 n-gate input bias (b_ih)
    bhn2_ref : (1, H)      f32, layer-2 n-gate hidden bias (b_hh)
    wout_ref : (H, Op)     bf16, head weight (transposed, lane-padded)
    bout_ref : (1, Op)     f32
    out_ref  : (Bp, Op)    f32
    gx_scr   : VMEM (T*Bp, 3H) f32, hoisted layer-1 input projections
    """
    # Hoisted layer-1 input projection: one big MXU matmul, off the serial path.
    gx_scr[...] = (jnp.dot(x_ref[...], wih1_ref[...],
                           preferred_element_type=jnp.float32)
                   + bx1_ref[...])

    bhn1 = bhn1_ref[...]
    b2rz = b2rz_ref[...]
    b2xn = b2xn_ref[...]
    bhn2 = bhn2_ref[...]

    h1 = jnp.zeros((Bp, H), jnp.float32)
    h2 = jnp.zeros((Bp, H), jnp.float32)

    # Skewed recurrence, fully unrolled (T static & small).  At iteration i:
    #   layer-1 computes step i   (uses h1_{i-1}, hoisted gx1_i)
    #   layer-2 computes step i-1 (uses input h1_{i-1}, hidden h2_{i-2})
    # Both served by ONE fused matmul on lhs = [h1_{i-1} | h2_{i-2}].
    for i in range(T + 1):
        if i > 0:
            lhs = jnp.concatenate([h1, h2], axis=1).astype(jnp.bfloat16)
            # RHS read from VMEM ref per step (not hoisted across the unroll).
            fused = jnp.dot(lhs, wrec_ref[...],
                            preferred_element_type=jnp.float32)   # (Bp, 7H)
            gh1 = fused[:, 0:3 * H]
            # ---- layer-2 step i-1 ----
            g2rz = fused[:, 3 * H:5 * H] + b2rz          # gx2+gh2 for r,z
            gx2n = fused[:, 5 * H:6 * H] + b2xn          # input part of n gate
            gh2n = fused[:, 6 * H:7 * H]                 # hidden part of n gate
            r2 = jax.nn.sigmoid(g2rz[:, 0:H])
            z2 = jax.nn.sigmoid(g2rz[:, H:2 * H])
            n2 = jnp.tanh(gx2n + r2 * (gh2n + bhn2))
            h2 = n2 + z2 * (h2 - n2)
        else:
            gh1 = None                                   # h1_{-1} == 0 -> gh1 == 0

        # ---- layer-1 step i ----
        if i < T:
            gx = gx_scr[pl.ds(i * Bp, Bp), :]            # static, sublane-aligned
            if gh1 is None:
                r1 = jax.nn.sigmoid(gx[:, 0:H])
                z1 = jax.nn.sigmoid(gx[:, H:2 * H])
                n1 = jnp.tanh(gx[:, 2 * H:3 * H] + r1 * bhn1)
                h1 = (1.0 - z1) * n1                     # previous h1 is zero
            else:
                r1 = jax.nn.sigmoid(gx[:, 0:H] + gh1[:, 0:H])
                z1 = jax.nn.sigmoid(gx[:, H:2 * H] + gh1[:, H:2 * H])
                n1 = jnp.tanh(gx[:, 2 * H:3 * H] + r1 * (gh1[:, 2 * H:3 * H] + bhn1))
                h1 = n1 + z1 * (h1 - n1)

    # Fused Linear head (lane-padded output width -> unmasked, lane-dense store).
    out_ref[...] = (jnp.dot(h2.astype(jnp.bfloat16), wout_ref[...],
                            preferred_element_type=jnp.float32)
                    + bout_ref[...])


# ----------------------------------------------------------------------------
# One-time parameter preparation (off the per-call path)
# ----------------------------------------------------------------------------
def prepare_params(params):
    H = HIDDEN_DIM
    D = FEATURE_DIM
    Dp = _round_up(D, 16)                       # clean bf16 sublane tiles
    O = params["out_w"].shape[0]
    Op = max(LANE, _round_up(O, LANE))

    p1, p2 = params["gru"][0], params["gru"][1]

    # Layer-1 input weights: transposed, feature-padded, bf16.
    wih1 = jnp.zeros((Dp, 3 * H), jnp.float32).at[:D, :].set(p1["w_ih"].T)
    wih1 = wih1.astype(jnp.bfloat16)

    # Fused block-diagonal recurrent weights (2H, 7H), PyTorch gate order [r|z|n]:
    #   cols [0,3H)   : gh1            rows[:H]=whh1.T            rows[H:]=0
    #   cols [3H,5H)  : gx2+gh2 (r,z)  rows[:H]=wih2.T[:, :2H]    rows[H:]=whh2.T[:, :2H]
    #   cols [5H,6H)  : gx2 (n)        rows[:H]=wih2.T[:, 2H:]    rows[H:]=0
    #   cols [6H,7H)  : gh2 (n)        rows[:H]=0                 rows[H:]=whh2.T[:, 2H:]
    whh1_t = p1["w_hh"].T
    wih2_t = p2["w_ih"].T
    whh2_t = p2["w_hh"].T
    wrec = jnp.zeros((2 * H, 7 * H), jnp.float32)
    wrec = wrec.at[:H, 0:3 * H].set(whh1_t)
    wrec = wrec.at[:H, 3 * H:5 * H].set(wih2_t[:, :2 * H])
    wrec = wrec.at[H:, 3 * H:5 * H].set(whh2_t[:, :2 * H])
    wrec = wrec.at[:H, 5 * H:6 * H].set(wih2_t[:, 2 * H:])
    wrec = wrec.at[H:, 6 * H:7 * H].set(whh2_t[:, 2 * H:])
    wrec = wrec.astype(jnp.bfloat16)

    # Biases stay f32 (added after the f32-accumulated matmuls).
    bx1 = (p1["b_ih"] + jnp.concatenate(
        [p1["b_hh"][:2 * H], jnp.zeros((H,), jnp.float32)])).reshape(1, 3 * H)
    bhn1 = p1["b_hh"][2 * H:].reshape(1, H)
    b2rz = (p2["b_ih"][:2 * H] + p2["b_hh"][:2 * H]).reshape(1, 2 * H)
    b2xn = p2["b_ih"][2 * H:].reshape(1, H)
    bhn2 = p2["b_hh"][2 * H:].reshape(1, H)

    wout = jnp.zeros((H, Op), jnp.float32).at[:, :O].set(params["out_w"].T)
    wout = wout.astype(jnp.bfloat16)
    bout = jnp.zeros((1, Op), jnp.float32).at[:, :O].set(
        params["out_b"].reshape(1, O))

    return {"wih1": wih1, "wrec": wrec, "bx1": bx1, "bhn1": bhn1,
            "b2rz": b2rz, "b2xn": b2xn, "bhn2": bhn2,
            "wout": wout, "bout": bout}


# ----------------------------------------------------------------------------
# Model wrapper (matches SimpleGRU.forward, eval semantics)
# ----------------------------------------------------------------------------
@functools.partial(jax.jit, static_argnames=("output_dim",))
def simple_gru_forward(prep, x, output_dim):
    """x: (B, C=1, T, 40) -> (logits, logits), logits: (B, output_dim)."""
    B = x.shape[0]
    T = x.shape[2]
    D = x.shape[3]
    H = HIDDEN_DIM
    Dp = prep["wih1"].shape[0]
    Op = prep["wout"].shape[1]
    O = output_dim
    Bp = max(SUBLANE, _round_up(B, SUBLANE))   # pad batch to full sublanes

    x = x.reshape(B, T, D).astype(jnp.float32)             # (B, T, D)
    x_tbd = jnp.transpose(x, (1, 0, 2))                     # (T, B, D) time-major
    x_pad = jnp.zeros((T, Bp, Dp), jnp.float32).at[:, :B, :D].set(x_tbd)
    x_flat = x_pad.reshape(T * Bp, Dp).astype(jnp.bfloat16)  # (T*Bp, Dp)

    kernel = functools.partial(_fused_gru_kernel, T=T, Bp=Bp, H=H)

    # Grid-less pallas_call: every operand/output is a full VMEM block
    # (total footprint << 1 MiB on all generations).
    out_pad = pl.pallas_call(
        kernel,
        out_shape=jax.ShapeDtypeStruct((Bp, Op), jnp.float32),
        scratch_shapes=[
            pltpu.VMEM((T * Bp, 3 * H), jnp.float32),   # hoisted gate projection
        ],
    )(x_flat, prep["wih1"], prep["wrec"], prep["bx1"], prep["bhn1"],
      prep["b2rz"], prep["b2xn"], prep["bhn2"], prep["wout"], prep["bout"])

    out = out_pad[:B, :O]
    return out, out


# ----------------------------------------------------------------------------
# Deterministic parameter init (PyTorch-style uniform(-1/sqrt(H), 1/sqrt(H)))
# ----------------------------------------------------------------------------
def init_params(key, output_dim):
    H = HIDDEN_DIM
    bound = 1.0 / jnp.sqrt(H)
    params = {"gru": []}
    for layer in range(NUM_LAYERS):
        in_dim = FEATURE_DIM if layer == 0 else H
        key, k1, k2, k3, k4 = jax.random.split(key, 5)
        params["gru"].append({
            "w_ih": jax.random.uniform(k1, (3 * H, in_dim), jnp.float32, -bound, bound),
            "w_hh": jax.random.uniform(k2, (3 * H, H), jnp.float32, -bound, bound),
            "b_ih": jax.random.uniform(k3, (3 * H,), jnp.float32, -bound, bound),
            "b_hh": jax.random.uniform(k4, (3 * H,), jnp.float32, -bound, bound),
        })
    key, k1, k2 = jax.random.split(key, 3)
    params["out_w"] = jax.random.uniform(k1, (output_dim, H), jnp.float32, -bound, bound)
    params["out_b"] = jax.random.uniform(k2, (output_dim,), jnp.float32, -bound, bound)
    return params


# ----------------------------------------------------------------------------
# Pure-JAX f32 reference (for correctness check)
# ----------------------------------------------------------------------------
def reference_forward(params, x):
    B = x.shape[0]
    H = HIDDEN_DIM
    x = x.reshape(B, x.shape[2], x.shape[3]).astype(jnp.float32)  # (B, T, D)
    h_seq = jnp.transpose(x, (1, 0, 2))                           # (T, B, D)

    for layer in range(NUM_LAYERS):
        p = params["gru"][layer]

        def step(h_prev, x_t, p=p):
            gx = x_t @ p["w_ih"].T + p["b_ih"]
            gh = h_prev @ p["w_hh"].T + p["b_hh"]
            r = jax.nn.sigmoid(gx[:, :H] + gh[:, :H])
            z = jax.nn.sigmoid(gx[:, H:2 * H] + gh[:, H:2 * H])
            n = jnp.tanh(gx[:, 2 * H:] + r * gh[:, 2 * H:])
            h_new = (1.0 - z) * n + z * h_prev
            return h_new, h_new

        h0 = jnp.zeros((B, H), jnp.float32)
        _, h_seq = lax.scan(step, h0, h_seq)

    last = h_seq[-1]
    out = last @ params["out_w"].T + params["out_b"]
    return out, out


if __name__ == "__main__":
    B, T, OUTPUT_DIM = 2, 8, 10
    key = jax.random.PRNGKey(0)
    key, xkey = jax.random.split(key)
    x = jax.random.normal(xkey, (B, 1, T, FEATURE_DIM), jnp.float32)

    params = init_params(key, OUTPUT_DIM)
    prep = prepare_params(params)          # one-time prep, off the per-call path

    out, out2 = simple_gru_forward(prep, x, OUTPUT_DIM)
    out = jax.block_until_ready(out)

    ref, _ = reference_forward(params, x)
    assert out.shape == (B, OUTPUT_DIM)
    # bf16 MXU operands (per perf review) vs f32 reference: agreement is at the
    # ~1e-2 level; tolerance loosened deliberately (gate math stays f32).
    assert jnp.allclose(out, ref, atol=5e-2, rtol=5e-2), "mismatch vs reference"
    assert jnp.array_equal(out, out2)

    print("KERNEL_OK")
</pallas_src>

<mosaic_0001>
module attributes {stable_mosaic.version = 11 : i64} {
  func.func @_fused_gru_kernel(%arg0: memref<64x48xbf16, #tpu.memory_space<vmem>>, %arg1: memref<48x384xbf16, #tpu.memory_space<vmem>>, %arg2: memref<256x896xbf16, #tpu.memory_space<vmem>>, %arg3: memref<1x384xf32, #tpu.memory_space<vmem>>, %arg4: memref<1x128xf32, #tpu.memory_space<vmem>>, %arg5: memref<1x256xf32, #tpu.memory_space<vmem>>, %arg6: memref<1x128xf32, #tpu.memory_space<vmem>>, %arg7: memref<1x128xf32, #tpu.memory_space<vmem>>, %arg8: memref<128x128xbf16, #tpu.memory_space<vmem>>, %arg9: memref<1x128xf32, #tpu.memory_space<vmem>>, %arg10: memref<8x128xf32, #tpu.memory_space<vmem>>, %arg11: memref<64x384xf32, #tpu.memory_space<vmem>>) attributes {dimension_semantics = [], scalar_prefetch = 0 : i64, scratch_operands = 1 : i64, tpu.core_type = #tpu.core_type<tc>} {
    %c0 = arith.constant 0 : index
    %c0_0 = arith.constant 0 : index
    %0 = vector.load %arg0[%c0, %c0_0] : memref<64x48xbf16, #tpu.memory_space<vmem>>, vector<64x48xbf16>
    %c0_1 = arith.constant 0 : index
    %c0_2 = arith.constant 0 : index
    %1 = vector.load %arg1[%c0_1, %c0_2] : memref<48x384xbf16, #tpu.memory_space<vmem>>, vector<48x384xbf16>
    %cst = arith.constant dense<0.000000e+00> : vector<64x384xf32>
    %2 = tpu.matmul %0, %1, %cst {dimension_numbers = #tpu.dot_dimension_numbers<[1], [0], [0], [1], [0, 0, 1, 1], [], []>} : vector<64x48xbf16>, vector<48x384xbf16>, vector<64x384xf32> -> vector<64x384xf32>
    %c0_3 = arith.constant 0 : index
    %c0_4 = arith.constant 0 : index
    %3 = vector.load %arg3[%c0_3, %c0_4] : memref<1x384xf32, #tpu.memory_space<vmem>>, vector<1x384xf32>
    %4 = vector.broadcast %3 : vector<1x384xf32> to vector<64x384xf32>
    %5 = arith.addf %2, %4 : vector<64x384xf32>
    %c0_5 = arith.constant 0 : index
    %c0_6 = arith.constant 0 : index
    %6 = vector.load %arg11[%c0_5, %c0_6] : memref<64x384xf32, #tpu.memory_space<vmem>>, vector<64x384xf32>
    tpu.vector_store %arg11[%c0_5, %c0_6], %5 {strides = array<i32>} : memref<64x384xf32, #tpu.memory_space<vmem>>, vector<64x384xf32>,
    %c0_7 = arith.constant 0 : index
    %c0_8 = arith.constant 0 : index
    %7 = vector.load %arg4[%c0_7, %c0_8] : memref<1x128xf32, #tpu.memory_space<vmem>>, vector<1x128xf32>
    %c0_9 = arith.constant 0 : index
    %c0_10 = arith.constant 0 : index
    %8 = vector.load %arg5[%c0_9, %c0_10] : memref<1x256xf32, #tpu.memory_space<vmem>>, vector<1x256xf32>
    %c0_11 = arith.constant 0 : index
    %c0_12 = arith.constant 0 : index
    %9 = vector.load %arg6[%c0_11, %c0_12] : memref<1x128xf32, #tpu.memory_space<vmem>>, vector<1x128xf32>
    %c0_13 = arith.constant 0 : index
    %c0_14 = arith.constant 0 : index
    %10 = vector.load %arg7[%c0_13, %c0_14] : memref<1x128xf32, #tpu.memory_space<vmem>>, vector<1x128xf32>
    %cst_15 = arith.constant 0.000000e+00 : f32
    %11 = vector.broadcast %cst_15 : f32 to vector<8x128xf32>
    %c0_16 = arith.constant 0 : index
    %c0_17 = arith.constant 0 : index
    %12 = vector.load %arg11[%c0_16, %c0_17] : memref<64x384xf32, #tpu.memory_space<vmem>>, vector<8x384xf32>
    %13 = vector.extract_strided_slice %12 {offsets = [0, 0], sizes = [8, 128], strides = [1, 1]} : vector<8x384xf32> to vector<8x128xf32>
    %14 = arith.negf %13 : vector<8x128xf32>
    %15 = math.exp %14 : vector<8x128xf32>
    %cst_18 = arith.constant 1.000000e+00 : f32
    %16 = vector.broadcast %cst_18 : f32 to vector<8x128xf32>
    %17 = arith.addf %16, %15 : vector<8x128xf32>
    %18 = arith.divf %16, %17 : vector<8x128xf32>
    %19 = vector.extract_strided_slice %12 {offsets = [0, 128], sizes = [8, 128], strides = [1, 1]} : vector<8x384xf32> to vector<8x128xf32>
    %20 = arith.negf %19 : vector<8x128xf32>
    %21 = math.exp %20 : vector<8x128xf32>
    %cst_19 = arith.constant 1.000000e+00 : f32
    %22 = vector.broadcast %cst_19 : f32 to vector<8x128xf32>
    %23 = arith.addf %22, %21 : vector<8x128xf32>
    %24 = arith.divf %22, %23 : vector<8x128xf32>
    %25 = vector.extract_strided_slice %12 {offsets = [0, 256], sizes = [8, 128], strides = [1, 1]} : vector<8x384xf32> to vector<8x128xf32>
    %26 = vector.broadcast %7 : vector<1x128xf32> to vector<8x128xf32>
    %27 = arith.mulf %18, %26 : vector<8x128xf32>
    %28 = arith.addf %25, %27 : vector<8x128xf32>
    %29 = math.tanh %28 : vector<8x128xf32>
    %cst_20 = arith.constant 1.000000e+00 : f32
    %30 = vector.broadcast %cst_20 : f32 to vector<8x128xf32>
    %31 = arith.subf %30, %24 : vector<8x128xf32>
    %32 = arith.mulf %31, %29 : vector<8x128xf32>
    %33 = tpu.concatenate %32, %11 in 1 : vector<8x128xf32>, vector<8x128xf32> -> vector<8x256xf32>
    %34 = arith.truncf %33 : vector<8x256xf32> to vector<8x256xbf16>
    %c0_21 = arith.constant 0 : index
    %c0_22 = arith.constant 0 : index
    %35 = vector.load %arg2[%c0_21, %c0_22] : memref<256x896xbf16, #tpu.memory_space<vmem>>, vector<256x896xbf16>
    %cst_23 = arith.constant dense<0.000000e+00> : vector<8x896xf32>
    %36 = tpu.matmul %34, %35, %cst_23 {dimension_numbers = #tpu.dot_dimension_numbers<[1], [0], [0], [1], [0, 0, 1, 1], [], []>} : vector<8x256xbf16>, vector<256x896xbf16>, vector<8x896xf32> -> vector<8x896xf32>
    %37 = vector.extract_strided_slice %36 {offsets = [0, 0], sizes = [8, 384], strides = [1, 1]} : vector<8x896xf32> to vector<8x384xf32>
    %38 = vector.extract_strided_slice %36 {offsets = [0, 384], sizes = [8, 256], strides = [1, 1]} : vector<8x896xf32> to vector<8x256xf32>
    %39 = vector.broadcast %8 : vector<1x256xf32> to vector<8x256xf32>
    %40 = arith.addf %38, %39 : vector<8x256xf32>
    %41 = vector.extract_strided_slice %36 {offsets = [0, 640], sizes = [8, 128], strides = [1, 1]} : vector<8x896xf32> to vector<8x128xf32>
    %42 = vector.broadcast %9 : vector<1x128xf32> to vector<8x128xf32>
    %43 = arith.addf %41, %42 : vector<8x128xf32>
    %44 = vector.extract_strided_slice %36 {offsets = [0, 768], sizes = [8, 128], strides = [1, 1]} : vector<8x896xf32> to vector<8x128xf32>
    %45 = vector.extract_strided_slice %40 {offsets = [0, 0], sizes = [8, 128], strides = [1, 1]} : vector<8x256xf32> to vector<8x128xf32>
    %46 = arith.negf %45 : vector<8x128xf32>
    %47 = math.exp %46 : vector<8x128xf32>
    %cst_24 = arith.constant 1.000000e+00 : f32
    %48 = vector.broadcast %cst_24 : f32 to vector<8x128xf32>
    %49 = arith.addf %48, %47 : vector<8x128xf32>
    %50 = arith.divf %48, %49 : vector<8x128xf32>
    %51 = vector.extract_strided_slice %40 {offsets = [0, 128], sizes = [8, 128], strides = [1, 1]} : vector<8x256xf32> to vector<8x128xf32>
    %52 = arith.negf %51 : vector<8x128xf32>
    %53 = math.exp %52 : vector<8x128xf32>
    %cst_25 = arith.constant 1.000000e+00 : f32
    %54 = vector.broadcast %cst_25 : f32 to vector<8x128xf32>
    %55 = arith.addf %54, %53 : vector<8x128xf32>
    %56 = arith.divf %54, %55 : vector<8x128xf32>
    %57 = vector.broadcast %10 : vector<1x128xf32> to vector<8x128xf32>
    %58 = arith.addf %44, %57 : vector<8x128xf32>
    %59 = arith.mulf %50, %58 : vector<8x128xf32>
    %60 = arith.addf %43, %59 : vector<8x128xf32>
    %61 = math.tanh %60 : vector<8x128xf32>
    %62 = arith.subf %11, %61 : vector<8x128xf32>
    %63 = arith.mulf %56, %62 : vector<8x128xf32>
    %64 = arith.addf %61, %63 : vector<8x128xf32>
    %c8 = arith.constant 8 : index
    %c0_26 = arith.constant 0 : index
    %65 = vector.load %arg11[%c8, %c0_26] : memref<64x384xf32, #tpu.memory_space<vmem>>, vector<8x384xf32>
    %66 = vector.extract_strided_slice %65 {offsets = [0, 0], sizes = [8, 128], strides = [1, 1]} : vector<8x384xf32> to vector<8x128xf32>
    %67 = vector.extract_strided_slice %37 {offsets = [0, 0], sizes = [8, 128], strides = [1, 1]} : vector<8x384xf32> to vector<8x128xf32>
    %68 = arith.addf %66, %67 : vector<8x128xf32>
    %69 = arith.negf %68 : vector<8x128xf32>
    %70 = math.exp %69 : vector<8x128xf32>
    %cst_27 = arith.constant 1.000000e+00 : f32
    %71 = vector.broadcast %cst_27 : f32 to vector<8x128xf32>
    %72 = arith.addf %71, %70 : vector<8x128xf32>
    %73 = arith.divf %71, %72 : vector<8x128xf32>
    %74 = vector.extract_strided_slice %65 {offsets = [0, 128], sizes = [8, 128], strides = [1, 1]} : vector<8x384xf32> to vector<8x128xf32>
    %75 = vector.extract_strided_slice %37 {offsets = [0, 128], sizes = [8, 128], strides = [1, 1]} : vector<8x384xf32> to vector<8x128xf32>
    %76 = arith.addf %74, %75 : vector<8x128xf32>
    %77 = arith.negf %76 : vector<8x128xf32>
    %78 = math.exp %77 : vector<8x128xf32>
    %cst_28 = arith.constant 1.000000e+00 : f32
    %79 = vector.broadcast %cst_28 : f32 to vector<8x128xf32>
    %80 = arith.addf %79, %78 : vector<8x128xf32>
    %81 = arith.divf %79, %80 : vector<8x128xf32>
    %82 = vector.extract_strided_slice %65 {offsets = [0, 256], sizes = [8, 128], strides = [1, 1]} : vector<8x384xf32> to vector<8x128xf32>
    %83 = vector.extract_strided_slice %37 {offsets = [0, 256], sizes = [8, 128], strides = [1, 1]} : vector<8x384xf32> to vector<8x128xf32>
    %84 = vector.broadcast %7 : vector<1x128xf32> to vector<8x128xf32>
    %85 = arith.addf %83, %84 : vector<8x128xf32>
    %86 = arith.mulf %73, %85 : vector<8x128xf32>
    %87 = arith.addf %82, %86 : vector<8x128xf32>
    %88 = math.tanh %87 : vector<8x128xf32>
    %89 = arith.subf %32, %88 : vector<8x128xf32>
    %90 = arith.mulf %81, %89 : vector<8x128xf32>
    %91 = arith.addf %88, %90 : vector<8x128xf32>
    %92 = tpu.concatenate %91, %64 in 1 : vector<8x128xf32>, vector<8x128xf32> -> vector<8x256xf32>
    %93 = arith.truncf %92 : vector<8x256xf32> to vector<8x256xbf16>
    %c0_29 = arith.constant 0 : index
    %c0_30 = arith.constant 0 : index
    %94 = vector.load %arg2[%c0_29, %c0_30] : memref<256x896xbf16, #tpu.memory_space<vmem>>, vector<256x896xbf16>
    %cst_31 = arith.constant dense<0.000000e+00> : vector<8x896xf32>
    %95 = tpu.matmul %93, %94, %cst_31 {dimension_numbers = #tpu.dot_dimension_numbers<[1], [0], [0], [1], [0, 0, 1, 1], [], []>} : vector<8x256xbf16>, vector<256x896xbf16>, vector<8x896xf32> -> vector<8x896xf32>
    %96 = vector.extract_strided_slice %95 {offsets = [0, 0], sizes = [8, 384], strides = [1, 1]} : vector<8x896xf32> to vector<8x384xf32>
    %97 = vector.extract_strided_slice %95 {offsets = [0, 384], sizes = [8, 256], strides = [1, 1]} : vector<8x896xf32> to vector<8x256xf32>
    %98 = vector.broadcast %8 : vector<1x256xf32> to vector<8x256xf32>
    %99 = arith.addf %97, %98 : vector<8x256xf32>
    %100 = vector.extract_strided_slice %95 {offsets = [0, 640], sizes = [8, 128], strides = [1, 1]} : vector<8x896xf32> to vector<8x128xf32>
    %101 = vector.broadcast %9 : vector<1x128xf32> to vector<8x128xf32>
    %102 = arith.addf %100, %101 : vector<8x128xf32>
    %103 = vector.extract_strided_slice %95 {offsets = [0, 768], sizes = [8, 128], strides = [1, 1]} : vector<8x896xf32> to vector<8x128xf32>
    %104 = vector.extract_strided_slice %99 {offsets = [0, 0], sizes = [8, 128], strides = [1, 1]} : vector<8x256xf32> to vector<8x128xf32>
    %105 = arith.negf %104 : vector<8x128xf32>
    %106 = math.exp %105 : vector<8x128xf32>
    %cst_32 = arith.constant 1.000000e+00 : f32
    %107 = vector.broadcast %cst_32 : f32 to vector<8x128xf32>
    %108 = arith.addf %107, %106 : vector<8x128xf32>
    %109 = arith.divf %107, %108 : vector<8x128xf32>
    %110 = vector.extract_strided_slice %99 {offsets = [0, 128], sizes = [8, 128], strides = [1, 1]} : vector<8x256xf32> to vector<8x128xf32>
    %111 = arith.negf %110 : vector<8x128xf32>
    %112 = math.exp %111 : vector<8x128xf32>
    %cst_33 = arith.constant 1.000000e+00 : f32
    %113 = vector.broadcast %cst_33 : f32 to vector<8x128xf32>
    %114 = arith.addf %113, %112 : vector<8x128xf32>
    %115 = arith.divf %113, %114 : vector<8x128xf32>
    %116 = vector.broadcast %10 : vector<1x128xf32> to vector<8x128xf32>
    %117 = arith.addf %103, %116 : vector<8x128xf32>
    %118 = arith.mulf %109, %117 : vector<8x128xf32>
    %119 = arith.addf %102, %118 : vector<8x128xf32>
    %120 = math.tanh %119 : vector<8x128xf32>
    %121 = arith.subf %64, %120 : vector<8x128xf32>
    %122 = arith.mulf %115, %121 : vector<8x128xf32>
    %123 = arith.addf %120, %122 : vector<8x128xf32>
    %c16 = arith.constant 16 : index
    %c0_34 = arith.constant 0 : index
    %124 = vector.load %arg11[%c16, %c0_34] : memref<64x384xf32, #tpu.memory_space<vmem>>, vector<8x384xf32>
    %125 = vector.extract_strided_slice %124 {offsets = [0, 0], sizes = [8, 128], strides = [1, 1]} : vector<8x384xf32> to vector<8x128xf32>
    %126 = vector.extract_strided_slice %96 {offsets = [0, 0], sizes = [8, 128], strides = [1, 1]} : vector<8x384xf32> to vector<8x128xf32>
    %127 = arith.addf %125, %126 : vector<8x128xf32>
    %128 = arith.negf %127 : vector<8x128xf32>
    %129 = math.exp %128 : vector<8x128xf32>
    %cst_35 = arith.constant 1.000000e+00 : f32
    %130 = vector.broadcast %cst_35 : f32 to vector<8x128xf32>
    %131 = arith.addf %130, %129 : vector<8x128xf32>
    %132 = arith.divf %130, %131 : vector<8x128xf32>
    %133 = vector.extract_strided_slice %124 {offsets = [0, 128], sizes = [8, 128], strides = [1, 1]} : vector<8x384xf32> to vector<8x128xf32>
    %134 = vector.extract_strided_slice %96 {offsets = [0, 128], sizes = [8, 128], strides = [1, 1]} : vector<8x384xf32> to vector<8x128xf32>
    %135 = arith.addf %133, %134 : vector<8x128xf32>
    %136 = arith.negf %135 : vector<8x128xf32>
    %137 = math.exp %136 : vector<8x128xf32>
    %cst_36 = arith.constant 1.000000e+00 : f32
    %138 = vector.broadcast %cst_36 : f32 to vector<8x128xf32>
    %139 = arith.addf %138, %137 : vector<8x128xf32>
    %140 = arith.divf %138, %139 : vector<8x128xf32>
    %141 = vector.extract_strided_slice %124 {offsets = [0, 256], sizes = [8, 128], strides = [1, 1]} : vector<8x384xf32> to vector<8x128xf32>
    %142 = vector.extract_strided_slice %96 {offsets = [0, 256], sizes = [8, 128], strides = [1, 1]} : vector<8x384xf32> to vector<8x128xf32>
    %143 = vector.broadcast %7 : vector<1x128xf32> to vector<8x128xf32>
    %144 = arith.addf %142, %143 : vector<8x128xf32>
    %145 = arith.mulf %132, %144 : vector<8x128xf32>
    %146 = arith.addf %141, %145 : vector<8x128xf32>
    %147 = math.tanh %146 : vector<8x128xf32>
    %148 = arith.subf %91, %147 : vector<8x128xf32>
    %149 = arith.mulf %140, %148 : vector<8x128xf32>
    %150 = arith.addf %147, %149 : vector<8x128xf32>
    %151 = tpu.concatenate %150, %123 in 1 : vector<8x128xf32>, vector<8x128xf32> -> vector<8x256xf32>
    %152 = arith.truncf %151 : vector<8x256xf32> to vector<8x256xbf16>
    %c0_37 = arith.constant 0 : index
    %c0_38 = arith.constant 0 : index
    %153 = vector.load %arg2[%c0_37, %c0_38] : memref<256x896xbf16, #tpu.memory_space<vmem>>, vector<256x896xbf16>
    %cst_39 = arith.constant dense<0.000000e+00> : vector<8x896xf32>
    %154 = tpu.matmul %152, %153, %cst_39 {dimension_numbers = #tpu.dot_dimension_numbers<[1], [0], [0], [1], [0, 0, 1, 1], [], []>} : vector<8x256xbf16>, vector<256x896xbf16>, vector<8x896xf32> -> vector<8x896xf32>
    %155 = vector.extract_strided_slice %154 {offsets = [0, 0], sizes = [8, 384], strides = [1, 1]} : vector<8x896xf32> to vector<8x384xf32>
    %156 = vector.extract_strided_slice %154 {offsets = [0, 384], sizes = [8, 256], strides = [1, 1]} : vector<8x896xf32> to vector<8x256xf32>
    %157 = vector.broadcast %8 : vector<1x256xf32> to vector<8x256xf32>
    %158 = arith.addf %156, %157 : vector<8x256xf32>
    %159 = vector.extract_strided_slice %154 {offsets = [0, 640], sizes = [8, 128], strides = [1, 1]} : vector<8x896xf32> to vector<8x128xf32>
    %160 = vector.broadcast %9 : vector<1x128xf32> to vector<8x128xf32>
    %161 = arith.addf %159, %160 : vector<8x128xf32>
    %162 = vector.extract_strided_slice %154 {offsets = [0, 768], sizes = [8, 128], strides = [1, 1]} : vector<8x896xf32> to vector<8x128xf32>
    %163 = vector.extract_strided_slice %158 {offsets = [0, 0], sizes = [8, 128], strides = [1, 1]} : vector<8x256xf32> to vector<8x128xf32>
    %164 = arith.negf %163 : vector<8x128xf32>
    %165 = math.exp %164 : vector<8x128xf32>
    %cst_40 = arith.constant 1.000000e+00 : f32
    %166 = vector.broadcast %cst_40 : f32 to vector<8x128xf32>
    %167 = arith.addf %166, %165 : vector<8x128xf32>
    %168 = arith.divf %166, %167 : vector<8x128xf32>
    %169 = vector.extract_strided_slice %158 {offsets = [0, 128], sizes = [8, 128], strides = [1, 1]} : vector<8x256xf32> to vector<8x128xf32>
    %170 = arith.negf %169 : vector<8x128xf32>
    %171 = math.exp %170 : vector<8x128xf32>
    %cst_41 = arith.constant 1.000000e+00 : f32
    %172 = vector.broadcast %cst_41 : f32 to vector<8x128xf32>
    %173 = arith.addf %172, %171 : vector<8x128xf32>
    %174 = arith.divf %172, %173 : vector<8x128xf32>
    %175 = vector.broadcast %10 : vector<1x128xf32> to vector<8x128xf32>
    %176 = arith.addf %162, %175 : vector<8x128xf32>
    %177 = arith.mulf %168, %176 : vector<8x128xf32>
    %178 = arith.addf %161, %177 : vector<8x128xf32>
    %179 = math.tanh %178 : vector<8x128xf32>
    %180 = arith.subf %123, %179 : vector<8x128xf32>
    %181 = arith.mulf %174, %180 : vector<8x128xf32>
    %182 = arith.addf %179, %181 : vector<8x128xf32>
    %c24 = arith.constant 24 : index
    %c0_42 = arith.constant 0 : index
    %183 = vector.load %arg11[%c24, %c0_42] : memref<64x384xf32, #tpu.memory_space<vmem>>, vector<8x384xf32>
    %184 = vector.extract_strided_slice %183 {offsets = [0, 0], sizes = [8, 128], strides = [1, 1]} : vector<8x384xf32> to vector<8x128xf32>
    %185 = vector.extract_strided_slice %155 {offsets = [0, 0], sizes = [8, 128], strides = [1, 1]} : vector<8x384xf32> to vector<8x128xf32>
    %186 = arith.addf %184, %185 : vector<8x128xf32>
    %187 = arith.negf %186 : vector<8x128xf32>
    %188 = math.exp %187 : vector<8x128xf32>
    %cst_43 = arith.constant 1.000000e+00 : f32
    %189 = vector.broadcast %cst_43 : f32 to vector<8x128xf32>
    %190 = arith.addf %189, %188 : vector<8x128xf32>
    %191 = arith.divf %189, %190 : vector<8x128xf32>
    %192 = vector.extract_strided_slice %183 {offsets = [0, 128], sizes = [8, 128], strides = [1, 1]} : vector<8x384xf32> to vector<8x128xf32>
    %193 = vector.extract_strided_slice %155 {offsets = [0, 128], sizes = [8, 128], strides = [1, 1]} : vector<8x384xf32> to vector<8x128xf32>
    %194 = arith.addf %192, %193 : vector<8x128xf32>
    %195 = arith.negf %194 : vector<8x128xf32>
    %196 = math.exp %195 : vector<8x128xf32>
    %cst_44 = arith.constant 1.000000e+00 : f32
    %197 = vector.broadcast %cst_44 : f32 to vector<8x128xf32>
    %198 = arith.addf %197, %196 : vector<8x128xf32>
    %199 = arith.divf %197, %198 : vector<8x128xf32>
    %200 = vector.extract_strided_slice %183 {offsets = [0, 256], sizes = [8, 128], strides = [1, 1]} : vector<8x384xf32> to vector<8x128xf32>
    %201 = vector.extract_strided_slice %155 {offsets = [0, 256], sizes = [8, 128], strides = [1, 1]} : vector<8x384xf32> to vector<8x128xf32>
    %202 = vector.broadcast %7 : vector<1x128xf32> to vector<8x128xf32>
    %203 = arith.addf %201, %202 : vector<8x128xf32>
    %204 = arith.mulf %191, %203 : vector<8x128xf32>
    %205 = arith.addf %200, %204 : vector<8x128xf32>
    %206 = math.tanh %205 : vector<8x128xf32>
    %207 = arith.subf %150, %206 : vector<8x128xf32>
    %208 = arith.mulf %199, %207 : vector<8x128xf32>
    %209 = arith.addf %206, %208 : vector<8x128xf32>
    %210 = tpu.concatenate %209, %182 in 1 : vector<8x128xf32>, vector<8x128xf32> -> vector<8x256xf32>
    %211 = arith.truncf %210 : vector<8x256xf32> to vector<8x256xbf16>
    %c0_45 = arith.constant 0 : index
    %c0_46 = arith.constant 0 : index
    %212 = vector.load %arg2[%c0_45, %c0_46] : memref<256x896xbf16, #tpu.memory_space<vmem>>, vector<256x896xbf16>
    %cst_47 = arith.constant dense<0.000000e+00> : vector<8x896xf32>
    %213 = tpu.matmul %211, %212, %cst_47 {dimension_numbers = #tpu.dot_dimension_numbers<[1], [0], [0], [1], [0, 0, 1, 1], [], []>} : vector<8x256xbf16>, vector<256x896xbf16>, vector<8x896xf32> -> vector<8x896xf32>
    %214 = vector.extract_strided_slice %213 {offsets = [0, 0], sizes = [8, 384], strides = [1, 1]} : vector<8x896xf32> to vector<8x384xf32>
    %215 = vector.extract_strided_slice %213 {offsets = [0, 384], sizes = [8, 256], strides = [1, 1]} : vector<8x896xf32> to vector<8x256xf32>
    %216 = vector.broadcast %8 : vector<1x256xf32> to vector<8x256xf32>
    %217 = arith.addf %215, %216 : vector<8x256xf32>
    %218 = vector.extract_strided_slice %213 {offsets = [0, 640], sizes = [8, 128], strides = [1, 1]} : vector<8x896xf32> to vector<8x128xf32>
    %219 = vector.broadcast %9 : vector<1x128xf32> to vector<8x128xf32>
    %220 = arith.addf %218, %219 : vector<8x128xf32>
    %221 = vector.extract_strided_slice %213 {offsets = [0, 768], sizes = [8, 128], strides = [1, 1]} : vector<8x896xf32> to vector<8x128xf32>
    %222 = vector.extract_strided_slice %217 {offsets = [0, 0], sizes = [8, 128], strides = [1, 1]} : vector<8x256xf32> to vector<8x128xf32>
    %223 = arith.negf %222 : vector<8x128xf32>
    %224 = math.exp %223 : vector<8x128xf32>
    %cst_48 = arith.constant 1.000000e+00 : f32
    %225 = vector.broadcast %cst_48 : f32 to vector<8x128xf32>
    %226 = arith.addf %225, %224 : vector<8x128xf32>
    %227 = arith.divf %225, %226 : vector<8x128xf32>
    %228 = vector.extract_strided_slice %217 {offsets = [0, 128], sizes = [8, 128], strides = [1, 1]} : vector<8x256xf32> to vector<8x128xf32>
    %229 = arith.negf %228 : vector<8x128xf32>
    %230 = math.exp %229 : vector<8x128xf32>
    %cst_49 = arith.constant 1.000000e+00 : f32
    %231 = vector.broadcast %cst_49 : f32 to vector<8x128xf32>
    %232 = arith.addf %231, %230 : vector<8x128xf32>
    %233 = arith.divf %231, %232 : vector<8x128xf32>
    %234 = vector.broadcast %10 : vector<1x128xf32> to vector<8x128xf32>
    %235 = arith.addf %221, %234 : vector<8x128xf32>
    %236 = arith.mulf %227, %235 : vector<8x128xf32>
    %237 = arith.addf %220, %236 : vector<8x128xf32>
    %238 = math.tanh %237 : vector<8x128xf32>
    %239 = arith.subf %182, %238 : vector<8x128xf32>
    %240 = arith.mulf %233, %239 : vector<8x128xf32>
    %241 = arith.addf %238, %240 : vector<8x128xf32>
    %c32 = arith.constant 32 : index
    %c0_50 = arith.constant 0 : index
    %242 = vector.load %arg11[%c32, %c0_50] : memref<64x384xf32, #tpu.memory_space<vmem>>, vector<8x384xf32>
    %243 = vector.extract_strided_slice %242 {offsets = [0, 0], sizes = [8, 128], strides = [1, 1]} : vector<8x384xf32> to vector<8x128xf32>
    %244 = vector.extract_strided_slice %214 {offsets = [0, 0], sizes = [8, 128], strides = [1, 1]} : vector<8x384xf32> to vector<8x128xf32>
    %245 = arith.addf %243, %244 : vector<8x128xf32>
    %246 = arith.negf %245 : vector<8x128xf32>
    %247 = math.exp %246 : vector<8x128xf32>
    %cst_51 = arith.constant 1.000000e+00 : f32
    %248 = vector.broadcast %cst_51 : f32 to vector<8x128xf32>
    %249 = arith.addf %248, %247 : vector<8x128xf32>
    %250 = arith.divf %248, %249 : vector<8x128xf32>
    %251 = vector.extract_strided_slice %242 {offsets = [0, 128], sizes = [8, 128], strides = [1, 1]} : vector<8x384xf32> to vector<8x128xf32>
    %252 = vector.extract_strided_slice %214 {offsets = [0, 128], sizes = [8, 128], strides = [1, 1]} : vector<8x384xf32> to vector<8x128xf32>
    %253 = arith.addf %251, %252 : vector<8x128xf32>
    %254 = arith.negf %253 : vector<8x128xf32>
    %255 = math.exp %254 : vector<8x128xf32>
    %cst_52 = arith.constant 1.000000e+00 : f32
    %256 = vector.broadcast %cst_52 : f32 to vector<8x128xf32>
    %257 = arith.addf %256, %255 : vector<8x128xf32>
    %258 = arith.divf %256, %257 : vector<8x128xf32>
    %259 = vector.extract_strided_slice %242 {offsets = [0, 256], sizes = [8, 128], strides = [1, 1]} : vector<8x384xf32> to vector<8x128xf32>
    %260 = vector.extract_strided_slice %214 {offsets = [0, 256], sizes = [8, 128], strides = [1, 1]} : vector<8x384xf32> to vector<8x128xf32>
    %261 = vector.broadcast %7 : vector<1x128xf32> to vector<8x128xf32>
    %262 = arith.addf %260, %261 : vector<8x128xf32>
    %263 = arith.mulf %250, %262 : vector<8x128xf32>
    %264 = arith.addf %259, %263 : vector<8x128xf32>
    %265 = math.tanh %264 : vector<8x128xf32>
    %266 = arith.subf %209, %265 : vector<8x128xf32>
    %267 = arith.mulf %258, %266 : vector<8x128xf32>
    %268 = arith.addf %265, %267 : vector<8x128xf32>
    %269 = tpu.concatenate %268, %241 in 1 : vector<8x128xf32>, vector<8x128xf32> -> vector<8x256xf32>
    %270 = arith.truncf %269 : vector<8x256xf32> to vector<8x256xbf16>
    %c0_53 = arith.constant 0 : index
    %c0_54 = arith.constant 0 : index
    %271 = vector.load %arg2[%c0_53, %c0_54] : memref<256x896xbf16, #tpu.memory_space<vmem>>, vector<256x896xbf16>
    %cst_55 = arith.constant dense<0.000000e+00> : vector<8x896xf32>
    %272 = tpu.matmul %270, %271, %cst_55 {dimension_numbers = #tpu.dot_dimension_numbers<[1], [0], [0], [1], [0, 0, 1, 1], [], []>} : vector<8x256xbf16>, vector<256x896xbf16>, vector<8x896xf32> -> vector<8x896xf32>
    %273 = vector.extract_strided_slice %272 {offsets = [0, 0], sizes = [8, 384], strides = [1, 1]} : vector<8x896xf32> to vector<8x384xf32>
    %274 = vector.extract_strided_slice %272 {offsets = [0, 384], sizes = [8, 256], strides = [1, 1]} : vector<8x896xf32> to vector<8x256xf32>
    %275 = vector.broadcast %8 : vector<1x256xf32> to vector<8x256xf32>
    %276 = arith.addf %274, %275 : vector<8x256xf32>
    %277 = vector.extract_strided_slice %272 {offsets = [0, 640], sizes = [8, 128], strides = [1, 1]} : vector<8x896xf32> to vector<8x128xf32>
    %278 = vector.broadcast %9 : vector<1x128xf32> to vector<8x128xf32>
    %279 = arith.addf %277, %278 : vector<8x128xf32>
    %280 = vector.extract_strided_slice %272 {offsets = [0, 768], sizes = [8, 128], strides = [1, 1]} : vector<8x896xf32> to vector<8x128xf32>
    %281 = vector.extract_strided_slice %276 {offsets = [0, 0], sizes = [8, 128], strides = [1, 1]} : vector<8x256xf32> to vector<8x128xf32>
    %282 = arith.negf %281 : vector<8x128xf32>
    %283 = math.exp %282 : vector<8x128xf32>
    %cst_56 = arith.constant 1.000000e+00 : f32
    %284 = vector.broadcast %cst_56 : f32 to vector<8x128xf32>
    %285 = arith.addf %284, %283 : vector<8x128xf32>
    %286 = arith.divf %284, %285 : vector<8x128xf32>
    %287 = vector.extract_strided_slice %276 {offsets = [0, 128], sizes = [8, 128], strides = [1, 1]} : vector<8x256xf32> to vector<8x128xf32>
    %288 = arith.negf %287 : vector<8x128xf32>
    %289 = math.exp %288 : vector<8x128xf32>
    %cst_57 = arith.constant 1.000000e+00 : f32
    %290 = vector.broadcast %cst_57 : f32 to vector<8x128xf32>
    %291 = arith.addf %290, %289 : vector<8x128xf32>
    %292 = arith.divf %290, %291 : vector<8x128xf32>
    %293 = vector.broadcast %10 : vector<1x128xf32> to vector<8x128xf32>
    %294 = arith.addf %280, %293 : vector<8x128xf32>
    %295 = arith.mulf %286, %294 : vector<8x128xf32>
    %296 = arith.addf %279, %295 : vector<8x128xf32>
    %297 = math.tanh %296 : vector<8x128xf32>
    %298 = arith.subf %241, %297 : vector<8x128xf32>
    %299 = arith.mulf %292, %298 : vector<8x128xf32>
    %300 = arith.addf %297, %299 : vector<8x128xf32>
    %c40 = arith.constant 40 : index
    %c0_58 = arith.constant 0 : index
    %301 = vector.load %arg11[%c40, %c0_58] : memref<64x384xf32, #tpu.memory_space<vmem>>, vector<8x384xf32>
    %302 = vector.extract_strided_slice %301 {offsets = [0, 0], sizes = [8, 128], strides = [1, 1]} : vector<8x384xf32> to vector<8x128xf32>
    %303 = vector.extract_strided_slice %273 {offsets = [0, 0], sizes = [8, 128], strides = [1, 1]} : vector<8x384xf32> to vector<8x128xf32>
    %304 = arith.addf %302, %303 : vector<8x128xf32>
    %305 = arith.negf %304 : vector<8x128xf32>
    %306 = math.exp %305 : vector<8x128xf32>
    %cst_59 = arith.constant 1.000000e+00 : f32
    %307 = vector.broadcast %cst_59 : f32 to vector<8x128xf32>
    %308 = arith.addf %307, %306 : vector<8x128xf32>
    %309 = arith.divf %307, %308 : vector<8x128xf32>
    %310 = vector.extract_strided_slice %301 {offsets = [0, 128], sizes = [8, 128], strides = [1, 1]} : vector<8x384xf32> to vector<8x128xf32>
    %311 = vector.extract_strided_slice %273 {offsets = [0, 128], sizes = [8, 128], strides = [1, 1]} : vector<8x384xf32> to vector<8x128xf32>
    %312 = arith.addf %310, %311 : vector<8x128xf32>
    %313 = arith.negf %312 : vector<8x128xf32>
    %314 = math.exp %313 : vector<8x128xf32>
    %cst_60 = arith.constant 1.000000e+00 : f32
    %315 = vector.broadcast %cst_60 : f32 to vector<8x128xf32>
    %316 = arith.addf %315, %314 : vector<8x128xf32>
    %317 = arith.divf %315, %316 : vector<8x128xf32>
    %318 = vector.extract_strided_slice %301 {offsets = [0, 256], sizes = [8, 128], strides = [1, 1]} : vector<8x384xf32> to vector<8x128xf32>
    %319 = vector.extract_strided_slice %273 {offsets = [0, 256], sizes = [8, 128], strides = [1, 1]} : vector<8x384xf32> to vector<8x128xf32>
    %320 = vector.broadcast %7 : vector<1x128xf32> to vector<8x128xf32>
    %321 = arith.addf %319, %320 : vector<8x128xf32>
    %322 = arith.mulf %309, %321 : vector<8x128xf32>
    %323 = arith.addf %318, %322 : vector<8x128xf32>
    %324 = math.tanh %323 : vector<8x128xf32>
    %325 = arith.subf %268, %324 : vector<8x128xf32>
    %326 = arith.mulf %317, %325 : vector<8x128xf32>
    %327 = arith.addf %324, %326 : vector<8x128xf32>
    %328 = tpu.concatenate %327, %300 in 1 : vector<8x128xf32>, vector<8x128xf32> -> vector<8x256xf32>
    %329 = arith.truncf %328 : vector<8x256xf32> to vector<8x256xbf16>
    %c0_61 = arith.constant 0 : index
    %c0_62 = arith.constant 0 : index
    %330 = vector.load %arg2[%c0_61, %c0_62] : memref<256x896xbf16, #tpu.memory_space<vmem>>, vector<256x896xbf16>
    %cst_63 = arith.constant dense<0.000000e+00> : vector<8x896xf32>
    %331 = tpu.matmul %329, %330, %cst_63 {dimension_numbers = #tpu.dot_dimension_numbers<[1], [0], [0], [1], [0, 0, 1, 1], [], []>} : vector<8x256xbf16>, vector<256x896xbf16>, vector<8x896xf32> -> vector<8x896xf32>
    %332 = vector.extract_strided_slice %331 {offsets = [0, 0], sizes = [8, 384], strides = [1, 1]} : vector<8x896xf32> to vector<8x384xf32>
    %333 = vector.extract_strided_slice %331 {offsets = [0, 384], sizes = [8, 256], strides = [1, 1]} : vector<8x896xf32> to vector<8x256xf32>
    %334 = vector.broadcast %8 : vector<1x256xf32> to vector<8x256xf32>
    %335 = arith.addf %333, %334 : vector<8x256xf32>
    %336 = vector.extract_strided_slice %331 {offsets = [0, 640], sizes = [8, 128], strides = [1, 1]} : vector<8x896xf32> to vector<8x128xf32>
    %337 = vector.broadcast %9 : vector<1x128xf32> to vector<8x128xf32>
    %338 = arith.addf %336, %337 : vector<8x128xf32>
    %339 = vector.extract_strided_slice %331 {offsets = [0, 768], sizes = [8, 128], strides = [1, 1]} : vector<8x896xf32> to vector<8x128xf32>
    %340 = vector.extract_strided_slice %335 {offsets = [0, 0], sizes = [8, 128], strides = [1, 1]} : vector<8x256xf32> to vector<8x128xf32>
    %341 = arith.negf %340 : vector<8x128xf32>
    %342 = math.exp %341 : vector<8x128xf32>
    %cst_64 = arith.constant 1.000000e+00 : f32
    %343 = vector.broadcast %cst_64 : f32 to vector<8x128xf32>
    %344 = arith.addf %343, %342 : vector<8x128xf32>
    %345 = arith.divf %343, %344 : vector<8x128xf32>
    %346 = vector.extract_strided_slice %335 {offsets = [0, 128], sizes = [8, 128], strides = [1, 1]} : vector<8x256xf32> to vector<8x128xf32>
    %347 = arith.negf %346 : vector<8x128xf32>
    %348 = math.exp %347 : vector<8x128xf32>
    %cst_65 = arith.constant 1.000000e+00 : f32
    %349 = vector.broadcast %cst_65 : f32 to vector<8x128xf32>
    %350 = arith.addf %349, %348 : vector<8x128xf32>
    %351 = arith.divf %349, %350 : vector<8x128xf32>
    %352 = vector.broadcast %10 : vector<1x128xf32> to vector<8x128xf32>
    %353 = arith.addf %339, %352 : vector<8x128xf32>
    %354 = arith.mulf %345, %353 : vector<8x128xf32>
    %355 = arith.addf %338, %354 : vector<8x128xf32>
    %356 = math.tanh %355 : vector<8x128xf32>
    %357 = arith.subf %300, %356 : vector<8x128xf32>
    %358 = arith.mulf %351, %357 : vector<8x128xf32>
    %359 = arith.addf %356, %358 : vector<8x128xf32>
    %c48 = arith.constant 48 : index
    %c0_66 = arith.constant 0 : index
    %360 = vector.load %arg11[%c48, %c0_66] : memref<64x384xf32, #tpu.memory_space<vmem>>, vector<8x384xf32>
    %361 = vector.extract_strided_slice %360 {offsets = [0, 0], sizes = [8, 128], strides = [1, 1]} : vector<8x384xf32> to vector<8x128xf32>
    %362 = vector.extract_strided_slice %332 {offsets = [0, 0], sizes = [8, 128], strides = [1, 1]} : vector<8x384xf32> to vector<8x128xf32>
    %363 = arith.addf %361, %362 : vector<8x128xf32>
    %364 = arith.negf %363 : vector<8x128xf32>
    %365 = math.exp %364 : vector<8x128xf32>
    %cst_67 = arith.constant 1.000000e+00 : f32
    %366 = vector.broadcast %cst_67 : f32 to vector<8x128xf32>
    %367 = arith.addf %366, %365 : vector<8x128xf32>
    %368 = arith.divf %366, %367 : vector<8x128xf32>
    %369 = vector.extract_strided_slice %360 {offsets = [0, 128], sizes = [8, 128], strides = [1, 1]} : vector<8x384xf32> to vector<8x128xf32>
    %370 = vector.extract_strided_slice %332 {offsets = [0, 128], sizes = [8, 128], strides = [1, 1]} : vector<8x384xf32> to vector<8x128xf32>
    %371 = arith.addf %369, %370 : vector<8x128xf32>
    %372 = arith.negf %371 : vector<8x128xf32>
    %373 = math.exp %372 : vector<8x128xf32>
    %cst_68 = arith.constant 1.000000e+00 : f32
    %374 = vector.broadcast %cst_68 : f32 to vector<8x128xf32>
    %375 = arith.addf %374, %373 : vector<8x128xf32>
    %376 = arith.divf %374, %375 : vector<8x128xf32>
    %377 = vector.extract_strided_slice %360 {offsets = [0, 256], sizes = [8, 128], strides = [1, 1]} : vector<8x384xf32> to vector<8x128xf32>
    %378 = vector.extract_strided_slice %332 {offsets = [0, 256], sizes = [8, 128], strides = [1, 1]} : vector<8x384xf32> to vector<8x128xf32>
    %379 = vector.broadcast %7 : vector<1x128xf32> to vector<8x128xf32>
    %380 = arith.addf %378, %379 : vector<8x128xf32>
    %381 = arith.mulf %368, %380 : vector<8x128xf32>
    %382 = arith.addf %377, %381 : vector<8x128xf32>
    %383 = math.tanh %382 : vector<8x128xf32>
    %384 = arith.subf %327, %383 : vector<8x128xf32>
    %385 = arith.mulf %376, %384 : vector<8x128xf32>
    %386 = arith.addf %383, %385 : vector<8x128xf32>
    %387 = tpu.concatenate %386, %359 in 1 : vector<8x128xf32>, vector<8x128xf32> -> vector<8x256xf32>
    %388 = arith.truncf %387 : vector<8x256xf32> to vector<8x256xbf16>
    %c0_69 = arith.constant 0 : index
    %c0_70 = arith.constant 0 : index
    %389 = vector.load %arg2[%c0_69, %c0_70] : memref<256x896xbf16, #tpu.memory_space<vmem>>, vector<256x896xbf16>
    %cst_71 = arith.constant dense<0.000000e+00> : vector<8x896xf32>
    %390 = tpu.matmul %388, %389, %cst_71 {dimension_numbers = #tpu.dot_dimension_numbers<[1], [0], [0], [1], [0, 0, 1, 1], [], []>} : vector<8x256xbf16>, vector<256x896xbf16>, vector<8x896xf32> -> vector<8x896xf32>
    %391 = vector.extract_strided_slice %390 {offsets = [0, 0], sizes = [8, 384], strides = [1, 1]} : vector<8x896xf32> to vector<8x384xf32>
    %392 = vector.extract_strided_slice %390 {offsets = [0, 384], sizes = [8, 256], strides = [1, 1]} : vector<8x896xf32> to vector<8x256xf32>
    %393 = vector.broadcast %8 : vector<1x256xf32> to vector<8x256xf32>
    %394 = arith.addf %392, %393 : vector<8x256xf32>
    %395 = vector.extract_strided_slice %390 {offsets = [0, 640], sizes = [8, 128], strides = [1, 1]} : vector<8x896xf32> to vector<8x128xf32>
    %396 = vector.broadcast %9 : vector<1x128xf32> to vector<8x128xf32>
    %397 = arith.addf %395, %396 : vector<8x128xf32>
    %398 = vector.extract_strided_slice %390 {offsets = [0, 768], sizes = [8, 128], strides = [1, 1]} : vector<8x896xf32> to vector<8x128xf32>
    %399 = vector.extract_strided_slice %394 {offsets = [0, 0], sizes = [8, 128], strides = [1, 1]} : vector<8x256xf32> to vector<8x128xf32>
    %400 = arith.negf %399 : vector<8x128xf32>
    %401 = math.exp %400 : vector<8x128xf32>
    %cst_72 = arith.constant 1.000000e+00 : f32
    %402 = vector.broadcast %cst_72 : f32 to vector<8x128xf32>
    %403 = arith.addf %402, %401 : vector<8x128xf32>
    %404 = arith.divf %402, %403 : vector<8x128xf32>
    %405 = vector.extract_strided_slice %394 {offsets = [0, 128], sizes = [8, 128], strides = [1, 1]} : vector<8x256xf32> to vector<8x128xf32>
    %406 = arith.negf %405 : vector<8x128xf32>
    %407 = math.exp %406 : vector<8x128xf32>
    %cst_73 = arith.constant 1.000000e+00 : f32
    %408 = vector.broadcast %cst_73 : f32 to vector<8x128xf32>
    %409 = arith.addf %408, %407 : vector<8x128xf32>
    %410 = arith.divf %408, %409 : vector<8x128xf32>
    %411 = vector.broadcast %10 : vector<1x128xf32> to vector<8x128xf32>
    %412 = arith.addf %398, %411 : vector<8x128xf32>
    %413 = arith.mulf %404, %412 : vector<8x128xf32>
    %414 = arith.addf %397, %413 : vector<8x128xf32>
    %415 = math.tanh %414 : vector<8x128xf32>
    %416 = arith.subf %359, %415 : vector<8x128xf32>
    %417 = arith.mulf %410, %416 : vector<8x128xf32>
    %418 = arith.addf %415, %417 : vector<8x128xf32>
    %c56 = arith.constant 56 : index
    %c0_74 = arith.constant 0 : index
    %419 = vector.load %arg11[%c56, %c0_74] : memref<64x384xf32, #tpu.memory_space<vmem>>, vector<8x384xf32>
    %420 = vector.extract_strided_slice %419 {offsets = [0, 0], sizes = [8, 128], strides = [1, 1]} : vector<8x384xf32> to vector<8x128xf32>
    %421 = vector.extract_strided_slice %391 {offsets = [0, 0], sizes = [8, 128], strides = [1, 1]} : vector<8x384xf32> to vector<8x128xf32>
    %422 = arith.addf %420, %421 : vector<8x128xf32>
    %423 = arith.negf %422 : vector<8x128xf32>
    %424 = math.exp %423 : vector<8x128xf32>
    %cst_75 = arith.constant 1.000000e+00 : f32
    %425 = vector.broadcast %cst_75 : f32 to vector<8x128xf32>
    %426 = arith.addf %425, %424 : vector<8x128xf32>
    %427 = arith.divf %425, %426 : vector<8x128xf32>
    %428 = vector.extract_strided_slice %419 {offsets = [0, 128], sizes = [8, 128], strides = [1, 1]} : vector<8x384xf32> to vector<8x128xf32>
    %429 = vector.extract_strided_slice %391 {offsets = [0, 128], sizes = [8, 128], strides = [1, 1]} : vector<8x384xf32> to vector<8x128xf32>
    %430 = arith.addf %428, %429 : vector<8x128xf32>
    %431 = arith.negf %430 : vector<8x128xf32>
    %432 = math.exp %431 : vector<8x128xf32>
    %cst_76 = arith.constant 1.000000e+00 : f32
    %433 = vector.broadcast %cst_76 : f32 to vector<8x128xf32>
    %434 = arith.addf %433, %432 : vector<8x128xf32>
    %435 = arith.divf %433, %434 : vector<8x128xf32>
    %436 = vector.extract_strided_slice %419 {offsets = [0, 256], sizes = [8, 128], strides = [1, 1]} : vector<8x384xf32> to vector<8x128xf32>
    %437 = vector.extract_strided_slice %391 {offsets = [0, 256], sizes = [8, 128], strides = [1, 1]} : vector<8x384xf32> to vector<8x128xf32>
    %438 = vector.broadcast %7 : vector<1x128xf32> to vector<8x128xf32>
    %439 = arith.addf %437, %438 : vector<8x128xf32>
    %440 = arith.mulf %427, %439 : vector<8x128xf32>
    %441 = arith.addf %436, %440 : vector<8x128xf32>
    %442 = math.tanh %441 : vector<8x128xf32>
    %443 = arith.subf %386, %442 : vector<8x128xf32>
    %444 = arith.mulf %435, %443 : vector<8x128xf32>
    %445 = arith.addf %442, %444 : vector<8x128xf32>
    %446 = tpu.concatenate %445, %418 in 1 : vector<8x128xf32>, vector<8x128xf32> -> vector<8x256xf32>
    %447 = arith.truncf %446 : vector<8x256xf32> to vector<8x256xbf16>
    %c0_77 = arith.constant 0 : index
    %c0_78 = arith.constant 0 : index
    %448 = vector.load %arg2[%c0_77, %c0_78] : memref<256x896xbf16, #tpu.memory_space<vmem>>, vector<256x896xbf16>
    %cst_79 = arith.constant dense<0.000000e+00> : vector<8x896xf32>
    %449 = tpu.matmul %447, %448, %cst_79 {dimension_numbers = #tpu.dot_dimension_numbers<[1], [0], [0], [1], [0, 0, 1, 1], [], []>} : vector<8x256xbf16>, vector<256x896xbf16>, vector<8x896xf32> -> vector<8x896xf32>
    %450 = vector.extract_strided_slice %449 {offsets = [0, 384], sizes = [8, 256], strides = [1, 1]} : vector<8x896xf32> to vector<8x256xf32>
    %451 = vector.broadcast %8 : vector<1x256xf32> to vector<8x256xf32>
    %452 = arith.addf %450, %451 : vector<8x256xf32>
    %453 = vector.extract_strided_slice %449 {offsets = [0, 640], sizes = [8, 128], strides = [1, 1]} : vector<8x896xf32> to vector<8x128xf32>
    %454 = vector.broadcast %9 : vector<1x128xf32> to vector<8x128xf32>
    %455 = arith.addf %453, %454 : vector<8x128xf32>
    %456 = vector.extract_strided_slice %449 {offsets = [0, 768], sizes = [8, 128], strides = [1, 1]} : vector<8x896xf32> to vector<8x128xf32>
    %457 = vector.extract_strided_slice %452 {offsets = [0, 0], sizes = [8, 128], strides = [1, 1]} : vector<8x256xf32> to vector<8x128xf32>
    %458 = arith.negf %457 : vector<8x128xf32>
    %459 = math.exp %458 : vector<8x128xf32>
    %cst_80 = arith.constant 1.000000e+00 : f32
    %460 = vector.broadcast %cst_80 : f32 to vector<8x128xf32>
    %461 = arith.addf %460, %459 : vector<8x128xf32>
    %462 = arith.divf %460, %461 : vector<8x128xf32>
    %463 = vector.extract_strided_slice %452 {offsets = [0, 128], sizes = [8, 128], strides = [1, 1]} : vector<8x256xf32> to vector<8x128xf32>
    %464 = arith.negf %463 : vector<8x128xf32>
    %465 = math.exp %464 : vector<8x128xf32>
    %cst_81 = arith.constant 1.000000e+00 : f32
    %466 = vector.broadcast %cst_81 : f32 to vector<8x128xf32>
    %467 = arith.addf %466, %465 : vector<8x128xf32>
    %468 = arith.divf %466, %467 : vector<8x128xf32>
    %469 = vector.broadcast %10 : vector<1x128xf32> to vector<8x128xf32>
    %470 = arith.addf %456, %469 : vector<8x128xf32>
    %471 = arith.mulf %462, %470 : vector<8x128xf32>
    %472 = arith.addf %455, %471 : vector<8x128xf32>
    %473 = math.tanh %472 : vector<8x128xf32>
    %474 = arith.subf %418, %473 : vector<8x128xf32>
    %475 = arith.mulf %468, %474 : vector<8x128xf32>
    %476 = arith.addf %473, %475 : vector<8x128xf32>
    %477 = arith.truncf %476 : vector<8x128xf32> to vector<8x128xbf16>
    %c0_82 = arith.constant 0 : index
    %c0_83 = arith.constant 0 : index
    %478 = vector.load %arg8[%c0_82, %c0_83] : memref<128x128xbf16, #tpu.memory_space<vmem>>, vector<128x128xbf16>
    %cst_84 = arith.constant dense<0.000000e+00> : vector<8x128xf32>
    %479 = tpu.matmul %477, %478, %cst_84 {dimension_numbers = #tpu.dot_dimension_numbers<[1], [0], [0], [1], [0, 0, 1, 1], [], []>} : vector<8x128xbf16>, vector<128x128xbf16>, vector<8x128xf32> -> vector<8x128xf32>
    %c0_85 = arith.constant 0 : index
    %c0_86 = arith.constant 0 : index
    %480 = vector.load %arg9[%c0_85, %c0_86] : memref<1x128xf32, #tpu.memory_space<vmem>>, vector<1x128xf32>
    %481 = vector.broadcast %480 : vector<1x128xf32> to vector<8x128xf32>
    %482 = arith.addf %479, %481 : vector<8x128xf32>
    %c0_87 = arith.constant 0 : index
    %c0_88 = arith.constant 0 : index
    %483 = vector.load %arg10[%c0_87, %c0_88] : memref<8x128xf32, #tpu.memory_space<vmem>>, vector<8x128xf32>
    tpu.vector_store %arg10[%c0_87, %c0_88], %482 {strides = array<i32>} : memref<8x128xf32, #tpu.memory_space<vmem>>, vector<8x128xf32>,
    return
  }
}

</mosaic_0001>

<llo_original>
// kernel: simple_gru_forward.1
$region0: #{simple_gru_forward.1}
  #allocation0 [shape = 'u32[]', space=smem, size = 0x4, offset = 0x4, fixed_abs, tag = 'smem constant byte address 0x4 - core index']
  #allocation1 [shape = 'u32[144,128]{1,0:T(1,128)}', space=vmem, size = 0x12000, scoped, tag = 'internal scratch']
  #allocation2 [shape = 'f32[64,384]{1,0:T(8,128)}', space=vmem, size = 0x18000, scoped, tag = 'scratch operand']
  %s0 = inlined_call_operand.vmem [shape: bf16[64,48], index: 0, kind: input, shape index: {}]
  %s1 = inlined_call_operand.vmem [shape: bf16[48,384], index: 1, kind: input, shape index: {}]
  %s2 = inlined_call_operand.hbm [shape: bf16[256,896], index: 2, kind: input, shape index: {}]
  %s3 = inlined_call_operand.vmem [shape: f32[1,384], index: 3, kind: input, shape index: {}]
  %s4 = inlined_call_operand.vmem [shape: f32[1,128], index: 4, kind: input, shape index: {}]
  %s5 = inlined_call_operand.vmem [shape: f32[1,256], index: 5, kind: input, shape index: {}]
  %s6 = inlined_call_operand.vmem [shape: f32[1,128], index: 6, kind: input, shape index: {}]
  %s7 = inlined_call_operand.vmem [shape: f32[1,128], index: 7, kind: input, shape index: {}]
  %s8 = inlined_call_operand.hbm [shape: bf16[128,128], index: 8, kind: input, shape index: {}]
  %s9 = inlined_call_operand.vmem [shape: f32[1,128], index: 9, kind: input, shape index: {}]
  %s10 = inlined_call_operand.vmem [shape: f32[8,128], index: 10, kind: output, shape index: {}]
  %s11 = sld [smem:[#allocation0]]
  $region58: #{simple_gru_forward.1} parent=0
    _
  %s13 = ssub.s32 1, %s11
  %s14 = scalar_select 0, %s13, %s11
  $region1: #{simple_gru_forward.1} parent=0
    #allocation3 [shape = 'u8[458752]{0}', space=vmem, size = 0x70000, scoped, tag = 'input window, operand 2, single buffered']
    #allocation4 [shape = 's32[1]{0}', space=sflag, size = 0x4, scoped, tag = 'scoped memory for simple_gru_forward.1']
    #allocation5 [shape = 'u8[32768]{0}', space=vmem, size = 0x8000, scoped, tag = 'input window, operand 8, single buffered']
    #allocation6 [shape = 's32[1]{0}', space=sflag, size = 0x4, scoped, tag = 'scoped memory for simple_gru_forward.1']
    %15 = vsyncpa [#allocation4], 0
    %16 = vsyncpa [#allocation6], 0
    // Predicated region
    $region2: #{simple_gru_forward.1} parent=1 // pred_check
      _
    $region3: #{simple_gru_forward.1} parent=1 // pred_check_branch
      %18 = sbr.rel (0) target = $region5
    $region4: #{simple_gru_forward.1} parent=1 // pred_region
      _
    $region5: #{simple_gru_forward.1} parent=1 // pred_fallthru
      _
    // Predicated region
    $region6: #{simple_gru_forward.1} parent=1 // pred_check
      _
    $region7: #{simple_gru_forward.1} parent=1 // pred_check_branch
      %20 = sbr.rel (0) target = $region9
    $region8: #{simple_gru_forward.1} parent=1 // pred_region
      _
    $region9: #{simple_gru_forward.1} parent=1 // pred_fallthru
      _
    // Predicated region
    $region10: #{simple_gru_forward.1} parent=1 // pred_check
      _
    $region11: #{simple_gru_forward.1} parent=1 // pred_check_branch
      %22 = sbr.rel (0) target = $region13
    $region12: #{simple_gru_forward.1} parent=1 // pred_region
      %s24 = ssub.s32 14336, 14336
      %25 = vsyncadd [#allocation4], %s24
      %s26 = sshll.u32 [#allocation3], 4
      %s27 = int_to_ptr.vmem [resolvable:$true] %s26
      %32 = dma.hbm_to_vmem [thread:$0]  %s2, 14336, %s27, [#allocation4], 448, 448, 28
    $region13: #{simple_gru_forward.1} parent=1 // pred_fallthru
      _
    // Predicated region
    $region14: #{simple_gru_forward.1} parent=1 // pred_check
      _
    $region15: #{simple_gru_forward.1} parent=1 // pred_check_branch
      %34 = sbr.rel (0) target = $region17
    $region16: #{simple_gru_forward.1} parent=1 // pred_region
      _
    $region17: #{simple_gru_forward.1} parent=1 // pred_fallthru
      _
    // Predicated region
    $region18: #{simple_gru_forward.1} parent=1 // pred_check
      _
    $region19: #{simple_gru_forward.1} parent=1 // pred_check_branch
      %36 = sbr.rel (0) target = $region21
    $region20: #{simple_gru_forward.1} parent=1 // pred_region
      _
    $region21: #{simple_gru_forward.1} parent=1 // pred_fallthru
      _
    // Predicated region
    $region22: #{simple_gru_forward.1} parent=1 // pred_check
      _
    $region23: #{simple_gru_forward.1} parent=1 // pred_check_branch
      %38 = sbr.rel (0) target = $region25
    $region24: #{simple_gru_forward.1} parent=1 // pred_region
      _
    $region25: #{simple_gru_forward.1} parent=1 // pred_fallthru
      _
    // Predicated region
    $region26: #{simple_gru_forward.1} parent=1 // pred_check
      _
    $region27: #{simple_gru_forward.1} parent=1 // pred_check_branch
      %40 = sbr.rel (0) target = $region29
    $region28: #{simple_gru_forward.1} parent=1 // pred_region
      _
    $region29: #{simple_gru_forward.1} parent=1 // pred_fallthru
      _
    // Predicated region
    $region30: #{simple_gru_forward.1} parent=1 // pred_check
      _
    $region31: #{simple_gru_forward.1} parent=1 // pred_check_branch
      %42 = sbr.rel (0) target = $region33
    $region32: #{simple_gru_forward.1} parent=1 // pred_region
      _
    $region33: #{simple_gru_forward.1} parent=1 // pred_fallthru
      _
    // Predicated region
    $region34: #{simple_gru_forward.1} parent=1 // pred_check
      _
    $region35: #{simple_gru_forward.1} parent=1 // pred_check_branch
      %44 = sbr.rel (0) target = $region37
    $region36: #{simple_gru_forward.1} parent=1 // pred_region
      %s46 = ssub.s32 1024, 1024
      %47 = vsyncadd [#allocation6], %s46
      %s48 = sshll.u32 [#allocation5], 4
      %s49 = int_to_ptr.vmem [resolvable:$true] %s48
      %54 = dma.hbm_to_vmem [thread:$0]  %s8, 1024, %s49, [#allocation6], 64, 64, 4
    $region37: #{simple_gru_forward.1} parent=1 // pred_fallthru
      _
    // Predicated region
    $region38: #{simple_gru_forward.1} parent=1 // pred_check
      _
    $region39: #{simple_gru_forward.1} parent=1 // pred_check_branch
      %56 = sbr.rel (0) target = $region41
    $region40: #{simple_gru_forward.1} parent=1 // pred_region
      _
    $region41: #{simple_gru_forward.1} parent=1 // pred_fallthru
      _
    // Predicated region
    $region42: #{simple_gru_forward.1} parent=1 // pred_check
      _
    $region43: #{simple_gru_forward.1} parent=1 // pred_check_branch
      %58 = sbr.rel (0) target = $region45
    $region44: #{simple_gru_forward.1} parent=1 // pred_region
      %59 = dma.done [#allocation4], 14336
    $region45: #{simple_gru_forward.1} parent=1 // pred_fallthru
      _
    // Predicated region
    $region46: #{simple_gru_forward.1} parent=1 // pred_check
      _
    $region47: #{simple_gru_forward.1} parent=1 // pred_check_branch
      %61 = sbr.rel (0) target = $region49
    $region48: #{simple_gru_forward.1} parent=1 // pred_region
      %62 = dma.done [#allocation6], 1024
    $region49: #{simple_gru_forward.1} parent=1 // pred_fallthru
      _
    %v64 = vld [vmem:[%s0] sm:$0xf]
    %v65 = vld [vmem:[%s0 + $0x4] sm:$0xf]
    %v66 = vld [vmem:[%s0 + $0x8] sm:$0xf]
    %v67 = vld [vmem:[%s0 + $0xc] sm:$0xf]
    %v68 = vld [vmem:[%s0 + $0x10] sm:$0xf]
    %v69 = vld [vmem:[%s0 + $0x14] sm:$0xf]
    %v70 = vld [vmem:[%s0 + $0x18] sm:$0xf]
    %v71 = vld [vmem:[%s0 + $0x1c] sm:$0xf]
    %v72 = vld [vmem:[%s1] sm:$0xff]
    %v73 = vld [vmem:[%s1 + $0x8] sm:$0xf]
    %v74 = vld [vmem:[%s1 + $0xc] sm:$0xff]
    %v75 = vld [vmem:[%s1 + $0x14] sm:$0xf]
    %v76 = vld [vmem:[%s1 + $0x18] sm:$0xff]
    %v77 = vld [vmem:[%s1 + $0x20] sm:$0xf]
    %v78 = vld [vmem:[%s1 + $0x24] sm:$0xff]
    %v79 = vld [vmem:[%s1 + $0x2c] sm:$0xf]
    %v80 = vld [vmem:[%s1 + $0x30] sm:$0xff]
    %v81 = vld [vmem:[%s1 + $0x38] sm:$0xf]
    %v82 = vld [vmem:[%s1 + $0x3c] sm:$0xff]
    %v83 = vld [vmem:[%s1 + $0x44] sm:$0xf]
    %v84 = vld [vmem:[%s3] sm:$0x7]
    %v86 = vlaneseq
    %v87 = vshrl.u32 %v86, 7
    %v88 = vsub.s32 0, %v87
    %v89 = vrot.slane %v84, %v88
    %v90 = vlaneseq
    %v91 = vshrl.u32 %v90, 7
    %v92 = vsub.s32 1, %v91
    %v93 = vrot.slane %v84, %v92
    %v94 = vlaneseq
    %v95 = vshrl.u32 %v94, 7
    %v96 = vsub.s32 2, %v95
    %v97 = vrot.slane %v84, %v96
    %v109 = vunpack.c.l.b16 %v64
    %v110 = vunpack.c.l.b16 %v65
    %v111 = vunpack.c.l.b16 %v66
    %v112 = vunpack.c.l.b16 %v67
    %v113 = vunpack.c.l.b16 %v68
    %v114 = vunpack.c.l.b16 %v69
    %v115 = vunpack.c.l.b16 %v70
    %v116 = vunpack.c.l.b16 %v71
    %v117 = vpack.c.b16 %v110, %v109
    %v118 = vpack.c.b16 %v112, %v111
    %v119 = vpack.c.b16 %v114, %v113
    %v120 = vpack.c.b16 %v116, %v115
    %v133 = vunpack.c.l.b16 %v72
    %v134 = vunpack.c.h.b16 %v72
    %v135 = vunpack.c.l.b16 %v73
    %v136 = vunpack.c.l.b16 %v74
    %v137 = vunpack.c.h.b16 %v74
    %v138 = vunpack.c.l.b16 %v75
    %v139 = vunpack.c.l.b16 %v76
    %v140 = vunpack.c.h.b16 %v76
    %v141 = vunpack.c.l.b16 %v77
    %v142 = vunpack.c.l.b16 %v78
    %v143 = vunpack.c.h.b16 %v78
    %v144 = vunpack.c.l.b16 %v79
    %v145 = vunpack.c.l.b16 %v80
    %v146 = vunpack.c.h.b16 %v80
    %v147 = vunpack.c.l.b16 %v81
    %v148 = vunpack.c.l.b16 %v82
    %v149 = vunpack.c.h.b16 %v82
    %v150 = vunpack.c.l.b16 %v83
    %v151 = vpack.c.b16 %v136, %v133
    %v152 = vpack.c.b16 %v137, %v134
    %v153 = vpack.c.b16 %v138, %v135
    %v154 = vpack.c.b16 %v142, %v139
    %v155 = vpack.c.b16 %v143, %v140
    %v156 = vpack.c.b16 %v144, %v141
    %v157 = vpack.c.b16 %v148, %v145
    %v158 = vpack.c.b16 %v149, %v146
    %v159 = vpack.c.b16 %v150, %v147
    %vm169 = vcmask 392192
    %v171 = vsel %vm169, %v117, 0
    %v174 = vsel %vm169, %v118, 0
    %v177 = vsel %vm169, %v119, 0
    %v180 = vsel %vm169, %v120, 0
    %182 = vmatprep.subr.bf16.mxu0 %v152
    %183 = vmatpush1.bf16.msra.mxu0 %v151
    %184 = vmatprep.subr.bf16.mxu0 %v155
    %185 = vmatpush1.bf16.msra.mxu0 %v154
    %186 = vmatprep.subr.bf16.mxu0 %v158
    %187 = vmatpush1.bf16.msra.mxu0 %v157
    %188 = vmatprep.subr.bf16.mxu0 0
    %189 = vmatpush1.bf16.msra.mxu0 0
    %190 = vmatprep.subr.bf16.mxu0 0
    %191 = vmatpush1.bf16.msra.mxu0 0
    %192 = vmatprep.subr.bf16.mxu0 0
    %193 = vmatpush1.bf16.msra.mxu0 0
    %194 = vmatprep.subr.bf16.mxu0 0
    %195 = vmatpush1.bf16.msra.mxu0 0
    %196 = vmatprep.subr.bf16.mxu0 0
    %197 = vmatpush1.bf16.msra.mxu0 0
    %198 = vmatprep.subr.bf16.mxu0 0
    %199 = vmatpush1.bf16.msra.mxu0 0
    %200 = vmatprep.subr.bf16.mxu0 0
    %201 = vmatpush1.bf16.msra.mxu0 0
    %202 = vmatprep.subr.bf16.mxu0 0
    %203 = vmatpush1.bf16.msra.mxu0 0
    %204 = vmatprep.subr.bf16.mxu0 0
    %205 = vmatpush1.bf16.msra.mxu0 0
    %206 = vmatprep.subr.bf16.mxu0 0
    %207 = vmatpush1.bf16.msra.mxu0 0
    %208 = vmatprep.subr.bf16.mxu0 0
    %209 = vmatpush1.bf16.msra.mxu0 0
    %210 = vmatprep.subr.bf16.mxu0 0
    %211 = vmatpush1.bf16.msra.mxu0 0
    %212 = vmatprep.subr.bf16.mxu0 0
    %213 = vmatpush1.bf16.msra.mxu0 0
    %214 = vmatprep.mubr.bf16.mxu0 0
    %215 = vmatmul.mubr.bf16.gmra.mrb[0].mxu0 %v171
    %v216 = vpop.f32.mrb[0].mxu0
    %v217 = vadd.f32 %v89, %v216
    %v218 = vpop.f32.mrb[0].mxu0
    %v219 = vadd.f32 %v93, %v218
    %v220 = vpop.f32.mrb[0].mxu0
    %v221 = vadd.f32 %v89, %v220
    %v222 = vpop.f32.mrb[0].mxu0
    %v223 = vadd.f32 %v93, %v222
    %224 = vmatprep.mubr.bf16.mxu0 0
    %225 = vmatmul.mubr.bf16.gmra.mrb[0].mxu0 %v174
    %v226 = vpop.f32.mrb[0].mxu0
    %v227 = vadd.f32 %v89, %v226
    %v228 = vpop.f32.mrb[0].mxu0
    %v229 = vadd.f32 %v93, %v228
    %v230 = vpop.f32.mrb[0].mxu0
    %v231 = vadd.f32 %v89, %v230
    %v232 = vpop.f32.mrb[0].mxu0
    %v233 = vadd.f32 %v93, %v232
    %234 = vmatprep.mubr.bf16.mxu0 0
    %235 = vmatmul.mubr.bf16.gmra.mrb[0].mxu0 %v177
    %v236 = vpop.f32.mrb[0].mxu0
    %v237 = vadd.f32 %v89, %v236
    %v238 = vpop.f32.mrb[0].mxu0
    %v239 = vadd.f32 %v93, %v238
    %v240 = vpop.f32.mrb[0].mxu0
    %v241 = vadd.f32 %v89, %v240
    %v242 = vpop.f32.mrb[0].mxu0
    %v243 = vadd.f32 %v93, %v242
    %244 = vmatprep.mubr.bf16.mxu0 0
    %245 = vmatmul.mubr.bf16.gmra.mrb[0].mxu0 %v180
    %v246 = vpop.f32.mrb[0].mxu0
    %v247 = vadd.f32 %v89, %v246
    %v248 = vpop.f32.mrb[0].mxu0
    %v249 = vadd.f32 %v93, %v248
    %v250 = vpop.f32.mrb[0].mxu0
    %v251 = vadd.f32 %v89, %v250
    %v252 = vpop.f32.mrb[0].mxu0
    %v253 = vadd.f32 %v93, %v252
    %254 = vdwg.mxu0
    %255 = vmatprep.subr.bf16.mxu0 0
    %256 = vmatpush1.bf16.msra.mxu0 %v153
    %257 = vmatprep.subr.bf16.mxu0 0
    %258 = vmatpush1.bf16.msra.mxu0 %v156
    %259 = vmatprep.subr.bf16.mxu0 0
    %260 = vmatpush1.bf16.msra.mxu0 %v159
    %261 = vmatprep.subr.bf16.mxu0 0
    %262 = vmatpush1.bf16.msra.mxu0 0
    %263 = vmatprep.subr.bf16.mxu0 0
    %264 = vmatpush1.bf16.msra.mxu0 0
    %265 = vmatprep.subr.bf16.mxu0 0
    %266 = vmatpush1.bf16.msra.mxu0 0
    %267 = vmatprep.subr.bf16.mxu0 0
    %268 = vmatpush1.bf16.msra.mxu0 0
    %269 = vmatprep.subr.bf16.mxu0 0
    %270 = vmatpush1.bf16.msra.mxu0 0
    %271 = vmatprep.subr.bf16.mxu0 0
    %272 = vmatpush1.bf16.msra.mxu0 0
    %273 = vmatprep.subr.bf16.mxu0 0
    %274 = vmatpush1.bf16.msra.mxu0 0
    %275 = vmatprep.subr.bf16.mxu0 0
    %276 = vmatpush1.bf16.msra.mxu0 0
    %277 = vmatprep.subr.bf16.mxu0 0
    %278 = vmatpush1.bf16.msra.mxu0 0
    %279 = vmatprep.subr.bf16.mxu0 0
    %280 = vmatpush1.bf16.msra.mxu0 0
    %281 = vmatprep.subr.bf16.mxu0 0
    %282 = vmatpush1.bf16.msra.mxu0 0
    %283 = vmatprep.subr.bf16.mxu0 0
    %284 = vmatpush1.bf16.msra.mxu0 0
    %285 = vmatprep.subr.bf16.mxu0 0
    %286 = vmatpush1.bf16.msra.mxu0 0
    %287 = vmatprep.mubr.bf16.mxu0 0
    %288 = vmatmul.mubr.bf16.gmra.mrb[0].mxu0 %v171
    %v289 = vpop.f32.mrb[0].mxu0
    %v290 = vadd.f32 %v97, %v289
    %v291 = vpop.f32.mrb[0].mxu0
    %v292 = vpop.f32.mrb[0].mxu0
    %v293 = vadd.f32 %v97, %v292
    %v294 = vpop.f32.mrb[0].mxu0
    %295 = vmatprep.mubr.bf16.mxu0 0
    %296 = vmatmul.mubr.bf16.gmra.mrb[0].mxu0 %v174
    %v297 = vpop.f32.mrb[0].mxu0
    %v298 = vadd.f32 %v97, %v297
    %v299 = vpop.f32.mrb[0].mxu0
    %v300 = vpop.f32.mrb[0].mxu0
    %v301 = vadd.f32 %v97, %v300
    %v302 = vpop.f32.mrb[0].mxu0
    %303 = vmatprep.mubr.bf16.mxu0 0
    %304 = vmatmul.mubr.bf16.gmra.mrb[0].mxu0 %v177
    %v305 = vpop.f32.mrb[0].mxu0
    %v306 = vadd.f32 %v97, %v305
    %v307 = vpop.f32.mrb[0].mxu0
    %v308 = vpop.f32.mrb[0].mxu0
    %v309 = vadd.f32 %v97, %v308
    %v310 = vpop.f32.mrb[0].mxu0
    %311 = vmatprep.mubr.bf16.mxu0 0
    %312 = vmatmul.mubr.bf16.gmra.mrb[0].mxu0 %v180
    %v313 = vpop.f32.mrb[0].mxu0
    %v314 = vadd.f32 %v97, %v313
    %v315 = vpop.f32.mrb[0].mxu0
    %v316 = vpop.f32.mrb[0].mxu0
    %v317 = vadd.f32 %v97, %v316
    %v318 = vpop.f32.mrb[0].mxu0
    %319 = vdwg.mxu0
    %320 = vst [vmem:[#allocation2] sm:$0xff] %v217
    %321 = vst [vmem:[#allocation2 + $0x8] sm:$0xff] %v219
    %322 = vst [vmem:[#allocation2 + $0x10] sm:$0xff] %v290
    %323 = vst [vmem:[#allocation2 + $0x18] sm:$0xff] %v221
    %324 = vst [vmem:[#allocation2 + $0x20] sm:$0xff] %v223
    %325 = vst [vmem:[#allocation2 + $0x28] sm:$0xff] %v293
    %326 = vst [vmem:[#allocation2 + $0x30] sm:$0xff] %v227
    %327 = vst [vmem:[#allocation2 + $0x38] sm:$0xff] %v229
    %328 = vst [vmem:[#allocation2 + $0x40] sm:$0xff] %v298
    %329 = vst [vmem:[#allocation2 + $0x48] sm:$0xff] %v231
    %330 = vst [vmem:[#allocation2 + $0x50] sm:$0xff] %v233
    %331 = vst [vmem:[#allocation2 + $0x58] sm:$0xff] %v301
    %332 = vst [vmem:[#allocation2 + $0x60] sm:$0xff] %v237
    %333 = vst [vmem:[#allocation2 + $0x68] sm:$0xff] %v239
    %334 = vst [vmem:[#allocation2 + $0x70] sm:$0xff] %v306
    %335 = vst [vmem:[#allocation2 + $0x78] sm:$0xff] %v241
    %336 = vst [vmem:[#allocation2 + $0x80] sm:$0xff] %v243
    %337 = vst [vmem:[#allocation2 + $0x88] sm:$0xff] %v309
    %338 = vst [vmem:[#allocation2 + $0x90] sm:$0xff] %v247
    %339 = vst [vmem:[#allocation2 + $0x98] sm:$0xff] %v249
    %340 = vst [vmem:[#allocation2 + $0xa0] sm:$0xff] %v314
    %341 = vst [vmem:[#allocation2 + $0xa8] sm:$0xff] %v251
    %342 = vst [vmem:[#allocation2 + $0xb0] sm:$0xff] %v253
    %343 = vst [vmem:[#allocation2 + $0xb8] sm:$0xff] %v317
    %v344 = vld [vmem:[%s4] sm:$0x1]
    %v345 = vld [vmem:[%s5] sm:$0x3]
    %v346 = vld [vmem:[%s6] sm:$0x1]
    %v347 = vld [vmem:[%s7] sm:$0x1]
    %v348 = vld [vmem:[#allocation2] sm:$0xff]
    %v349 = vld [vmem:[#allocation2 + $0x8] sm:$0xff]
    %v350 = vld [vmem:[#allocation2 + $0x10] sm:$0xff]
    %v351 = vxor.u32 %v348, 2147483648
    %v352 = vmul.f32 %v351, 1.442695
    %v353 = vpow.pop %v352
    %v354 = vadd.f32 %v353, 1.0
    %v355 = vrcp.pop %v354
    %v356 = vmul.f32 1.0, %v355
    %v357 = vxor.u32 %v349, 2147483648
    %v358 = vmul.f32 %v357, 1.442695
    %v359 = vpow.pop %v358
    %v360 = vadd.f32 %v359, 1.0
    %v361 = vrcp.pop %v360
    %v362 = vmul.f32 1.0, %v361
    %v364 = vlaneseq
    %v365 = vshrl.u32 %v364, 7
    %v366 = vsub.s32 0, %v365
    %v367 = vrot.slane %v344, %v366
    %v369 = vmul.f32 %v356, %v367
    %v370 = vadd.f32 %v350, %v369
    %v371 = vtanh.pop %v370
    %v372 = vsub.f32 1.0, %v362
    %v373 = vmul.f32 %v372, %v371
    %v374 = vpack.c.bf16 %v373, %v373
    %v375 = vpack.c.bf16 0.0, 0.0
    %v376 = vld [vmem:[#allocation3] sm:$0xff]
    %v377 = vld [vmem:[#allocation3 + $0x8] sm:$0xff]
    %v378 = vld [vmem:[#allocation3 + $0x10] sm:$0xff]
    %v379 = vld [vmem:[#allocation3 + $0x18] sm:$0xf]
    %v380 = vld [vmem:[#allocation3 + $0x1c] sm:$0xff]
    %v381 = vld [vmem:[#allocation3 + $0x24] sm:$0xff]
    %v382 = vld [vmem:[#allocation3 + $0x2c] sm:$0xff]
    %v383 = vld [vmem:[#allocation3 + $0x34] sm:$0xf]
    %v384 = vld [vmem:[#allocation3 + $0x38] sm:$0xff]
    %v385 = vld [vmem:[#allocation3 + $0x40] sm:$0xff]
    %v386 = vld [vmem:[#allocation3 + $0x48] sm:$0xff]
    %v387 = vld [vmem:[#allocation3 + $0x50] sm:$0xf]
    %v388 = vld [vmem:[#allocation3 + $0x54] sm:$0xff]
    %v389 = vld [vmem:[#allocation3 + $0x5c] sm:$0xff]
    %v390 = vld [vmem:[#allocation3 + $0x64] sm:$0xff]
    %v391 = vld [vmem:[#allocation3 + $0x6c] sm:$0xf]
    %v392 = vld [vmem:[#allocation3 + $0x70] sm:$0xff]
    %v393 = vld [vmem:[#allocation3 + $0x78] sm:$0xff]
    %v394 = vld [vmem:[#allocation3 + $0x80] sm:$0xff]
    %v395 = vld [vmem:[#allocation3 + $0x88] sm:$0xf]
    %v396 = vld [vmem:[#allocation3 + $0x8c] sm:$0xff]
    %v397 = vld [vmem:[#allocation3 + $0x94] sm:$0xff]
    %v398 = vld [vmem:[#allocation3 + $0x9c] sm:$0xff]
    %v399 = vld [vmem:[#allocation3 + $0xa4] sm:$0xf]
    %v400 = vld [vmem:[#allocation3 + $0xa8] sm:$0xff]
    %v401 = vld [vmem:[#allocation3 + $0xb0] sm:$0xff]
    %v402 = vld [vmem:[#allocation3 + $0xb8] sm:$0xff]
    %v403 = vld [vmem:[#allocation3 + $0xc0] sm:$0xf]
    %v404 = vld [vmem:[#allocation3 + $0xc4] sm:$0xff]
    %v405 = vld [vmem:[#allocation3 + $0xcc] sm:$0xff]
    %v406 = vld [vmem:[#allocation3 + $0xd4] sm:$0xff]
    %v407 = vld [vmem:[#allocation3 + $0xdc] sm:$0xf]
    %v408 = vld [vmem:[#allocation3 + $0xe0] sm:$0xff]
    %v409 = vld [vmem:[#allocation3 + $0xe8] sm:$0xff]
    %v410 = vld [vmem:[#allocation3 + $0xf0] sm:$0xff]
    %v411 = vld [vmem:[#allocation3 + $0xf8] sm:$0xf]
    %v412 = vld [vmem:[#allocation3 + $0xfc] sm:$0xff]
    %v413 = vld [vmem:[#allocation3 + $0x104] sm:$0xff]
    %v414 = vld [vmem:[#allocation3 + $0x10c] sm:$0xff]
    %v415 = vld [vmem:[#allocation3 + $0x114] sm:$0xf]
    %v416 = vld [vmem:[#allocation3 + $0x118] sm:$0xff]
    %v417 = vld [vmem:[#allocation3 + $0x120] sm:$0xff]
    %v418 = vld [vmem:[#allocation3 + $0x128] sm:$0xff]
    %v419 = vld [vmem:[#allocation3 + $0x130] sm:$0xf]
    %v420 = vld [vmem:[#allocation3 + $0x134] sm:$0xff]
    %v421 = vld [vmem:[#allocation3 + $0x13c] sm:$0xff]
    %v422 = vld [vmem:[#allocation3 + $0x144] sm:$0xff]
    %v423 = vld [vmem:[#allocation3 + $0x14c] sm:$0xf]
    %v424 = vld [vmem:[#allocation3 + $0x150] sm:$0xff]
    %v425 = vld [vmem:[#allocation3 + $0x158] sm:$0xff]
    %v426 = vld [vmem:[#allocation3 + $0x160] sm:$0xff]
    %v427 = vld [vmem:[#allocation3 + $0x168] sm:$0xf]
    %v428 = vld [vmem:[#allocation3 + $0x16c] sm:$0xff]
    %v429 = vld [vmem:[#allocation3 + $0x174] sm:$0xff]
    %v430 = vld [vmem:[#allocation3 + $0x17c] sm:$0xff]
    %v431 = vld [vmem:[#allocation3 + $0x184] sm:$0xf]
    %v432 = vld [vmem:[#allocation3 + $0x188] sm:$0xff]
    %v433 = vld [vmem:[#allocation3 + $0x190] sm:$0xff]
    %v434 = vld [vmem:[#allocation3 + $0x198] sm:$0xff]
    %v435 = vld [vmem:[#allocation3 + $0x1a0] sm:$0xf]
    %v436 = vld [vmem:[#allocation3 + $0x1a4] sm:$0xff]
    %v437 = vld [vmem:[#allocation3 + $0x1ac] sm:$0xff]
    %v438 = vld [vmem:[#allocation3 + $0x1b4] sm:$0xff]
    %v439 = vld [vmem:[#allocation3 + $0x1bc] sm:$0xf]
    %v440 = vld [vmem:[#allocation3 + $0x1c0] sm:$0xff]
    %v441 = vld [vmem:[#allocation3 + $0x1c8] sm:$0xff]
    %v442 = vld [vmem:[#allocation3 + $0x1d0] sm:$0xff]
    %v443 = vld [vmem:[#allocation3 + $0x1d8] sm:$0xf]
    %v444 = vld [vmem:[#allocation3 + $0x1dc] sm:$0xff]
    %v445 = vld [vmem:[#allocation3 + $0x1e4] sm:$0xff]
    %v446 = vld [vmem:[#allocation3 + $0x1ec] sm:$0xff]
    %v447 = vld [vmem:[#allocation3 + $0x1f4] sm:$0xf]
    %v448 = vld [vmem:[#allocation3 + $0x1f8] sm:$0xff]
    %v449 = vld [vmem:[#allocation3 + $0x200] sm:$0xff]
    %v450 = vld [vmem:[#allocation3 + $0x208] sm:$0xff]
    %v451 = vld [vmem:[#allocation3 + $0x210] sm:$0xf]
    %v452 = vld [vmem:[#allocation3 + $0x214] sm:$0xff]
    %v453 = vld [vmem:[#allocation3 + $0x21c] sm:$0xff]
    %v454 = vld [vmem:[#allocation3 + $0x224] sm:$0xff]
    %v455 = vld [vmem:[#allocation3 + $0x22c] sm:$0xf]
    %v456 = vld [vmem:[#allocation3 + $0x230] sm:$0xff]
    %v457 = vld [vmem:[#allocation3 + $0x238] sm:$0xff]
    %v458 = vld [vmem:[#allocation3 + $0x240] sm:$0xff]
    %v459 = vld [vmem:[#allocation3 + $0x248] sm:$0xf]
    %v460 = vld [vmem:[#allocation3 + $0x24c] sm:$0xff]
    %v461 = vld [vmem:[#allocation3 + $0x254] sm:$0xff]
    %v462 = vld [vmem:[#allocation3 + $0x25c] sm:$0xff]
    %v463 = vld [vmem:[#allocation3 + $0x264] sm:$0xf]
    %v464 = vld [vmem:[#allocation3 + $0x268] sm:$0xff]
    %v465 = vld [vmem:[#allocation3 + $0x270] sm:$0xff]
    %v466 = vld [vmem:[#allocation3 + $0x278] sm:$0xff]
    %v467 = vld [vmem:[#allocation3 + $0x280] sm:$0xf]
    %v468 = vld [vmem:[#allocation3 + $0x284] sm:$0xff]
    %v469 = vld [vmem:[#allocation3 + $0x28c] sm:$0xff]
    %v470 = vld [vmem:[#allocation3 + $0x294] sm:$0xff]
    %v471 = vld [vmem:[#allocation3 + $0x29c] sm:$0xf]
    %v472 = vld [vmem:[#allocation3 + $0x2a0] sm:$0xff]
    %v473 = vld [vmem:[#allocation3 + $0x2a8] sm:$0xff]
    %v474 = vld [vmem:[#allocation3 + $0x2b0] sm:$0xff]
    %v475 = vld [vmem:[#allocation3 + $0x2b8] sm:$0xf]
    %v476 = vld [vmem:[#allocation3 + $0x2bc] sm:$0xff]
    %v477 = vld [vmem:[#allocation3 + $0x2c4] sm:$0xff]
    %v478 = vld [vmem:[#allocation3 + $0x2cc] sm:$0xff]
    %v479 = vld [vmem:[#allocation3 + $0x2d4] sm:$0xf]
    %v480 = vld [vmem:[#allocation3 + $0x2d8] sm:$0xff]
    %v481 = vld [vmem:[#allocation3 + $0x2e0] sm:$0xff]
    %v482 = vld [vmem:[#allocation3 + $0x2e8] sm:$0xff]
    %v483 = vld [vmem:[#allocation3 + $0x2f0] sm:$0xf]
    %v484 = vld [vmem:[#allocation3 + $0x2f4] sm:$0xff]
    %v485 = vld [vmem:[#allocation3 + $0x2fc] sm:$0xff]
    %v486 = vld [vmem:[#allocation3 + $0x304] sm:$0xff]
    %v487 = vld [vmem:[#allocation3 + $0x30c] sm:$0xf]
    %v488 = vld [vmem:[#allocation3 + $0x310] sm:$0xff]
    %v489 = vld [vmem:[#allocation3 + $0x318] sm:$0xff]
    %v490 = vld [vmem:[#allocation3 + $0x320] sm:$0xff]
    %v491 = vld [vmem:[#allocation3 + $0x328] sm:$0xf]
    %v492 = vld [vmem:[#allocation3 + $0x32c] sm:$0xff]
    %v493 = vld [vmem:[#allocation3 + $0x334] sm:$0xff]
    %v494 = vld [vmem:[#allocation3 + $0x33c] sm:$0xff]
    %v495 = vld [vmem:[#allocation3 + $0x344] sm:$0xf]
    %v496 = vld [vmem:[#allocation3 + $0x348] sm:$0xff]
    %v497 = vld [vmem:[#allocation3 + $0x350] sm:$0xff]
    %v498 = vld [vmem:[#allocation3 + $0x358] sm:$0xff]
    %v499 = vld [vmem:[#allocation3 + $0x360] sm:$0xf]
    %v500 = vld [vmem:[#allocation3 + $0x364] sm:$0xff]
    %v501 = vld [vmem:[#allocation3 + $0x36c] sm:$0xff]
    %v502 = vld [vmem:[#allocation3 + $0x374] sm:$0xff]
    %v503 = vld [vmem:[#allocation3 + $0x37c] sm:$0xf]
    %v632 = vunpack.c.l.b16 %v376
    %v633 = vunpack.c.h.b16 %v376
    %v634 = vunpack.c.l.b16 %v377
    %v635 = vunpack.c.h.b16 %v377
    %v636 = vunpack.c.l.b16 %v378
    %v637 = vunpack.c.h.b16 %v378
    %v638 = vunpack.c.l.b16 %v379
    %v639 = vunpack.c.l.b16 %v380
    %v640 = vunpack.c.h.b16 %v380
    %v641 = vunpack.c.l.b16 %v381
    %v642 = vunpack.c.h.b16 %v381
    %v643 = vunpack.c.l.b16 %v382
    %v644 = vunpack.c.h.b16 %v382
    %v645 = vunpack.c.l.b16 %v383
    %v646 = vunpack.c.l.b16 %v384
    %v647 = vunpack.c.h.b16 %v384
    %v648 = vunpack.c.l.b16 %v385
    %v649 = vunpack.c.h.b16 %v385
    %v650 = vunpack.c.l.b16 %v386
    %v651 = vunpack.c.h.b16 %v386
    %v652 = vunpack.c.l.b16 %v387
    %v653 = vunpack.c.l.b16 %v388
    %v654 = vunpack.c.h.b16 %v388
    %v655 = vunpack.c.l.b16 %v389
    %v656 = vunpack.c.h.b16 %v389
    %v657 = vunpack.c.l.b16 %v390
    %v658 = vunpack.c.h.b16 %v390
    %v659 = vunpack.c.l.b16 %v391
    %v660 = vunpack.c.l.b16 %v392
    %v661 = vunpack.c.h.b16 %v392
    %v662 = vunpack.c.l.b16 %v393
    %v663 = vunpack.c.h.b16 %v393
    %v664 = vunpack.c.l.b16 %v394
    %v665 = vunpack.c.h.b16 %v394
    %v666 = vunpack.c.l.b16 %v395
    %v667 = vunpack.c.l.b16 %v396
    %v668 = vunpack.c.h.b16 %v396
    %v669 = vunpack.c.l.b16 %v397
    %v670 = vunpack.c.h.b16 %v397
    %v671 = vunpack.c.l.b16 %v398
    %v672 = vunpack.c.h.b16 %v398
    %v673 = vunpack.c.l.b16 %v399
    %v674 = vunpack.c.l.b16 %v400
    %v675 = vunpack.c.h.b16 %v400
    %v676 = vunpack.c.l.b16 %v401
    %v677 = vunpack.c.h.b16 %v401
    %v678 = vunpack.c.l.b16 %v402
    %v679 = vunpack.c.h.b16 %v402
    %v680 = vunpack.c.l.b16 %v403
    %v681 = vunpack.c.l.b16 %v404
    %v682 = vunpack.c.h.b16 %v404
    %v683 = vunpack.c.l.b16 %v405
    %v684 = vunpack.c.h.b16 %v405
    %v685 = vunpack.c.l.b16 %v406
    %v686 = vunpack.c.h.b16 %v406
    %v687 = vunpack.c.l.b16 %v407
    %v688 = vunpack.c.l.b16 %v408
    %v689 = vunpack.c.h.b16 %v408
    %v690 = vunpack.c.l.b16 %v409
    %v691 = vunpack.c.h.b16 %v409
    %v692 = vunpack.c.l.b16 %v410
    %v693 = vunpack.c.h.b16 %v410
    %v694 = vunpack.c.l.b16 %v411
    %v695 = vunpack.c.l.b16 %v412
    %v696 = vunpack.c.h.b16 %v412
    %v697 = vunpack.c.l.b16 %v413
    %v698 = vunpack.c.h.b16 %v413
    %v699 = vunpack.c.l.b16 %v414
    %v700 = vunpack.c.h.b16 %v414
    %v701 = vunpack.c.l.b16 %v415
    %v702 = vunpack.c.l.b16 %v416
    %v703 = vunpack.c.h.b16 %v416
    %v704 = vunpack.c.l.b16 %v417
    %v705 = vunpack.c.h.b16 %v417
    %v706 = vunpack.c.l.b16 %v418
    %v707 = vunpack.c.h.b16 %v418
    %v708 = vunpack.c.l.b16 %v419
    %v709 = vunpack.c.l.b16 %v420
    %v710 = vunpack.c.h.b16 %v420
    %v711 = vunpack.c.l.b16 %v421
    %v712 = vunpack.c.h.b16 %v421
    %v713 = vunpack.c.l.b16 %v422
    %v714 = vunpack.c.h.b16 %v422
    %v715 = vunpack.c.l.b16 %v423
    %v716 = vunpack.c.l.b16 %v424
    %v717 = vunpack.c.h.b16 %v424
    %v718 = vunpack.c.l.b16 %v425
    %v719 = vunpack.c.h.b16 %v425
    %v720 = vunpack.c.l.b16 %v426
    %v721 = vunpack.c.h.b16 %v426
    %v722 = vunpack.c.l.b16 %v427
    %v723 = vunpack.c.l.b16 %v428
    %v724 = vunpack.c.h.b16 %v428
    %v725 = vunpack.c.l.b16 %v429
    %v726 = vunpack.c.h.b16 %v429
    %v727 = vunpack.c.l.b16 %v430
    %v728 = vunpack.c.h.b16 %v430
    %v729 = vunpack.c.l.b16 %v431
    %v730 = vunpack.c.l.b16 %v432
    %v731 = vunpack.c.h.b16 %v432
    %v732 = vunpack.c.l.b16 %v433
    %v733 = vunpack.c.h.b16 %v433
    %v734 = vunpack.c.l.b16 %v434
    %v735 = vunpack.c.h.b16 %v434
    %v736 = vunpack.c.l.b16 %v435
    %v737 = vunpack.c.l.b16 %v436
    %v738 = vunpack.c.h.b16 %v436
    %v739 = vunpack.c.l.b16 %v437
    %v740 = vunpack.c.h.b16 %v437
    %v741 = vunpack.c.l.b16 %v438
    %v742 = vunpack.c.h.b16 %v438
    %v743 = vunpack.c.l.b16 %v439
    %v744 = vunpack.c.l.b16 %v440
    %v745 = vunpack.c.h.b16 %v440
    %v746 = vunpack.c.l.b16 %v441
    %v747 = vunpack.c.h.b16 %v441
    %v748 = vunpack.c.l.b16 %v442
    %v749 = vunpack.c.h.b16 %v442
    %v750 = vunpack.c.l.b16 %v443
    %v751 = vunpack.c.l.b16 %v444
    %v752 = vunpack.c.h.b16 %v444
    %v753 = vunpack.c.l.b16 %v445
    %v754 = vunpack.c.h.b16 %v445
    %v755 = vunpack.c.l.b16 %v446
    %v756 = vunpack.c.h.b16 %v446
    %v757 = vunpack.c.l.b16 %v447
    %v758 = vunpack.c.l.b16 %v448
    %v759 = vunpack.c.h.b16 %v448
    %v760 = vunpack.c.l.b16 %v449
    %v761 = vunpack.c.h.b16 %v449
    %v762 = vunpack.c.l.b16 %v450
    %v763 = vunpack.c.h.b16 %v450
    %v764 = vunpack.c.l.b16 %v451
    %v765 = vunpack.c.l.b16 %v452
    %v766 = vunpack.c.h.b16 %v452
    %v767 = vunpack.c.l.b16 %v453
    %v768 = vunpack.c.h.b16 %v453
    %v769 = vunpack.c.l.b16 %v454
    %v770 = vunpack.c.h.b16 %v454
    %v771 = vunpack.c.l.b16 %v455
    %v772 = vunpack.c.l.b16 %v456
    %v773 = vunpack.c.h.b16 %v456
    %v774 = vunpack.c.l.b16 %v457
    %v775 = vunpack.c.h.b16 %v457
    %v776 = vunpack.c.l.b16 %v458
    %v777 = vunpack.c.h.b16 %v458
    %v778 = vunpack.c.l.b16 %v459
    %v779 = vunpack.c.l.b16 %v460
    %v780 = vunpack.c.h.b16 %v460
    %v781 = vunpack.c.l.b16 %v461
    %v782 = vunpack.c.h.b16 %v461
    %v783 = vunpack.c.l.b16 %v462
    %v784 = vunpack.c.h.b16 %v462
    %v785 = vunpack.c.l.b16 %v463
    %v786 = vunpack.c.l.b16 %v464
    %v787 = vunpack.c.h.b16 %v464
    %v788 = vunpack.c.l.b16 %v465
    %v789 = vunpack.c.h.b16 %v465
    %v790 = vunpack.c.l.b16 %v466
    %v791 = vunpack.c.h.b16 %v466
    %v792 = vunpack.c.l.b16 %v467
    %v793 = vunpack.c.l.b16 %v468
    %v794 = vunpack.c.h.b16 %v468
    %v795 = vunpack.c.l.b16 %v469
    %v796 = vunpack.c.h.b16 %v469
    %v797 = vunpack.c.l.b16 %v470
    %v798 = vunpack.c.h.b16 %v470
    %v799 = vunpack.c.l.b16 %v471
    %v800 = vunpack.c.l.b16 %v472
    %v801 = vunpack.c.h.b16 %v472
    %v802 = vunpack.c.l.b16 %v473
    %v803 = vunpack.c.h.b16 %v473
    %v804 = vunpack.c.l.b16 %v474
    %v805 = vunpack.c.h.b16 %v474
    %v806 = vunpack.c.l.b16 %v475
    %v807 = vunpack.c.l.b16 %v476
    %v808 = vunpack.c.h.b16 %v476
    %v809 = vunpack.c.l.b16 %v477
    %v810 = vunpack.c.h.b16 %v477
    %v811 = vunpack.c.l.b16 %v478
    %v812 = vunpack.c.h.b16 %v478
    %v813 = vunpack.c.l.b16 %v479
    %v814 = vunpack.c.l.b16 %v480
    %v815 = vunpack.c.h.b16 %v480
    %v816 = vunpack.c.l.b16 %v481
    %v817 = vunpack.c.h.b16 %v481
    %v818 = vunpack.c.l.b16 %v482
    %v819 = vunpack.c.h.b16 %v482
    %v820 = vunpack.c.l.b16 %v483
    %v821 = vunpack.c.l.b16 %v484
    %v822 = vunpack.c.h.b16 %v484
    %v823 = vunpack.c.l.b16 %v485
    %v824 = vunpack.c.h.b16 %v485
    %v825 = vunpack.c.l.b16 %v486
    %v826 = vunpack.c.h.b16 %v486
    %v827 = vunpack.c.l.b16 %v487
    %v828 = vunpack.c.l.b16 %v488
    %v829 = vunpack.c.h.b16 %v488
    %v830 = vunpack.c.l.b16 %v489
    %v831 = vunpack.c.h.b16 %v489
    %v832 = vunpack.c.l.b16 %v490
    %v833 = vunpack.c.h.b16 %v490
    %v834 = vunpack.c.l.b16 %v491
    %v835 = vunpack.c.l.b16 %v492
    %v836 = vunpack.c.h.b16 %v492
    %v837 = vunpack.c.l.b16 %v493
    %v838 = vunpack.c.h.b16 %v493
    %v839 = vunpack.c.l.b16 %v494
    %v840 = vunpack.c.h.b16 %v494
    %v841 = vunpack.c.l.b16 %v495
    %v842 = vunpack.c.l.b16 %v496
    %v843 = vunpack.c.h.b16 %v496
    %v844 = vunpack.c.l.b16 %v497
    %v845 = vunpack.c.h.b16 %v497
    %v846 = vunpack.c.l.b16 %v498
    %v847 = vunpack.c.h.b16 %v498
    %v848 = vunpack.c.l.b16 %v499
    %v849 = vunpack.c.l.b16 %v500
    %v850 = vunpack.c.h.b16 %v500
    %v851 = vunpack.c.l.b16 %v501
    %v852 = vunpack.c.h.b16 %v501
    %v853 = vunpack.c.l.b16 %v502
    %v854 = vunpack.c.h.b16 %v502
    %v855 = vunpack.c.l.b16 %v503
    %v856 = vpack.c.b16 %v639, %v632
    %v857 = vpack.c.b16 %v640, %v633
    %v858 = vpack.c.b16 %v641, %v634
    %v859 = vpack.c.b16 %v642, %v635
    %v860 = vpack.c.b16 %v643, %v636
    %v861 = vpack.c.b16 %v644, %v637
    %v862 = vpack.c.b16 %v645, %v638
    %v863 = vpack.c.b16 %v653, %v646
    %v864 = vpack.c.b16 %v654, %v647
    %v865 = vpack.c.b16 %v655, %v648
    %v866 = vpack.c.b16 %v656, %v649
    %v867 = vpack.c.b16 %v657, %v650
    %v868 = vpack.c.b16 %v658, %v651
    %v869 = vpack.c.b16 %v659, %v652
    %v870 = vpack.c.b16 %v667, %v660
    %v871 = vpack.c.b16 %v668, %v661
    %v872 = vpack.c.b16 %v669, %v662
    %v873 = vpack.c.b16 %v670, %v663
    %v874 = vpack.c.b16 %v671, %v664
    %v875 = vpack.c.b16 %v672, %v665
    %v876 = vpack.c.b16 %v673, %v666
    %v877 = vpack.c.b16 %v681, %v674
    %v878 = vpack.c.b16 %v682, %v675
    %v879 = vpack.c.b16 %v683, %v676
    %v880 = vpack.c.b16 %v684, %v677
    %v881 = vpack.c.b16 %v685, %v678
    %v882 = vpack.c.b16 %v686, %v679
    %v883 = vpack.c.b16 %v687, %v680
    %v884 = vpack.c.b16 %v695, %v688
    %v885 = vpack.c.b16 %v696, %v689
    %v886 = vpack.c.b16 %v697, %v690
    %v887 = vpack.c.b16 %v698, %v691
    %v888 = vpack.c.b16 %v699, %v692
    %v889 = vpack.c.b16 %v700, %v693
    %v890 = vpack.c.b16 %v701, %v694
    %v891 = vpack.c.b16 %v709, %v702
    %v892 = vpack.c.b16 %v710, %v703
    %v893 = vpack.c.b16 %v711, %v704
    %v894 = vpack.c.b16 %v712, %v705
    %v895 = vpack.c.b16 %v713, %v706
    %v896 = vpack.c.b16 %v714, %v707
    %v897 = vpack.c.b16 %v715, %v708
    %v898 = vpack.c.b16 %v723, %v716
    %v899 = vpack.c.b16 %v724, %v717
    %v900 = vpack.c.b16 %v725, %v718
    %v901 = vpack.c.b16 %v726, %v719
    %v902 = vpack.c.b16 %v727, %v720
    %v903 = vpack.c.b16 %v728, %v721
    %v904 = vpack.c.b16 %v729, %v722
    %v905 = vpack.c.b16 %v737, %v730
    %v906 = vpack.c.b16 %v738, %v731
    %v907 = vpack.c.b16 %v739, %v732
    %v908 = vpack.c.b16 %v740, %v733
    %v909 = vpack.c.b16 %v741, %v734
    %v910 = vpack.c.b16 %v742, %v735
    %v911 = vpack.c.b16 %v743, %v736
    %v912 = vpack.c.b16 %v751, %v744
    %v913 = vpack.c.b16 %v752, %v745
    %v914 = vpack.c.b16 %v753, %v746
    %v915 = vpack.c.b16 %v754, %v747
    %v916 = vpack.c.b16 %v755, %v748
    %v917 = vpack.c.b16 %v756, %v749
    %v918 = vpack.c.b16 %v757, %v750
    %v919 = vpack.c.b16 %v765, %v758
    %v920 = vpack.c.b16 %v766, %v759
    %v921 = vpack.c.b16 %v767, %v760
    %v922 = vpack.c.b16 %v768, %v761
    %v923 = vpack.c.b16 %v769, %v762
    %v924 = vpack.c.b16 %v770, %v763
    %v925 = vpack.c.b16 %v771, %v764
    %v926 = vpack.c.b16 %v779, %v772
    %v927 = vpack.c.b16 %v780, %v773
    %v928 = vpack.c.b16 %v781, %v774
    %v929 = vpack.c.b16 %v782, %v775
    %v930 = vpack.c.b16 %v783, %v776
    %v931 = vpack.c.b16 %v784, %v777
    %v932 = vpack.c.b16 %v785, %v778
    %v933 = vpack.c.b16 %v793, %v786
    %v934 = vpack.c.b16 %v794, %v787
    %v935 = vpack.c.b16 %v795, %v788
    %v936 = vpack.c.b16 %v796, %v789
    %v937 = vpack.c.b16 %v797, %v790
    %v938 = vpack.c.b16 %v798, %v791
    %v939 = vpack.c.b16 %v799, %v792
    %v940 = vpack.c.b16 %v807, %v800
    %v941 = vpack.c.b16 %v808, %v801
    %v942 = vpack.c.b16 %v809, %v802
    %v943 = vpack.c.b16 %v810, %v803
    %v944 = vpack.c.b16 %v811, %v804
    %v945 = vpack.c.b16 %v812, %v805
    %v946 = vpack.c.b16 %v813, %v806
    %v947 = vpack.c.b16 %v821, %v814
    %v948 = vpack.c.b16 %v822, %v815
    %v949 = vpack.c.b16 %v823, %v816
    %v950 = vpack.c.b16 %v824, %v817
    %v951 = vpack.c.b16 %v825, %v818
    %v952 = vpack.c.b16 %v826, %v819
    %v953 = vpack.c.b16 %v827, %v820
    %v954 = vpack.c.b16 %v835, %v828
    %v955 = vpack.c.b16 %v836, %v829
    %v956 = vpack.c.b16 %v837, %v830
    %v957 = vpack.c.b16 %v838, %v831
    %v958 = vpack.c.b16 %v839, %v832
    %v959 = vpack.c.b16 %v840, %v833
    %v960 = vpack.c.b16 %v841, %v834
    %v961 = vpack.c.b16 %v849, %v842
    %v962 = vpack.c.b16 %v850, %v843
    %v963 = vpack.c.b16 %v851, %v844
    %v964 = vpack.c.b16 %v852, %v845
    %v965 = vpack.c.b16 %v853, %v846
    %v966 = vpack.c.b16 %v854, %v847
    %v967 = vpack.c.b16 %v855, %v848
    %1080 = vmatprep.subr.bf16.mxu0 %v857
    %1081 = vmatpush1.bf16.msra.mxu0 %v856
    %1082 = vmatprep.subr.bf16.mxu0 %v864
    %1083 = vmatpush1.bf16.msra.mxu0 %v863
    %1084 = vmatprep.subr.bf16.mxu0 %v871
    %1085 = vmatpush1.bf16.msra.mxu0 %v870
    %1086 = vmatprep.subr.bf16.mxu0 %v878
    %1087 = vmatpush1.bf16.msra.mxu0 %v877
    %1088 = vmatprep.subr.bf16.mxu0 %v885
    %1089 = vmatpush1.bf16.msra.mxu0 %v884
    %1090 = vmatprep.subr.bf16.mxu0 %v892
    %1091 = vmatpush1.bf16.msra.mxu0 %v891
    %1092 = vmatprep.subr.bf16.mxu0 %v899
    %1093 = vmatpush1.bf16.msra.mxu0 %v898
    %1094 = vmatprep.subr.bf16.mxu0 %v906
    %1095 = vmatpush1.bf16.msra.mxu0 %v905
    %1096 = vmatprep.subr.bf16.mxu0 %v913
    %1097 = vmatpush1.bf16.msra.mxu0 %v912
    %1098 = vmatprep.subr.bf16.mxu0 %v920
    %1099 = vmatpush1.bf16.msra.mxu0 %v919
    %1100 = vmatprep.subr.bf16.mxu0 %v927
    %1101 = vmatpush1.bf16.msra.mxu0 %v926
    %1102 = vmatprep.subr.bf16.mxu0 %v934
    %1103 = vmatpush1.bf16.msra.mxu0 %v933
    %1104 = vmatprep.subr.bf16.mxu0 %v941
    %1105 = vmatpush1.bf16.msra.mxu0 %v940
    %1106 = vmatprep.subr.bf16.mxu0 %v948
    %1107 = vmatpush1.bf16.msra.mxu0 %v947
    %1108 = vmatprep.subr.bf16.mxu0 %v955
    %1109 = vmatpush1.bf16.msra.mxu0 %v954
    %1110 = vmatprep.subr.bf16.mxu0 %v962
    %1111 = vmatpush1.bf16.msra.mxu0 %v961
    %1112 = vmatprep.mubr.bf16.mxu0 %v375
    %1113 = vmatmul.mubr.bf16.gmra.mrb[0].mxu0 %v374
    %v1114 = vpop.f32.mrb[0].mxu0
    %v1115 = vadd.f32 0.0, %v1114
    %v1116 = vpop.f32.mrb[0].mxu0
    %v1117 = vadd.f32 0.0, %v1116
    %v1118 = vpop.f32.mrb[0].mxu0
    %v1119 = vpop.f32.mrb[0].mxu0
    %1120 = vdwg.mxu0
    %1121 = vmatprep.subr.bf16.mxu0 %v859
    %1122 = vmatpush1.bf16.msra.mxu0 %v858
    %1123 = vmatprep.subr.bf16.mxu0 %v866
    %1124 = vmatpush1.bf16.msra.mxu0 %v865
    %1125 = vmatprep.subr.bf16.mxu0 %v873
    %1126 = vmatpush1.bf16.msra.mxu0 %v872
    %1127 = vmatprep.subr.bf16.mxu0 %v880
    %1128 = vmatpush1.bf16.msra.mxu0 %v879
    %1129 = vmatprep.subr.bf16.mxu0 %v887
    %1130 = vmatpush1.bf16.msra.mxu0 %v886
    %1131 = vmatprep.subr.bf16.mxu0 %v894
    %1132 = vmatpush1.bf16.msra.mxu0 %v893
    %1133 = vmatprep.subr.bf16.mxu0 %v901
    %1134 = vmatpush1.bf16.msra.mxu0 %v900
    %1135 = vmatprep.subr.bf16.mxu0 %v908
    %1136 = vmatpush1.bf16.msra.mxu0 %v907
    %1137 = vmatprep.subr.bf16.mxu0 %v915
    %1138 = vmatpush1.bf16.msra.mxu0 %v914
    %1139 = vmatprep.subr.bf16.mxu0 %v922
    %1140 = vmatpush1.bf16.msra.mxu0 %v921
    %1141 = vmatprep.subr.bf16.mxu0 %v929
    %1142 = vmatpush1.bf16.msra.mxu0 %v928
    %1143 = vmatprep.subr.bf16.mxu0 %v936
    %1144 = vmatpush1.bf16.msra.mxu0 %v935
    %1145 = vmatprep.subr.bf16.mxu0 %v943
    %1146 = vmatpush1.bf16.msra.mxu0 %v942
    %1147 = vmatprep.subr.bf16.mxu0 %v950
    %1148 = vmatpush1.bf16.msra.mxu0 %v949
    %1149 = vmatprep.subr.bf16.mxu0 %v957
    %1150 = vmatpush1.bf16.msra.mxu0 %v956
    %1151 = vmatprep.subr.bf16.mxu0 %v964
    %1152 = vmatpush1.bf16.msra.mxu0 %v963
    %1153 = vmatprep.mubr.bf16.mxu0 %v375
    %1154 = vmatmul.mubr.bf16.gmra.mrb[0].mxu0 %v374
    %v1155 = vpop.f32.mrb[0].mxu0
    %v1156 = vadd.f32 0.0, %v1155
    %v1157 = vpop.f32.mrb[0].mxu0
    %v1158 = vadd.f32 0.0, %v1157
    %v1159 = vpop.f32.mrb[0].mxu0
    %v1160 = vpop.f32.mrb[0].mxu0
    %1161 = vdwg.mxu0
    %1162 = vmatprep.subr.bf16.mxu0 %v861
    %1163 = vmatpush1.bf16.msra.mxu0 %v860
    %1164 = vmatprep.subr.bf16.mxu0 %v868
    %1165 = vmatpush1.bf16.msra.mxu0 %v867
    %1166 = vmatprep.subr.bf16.mxu0 %v875
    %1167 = vmatpush1.bf16.msra.mxu0 %v874
    %1168 = vmatprep.subr.bf16.mxu0 %v882
    %1169 = vmatpush1.bf16.msra.mxu0 %v881
    %1170 = vmatprep.subr.bf16.mxu0 %v889
    %1171 = vmatpush1.bf16.msra.mxu0 %v888
    %1172 = vmatprep.subr.bf16.mxu0 %v896
    %1173 = vmatpush1.bf16.msra.mxu0 %v895
    %1174 = vmatprep.subr.bf16.mxu0 %v903
    %1175 = vmatpush1.bf16.msra.mxu0 %v902
    %1176 = vmatprep.subr.bf16.mxu0 %v910
    %1177 = vmatpush1.bf16.msra.mxu0 %v909
    %1178 = vmatprep.subr.bf16.mxu0 %v917
    %1179 = vmatpush1.bf16.msra.mxu0 %v916
    %1180 = vmatprep.subr.bf16.mxu0 %v924
    %1181 = vmatpush1.bf16.msra.mxu0 %v923
    %1182 = vmatprep.subr.bf16.mxu0 %v931
    %1183 = vmatpush1.bf16.msra.mxu0 %v930
    %1184 = vmatprep.subr.bf16.mxu0 %v938
    %1185 = vmatpush1.bf16.msra.mxu0 %v937
    %1186 = vmatprep.subr.bf16.mxu0 %v945
    %1187 = vmatpush1.bf16.msra.mxu0 %v944
    %1188 = vmatprep.subr.bf16.mxu0 %v952
    %1189 = vmatpush1.bf16.msra.mxu0 %v951
    %1190 = vmatprep.subr.bf16.mxu0 %v959
    %1191 = vmatpush1.bf16.msra.mxu0 %v958
    %1192 = vmatprep.subr.bf16.mxu0 %v966
    %1193 = vmatpush1.bf16.msra.mxu0 %v965
    %1194 = vmatprep.mubr.bf16.mxu0 %v375
    %1195 = vmatmul.mubr.bf16.gmra.mrb[0].mxu0 %v374
    %v1196 = vpop.f32.mrb[0].mxu0
    %v1197 = vadd.f32 0.0, %v1196
    %v1198 = vpop.f32.mrb[0].mxu0
    %v1199 = vadd.f32 0.0, %v1198
    %v1200 = vpop.f32.mrb[0].mxu0
    %v1201 = vpop.f32.mrb[0].mxu0
    %1202 = vdwg.mxu0
    %1203 = vmatprep.subr.bf16.mxu0 0
    %1204 = vmatpush1.bf16.msra.mxu0 %v862
    %1205 = vmatprep.subr.bf16.mxu0 0
    %1206 = vmatpush1.bf16.msra.mxu0 %v869
    %1207 = vmatprep.subr.bf16.mxu0 0
    %1208 = vmatpush1.bf16.msra.mxu0 %v876
    %1209 = vmatprep.subr.bf16.mxu0 0
    %1210 = vmatpush1.bf16.msra.mxu0 %v883
    %1211 = vmatprep.subr.bf16.mxu0 0
    %1212 = vmatpush1.bf16.msra.mxu0 %v890
    %1213 = vmatprep.subr.bf16.mxu0 0
    %1214 = vmatpush1.bf16.msra.mxu0 %v897
    %1215 = vmatprep.subr.bf16.mxu0 0
    %1216 = vmatpush1.bf16.msra.mxu0 %v904
    %1217 = vmatprep.subr.bf16.mxu0 0
    %1218 = vmatpush1.bf16.msra.mxu0 %v911
    %1219 = vmatprep.subr.bf16.mxu0 0
    %1220 = vmatpush1.bf16.msra.mxu0 %v918
    %1221 = vmatprep.subr.bf16.mxu0 0
    %1222 = vmatpush1.bf16.msra.mxu0 %v925
    %1223 = vmatprep.subr.bf16.mxu0 0
    %1224 = vmatpush1.bf16.msra.mxu0 %v932
    %1225 = vmatprep.subr.bf16.mxu0 0
    %1226 = vmatpush1.bf16.msra.mxu0 %v939
    %1227 = vmatprep.subr.bf16.mxu0 0
    %1228 = vmatpush1.bf16.msra.mxu0 %v946
    %1229 = vmatprep.subr.bf16.mxu0 0
    %1230 = vmatpush1.bf16.msra.mxu0 %v953
    %1231 = vmatprep.subr.bf16.mxu0 0
    %1232 = vmatpush1.bf16.msra.mxu0 %v960
    %1233 = vmatprep.subr.bf16.mxu0 0
    %1234 = vmatpush1.bf16.msra.mxu0 %v967
    %1235 = vmatprep.mubr.bf16.mxu0 %v375
    %1236 = vmatmul.mubr.bf16.gmra.mrb[0].mxu0 %v374
    %v1237 = vpop.f32.mrb[0].mxu0
    %v1238 = vadd.f32 0.0, %v1237
    %v1239 = vpop.f32.mrb[0].mxu0
    %v1240 = vpop.f32.mrb[0].mxu0
    %v1241 = vpop.f32.mrb[0].mxu0
    %1242 = vdwg.mxu0
    %v1244 = vlaneseq
    %v1245 = vshrl.u32 %v1244, 7
    %v1246 = vsub.s32 0, %v1245
    %v1247 = vrot.slane %v345, %v1246
    %v1248 = vlaneseq
    %v1249 = vshrl.u32 %v1248, 7
    %v1250 = vsub.s32 1, %v1249
    %v1251 = vrot.slane %v345, %v1250
    %v1254 = vadd.f32 %v1158, %v1247
    %v1255 = vadd.f32 %v1197, %v1251
    %v1257 = vlaneseq
    %v1258 = vshrl.u32 %v1257, 7
    %v1259 = vsub.s32 0, %v1258
    %v1260 = vrot.slane %v346, %v1259
    %v1262 = vadd.f32 %v1199, %v1260
    %v1263 = vxor.u32 %v1254, 2147483648
    %v1264 = vmul.f32 %v1263, 1.442695
    %v1265 = vpow.pop %v1264
    %v1266 = vadd.f32 %v1265, 1.0
    %v1267 = vrcp.pop %v1266
    %v1268 = vmul.f32 1.0, %v1267
    %v1269 = vxor.u32 %v1255, 2147483648
    %v1270 = vmul.f32 %v1269, 1.442695
    %v1271 = vpow.pop %v1270
    %v1272 = vadd.f32 %v1271, 1.0
    %v1273 = vrcp.pop %v1272
    %v1274 = vmul.f32 1.0, %v1273
    %v1276 = vlaneseq
    %v1277 = vshrl.u32 %v1276, 7
    %v1278 = vsub.s32 0, %v1277
    %v1279 = vrot.slane %v347, %v1278
    %v1281 = vadd.f32 %v1238, %v1279
    %v1282 = vmul.f32 %v1268, %v1281
    %v1283 = vadd.f32 %v1262, %v1282
    %v1284 = vtanh.pop %v1283
    %v1285 = vsub.f32 0.0, %v1284
    %v1286 = vmul.f32 %v1274, %v1285
    %v1287 = vadd.f32 %v1284, %v1286
    %v1288 = vld [vmem:[#allocation2 + $0x18] sm:$0xff]
    %v1289 = vld [vmem:[#allocation2 + $0x20] sm:$0xff]
    %v1290 = vld [vmem:[#allocation2 + $0x28] sm:$0xff]
    %v1291 = vadd.f32 %v1288, %v1115
    %v1292 = vxor.u32 %v1291, 2147483648
    %v1293 = vmul.f32 %v1292, 1.442695
    %v1294 = vpow.pop %v1293
    %v1295 = vadd.f32 %v1294, 1.0
    %v1296 = vrcp.pop %v1295
    %v1297 = vmul.f32 1.0, %v1296
    %v1298 = vadd.f32 %v1289, %v1117
    %v1299 = vxor.u32 %v1298, 2147483648
    %v1300 = vmul.f32 %v1299, 1.442695
    %v1301 = vpow.pop %v1300
    %v1302 = vadd.f32 %v1301, 1.0
    %v1303 = vrcp.pop %v1302
    %v1304 = vmul.f32 1.0, %v1303
    %v1305 = vadd.f32 %v1156, %v367
    %v1306 = vmul.f32 %v1297, %v1305
    %v1307 = vadd.f32 %v1290, %v1306
    %v1308 = vtanh.pop %v1307
    %v1309 = vsub.f32 %v373, %v1308
    %v1310 = vmul.f32 %v1304, %v1309
    %v1311 = vadd.f32 %v1308, %v1310
    %v1312 = vpack.c.bf16 %v1311, %v1311
    %v1313 = vpack.c.bf16 %v1287, %v1287
    %1314 = vmatprep.subr.bf16.mxu0 %v857
    %1315 = vmatpush1.bf16.msra.mxu0 %v856
    %1316 = vmatprep.subr.bf16.mxu0 %v864
    %1317 = vmatpush1.bf16.msra.mxu0 %v863
    %1318 = vmatprep.subr.bf16.mxu0 %v871
    %1319 = vmatpush1.bf16.msra.mxu0 %v870
    %1320 = vmatprep.subr.bf16.mxu0 %v878
    %1321 = vmatpush1.bf16.msra.mxu0 %v877
    %1322 = vmatprep.subr.bf16.mxu0 %v885
    %1323 = vmatpush1.bf16.msra.mxu0 %v884
    %1324 = vmatprep.subr.bf16.mxu0 %v892
    %1325 = vmatpush1.bf16.msra.mxu0 %v891
    %1326 = vmatprep.subr.bf16.mxu0 %v899
    %1327 = vmatpush1.bf16.msra.mxu0 %v898
    %1328 = vmatprep.subr.bf16.mxu0 %v906
    %1329 = vmatpush1.bf16.msra.mxu0 %v905
    %1330 = vmatprep.subr.bf16.mxu0 %v913
    %1331 = vmatpush1.bf16.msra.mxu0 %v912
    %1332 = vmatprep.subr.bf16.mxu0 %v920
    %1333 = vmatpush1.bf16.msra.mxu0 %v919
    %1334 = vmatprep.subr.bf16.mxu0 %v927
    %1335 = vmatpush1.bf16.msra.mxu0 %v926
    %1336 = vmatprep.subr.bf16.mxu0 %v934
    %1337 = vmatpush1.bf16.msra.mxu0 %v933
    %1338 = vmatprep.subr.bf16.mxu0 %v941
    %1339 = vmatpush1.bf16.msra.mxu0 %v940
    %1340 = vmatprep.subr.bf16.mxu0 %v948
    %1341 = vmatpush1.bf16.msra.mxu0 %v947
    %1342 = vmatprep.subr.bf16.mxu0 %v955
    %1343 = vmatpush1.bf16.msra.mxu0 %v954
    %1344 = vmatprep.subr.bf16.mxu0 %v962
    %1345 = vmatpush1.bf16.msra.mxu0 %v961
    %1346 = vmatprep.mubr.bf16.mxu0 %v1313
    %1347 = vmatmul.mubr.bf16.gmra.mrb[0].mxu0 %v1312
    %v1348 = vpop.f32.mrb[0].mxu0
    %v1349 = vadd.f32 0.0, %v1348
    %v1350 = vpop.f32.mrb[0].mxu0
    %v1351 = vadd.f32 0.0, %v1350
    %v1352 = vpop.f32.mrb[0].mxu0
    %v1353 = vpop.f32.mrb[0].mxu0
    %1354 = vdwg.mxu0
    %1355 = vmatprep.subr.bf16.mxu0 %v859
    %1356 = vmatpush1.bf16.msra.mxu0 %v858
    %1357 = vmatprep.subr.bf16.mxu0 %v866
    %1358 = vmatpush1.bf16.msra.mxu0 %v865
    %1359 = vmatprep.subr.bf16.mxu0 %v873
    %1360 = vmatpush1.bf16.msra.mxu0 %v872
    %1361 = vmatprep.subr.bf16.mxu0 %v880
    %1362 = vmatpush1.bf16.msra.mxu0 %v879
    %1363 = vmatprep.subr.bf16.mxu0 %v887
    %1364 = vmatpush1.bf16.msra.mxu0 %v886
    %1365 = vmatprep.subr.bf16.mxu0 %v894
    %1366 = vmatpush1.bf16.msra.mxu0 %v893
    %1367 = vmatprep.subr.bf16.mxu0 %v901
    %1368 = vmatpush1.bf16.msra.mxu0 %v900
    %1369 = vmatprep.subr.bf16.mxu0 %v908
    %1370 = vmatpush1.bf16.msra.mxu0 %v907
    %1371 = vmatprep.subr.bf16.mxu0 %v915
    %1372 = vmatpush1.bf16.msra.mxu0 %v914
    %1373 = vmatprep.subr.bf16.mxu0 %v922
    %1374 = vmatpush1.bf16.msra.mxu0 %v921
    %1375 = vmatprep.subr.bf16.mxu0 %v929
    %1376 = vmatpush1.bf16.msra.mxu0 %v928
    %1377 = vmatprep.subr.bf16.mxu0 %v936
    %1378 = vmatpush1.bf16.msra.mxu0 %v935
    %1379 = vmatprep.subr.bf16.mxu0 %v943
    %1380 = vmatpush1.bf16.msra.mxu0 %v942
    %1381 = vmatprep.subr.bf16.mxu0 %v950
    %1382 = vmatpush1.bf16.msra.mxu0 %v949
    %1383 = vmatprep.subr.bf16.mxu0 %v957
    %1384 = vmatpush1.bf16.msra.mxu0 %v956
    %1385 = vmatprep.subr.bf16.mxu0 %v964
    %1386 = vmatpush1.bf16.msra.mxu0 %v963
    %1387 = vmatprep.mubr.bf16.mxu0 %v1313
    %1388 = vmatmul.mubr.bf16.gmra.mrb[0].mxu0 %v1312
    %v1389 = vpop.f32.mrb[0].mxu0
    %v1390 = vadd.f32 0.0, %v1389
    %v1391 = vpop.f32.mrb[0].mxu0
    %v1392 = vadd.f32 0.0, %v1391
    %v1393 = vpop.f32.mrb[0].mxu0
    %v1394 = vpop.f32.mrb[0].mxu0
    %1395 = vdwg.mxu0
    %1396 = vmatprep.subr.bf16.mxu0 %v861
    %1397 = vmatpush1.bf16.msra.mxu0 %v860
    %1398 = vmatprep.subr.bf16.mxu0 %v868
    %1399 = vmatpush1.bf16.msra.mxu0 %v867
    %1400 = vmatprep.subr.bf16.mxu0 %v875
    %1401 = vmatpush1.bf16.msra.mxu0 %v874
    %1402 = vmatprep.subr.bf16.mxu0 %v882
    %1403 = vmatpush1.bf16.msra.mxu0 %v881
    %1404 = vmatprep.subr.bf16.mxu0 %v889
    %1405 = vmatpush1.bf16.msra.mxu0 %v888
    %1406 = vmatprep.subr.bf16.mxu0 %v896
    %1407 = vmatpush1.bf16.msra.mxu0 %v895
    %1408 = vmatprep.subr.bf16.mxu0 %v903
    %1409 = vmatpush1.bf16.msra.mxu0 %v902
    %1410 = vmatprep.subr.bf16.mxu0 %v910
    %1411 = vmatpush1.bf16.msra.mxu0 %v909
    %1412 = vmatprep.subr.bf16.mxu0 %v917
    %1413 = vmatpush1.bf16.msra.mxu0 %v916
    %1414 = vmatprep.subr.bf16.mxu0 %v924
    %1415 = vmatpush1.bf16.msra.mxu0 %v923
    %1416 = vmatprep.subr.bf16.mxu0 %v931
    %1417 = vmatpush1.bf16.msra.mxu0 %v930
    %1418 = vmatprep.subr.bf16.mxu0 %v938
    %1419 = vmatpush1.bf16.msra.mxu0 %v937
    %1420 = vmatprep.subr.bf16.mxu0 %v945
    %1421 = vmatpush1.bf16.msra.mxu0 %v944
    %1422 = vmatprep.subr.bf16.mxu0 %v952
    %1423 = vmatpush1.bf16.msra.mxu0 %v951
    %1424 = vmatprep.subr.bf16.mxu0 %v959
    %1425 = vmatpush1.bf16.msra.mxu0 %v958
    %1426 = vmatprep.subr.bf16.mxu0 %v966
    %1427 = vmatpush1.bf16.msra.mxu0 %v965
    %1428 = vmatprep.mubr.bf16.mxu0 %v1313
    %1429 = vmatmul.mubr.bf16.gmra.mrb[0].mxu0 %v1312
    %v1430 = vpop.f32.mrb[0].mxu0
    %v1431 = vadd.f32 0.0, %v1430
    %v1432 = vpop.f32.mrb[0].mxu0
    %v1433 = vadd.f32 0.0, %v1432
    %v1434 = vpop.f32.mrb[0].mxu0
    %v1435 = vpop.f32.mrb[0].mxu0
    %1436 = vdwg.mxu0
    %1437 = vmatprep.subr.bf16.mxu0 0
    %1438 = vmatpush1.bf16.msra.mxu0 %v862
    %1439 = vmatprep.subr.bf16.mxu0 0
    %1440 = vmatpush1.bf16.msra.mxu0 %v869
    %1441 = vmatprep.subr.bf16.mxu0 0
    %1442 = vmatpush1.bf16.msra.mxu0 %v876
    %1443 = vmatprep.subr.bf16.mxu0 0
    %1444 = vmatpush1.bf16.msra.mxu0 %v883
    %1445 = vmatprep.subr.bf16.mxu0 0
    %1446 = vmatpush1.bf16.msra.mxu0 %v890
    %1447 = vmatprep.subr.bf16.mxu0 0
    %1448 = vmatpush1.bf16.msra.mxu0 %v897
    %1449 = vmatprep.subr.bf16.mxu0 0
    %1450 = vmatpush1.bf16.msra.mxu0 %v904
    %1451 = vmatprep.subr.bf16.mxu0 0
    %1452 = vmatpush1.bf16.msra.mxu0 %v911
    %1453 = vmatprep.subr.bf16.mxu0 0
    %1454 = vmatpush1.bf16.msra.mxu0 %v918
    %1455 = vmatprep.subr.bf16.mxu0 0
    %1456 = vmatpush1.bf16.msra.mxu0 %v925
    %1457 = vmatprep.subr.bf16.mxu0 0
    %1458 = vmatpush1.bf16.msra.mxu0 %v932
    %1459 = vmatprep.subr.bf16.mxu0 0
    %1460 = vmatpush1.bf16.msra.mxu0 %v939
    %1461 = vmatprep.subr.bf16.mxu0 0
    %1462 = vmatpush1.bf16.msra.mxu0 %v946
    %1463 = vmatprep.subr.bf16.mxu0 0
    %1464 = vmatpush1.bf16.msra.mxu0 %v953
    %1465 = vmatprep.subr.bf16.mxu0 0
    %1466 = vmatpush1.bf16.msra.mxu0 %v960
    %1467 = vmatprep.subr.bf16.mxu0 0
    %1468 = vmatpush1.bf16.msra.mxu0 %v967
    %1469 = vmatprep.mubr.bf16.mxu0 %v1313
    %1470 = vmatmul.mubr.bf16.gmra.mrb[0].mxu0 %v1312
    %v1471 = vpop.f32.mrb[0].mxu0
    %v1472 = vadd.f32 0.0, %v1471
    %v1473 = vpop.f32.mrb[0].mxu0
    %v1474 = vpop.f32.mrb[0].mxu0
    %v1475 = vpop.f32.mrb[0].mxu0
    %1476 = vdwg.mxu0
    %v1477 = vadd.f32 %v1392, %v1247
    %v1478 = vadd.f32 %v1431, %v1251
    %v1479 = vadd.f32 %v1433, %v1260
    %v1480 = vxor.u32 %v1477, 2147483648
    %v1481 = vmul.f32 %v1480, 1.442695
    %v1482 = vpow.pop %v1481
    %v1483 = vadd.f32 %v1482, 1.0
    %v1484 = vrcp.pop %v1483
    %v1485 = vmul.f32 1.0, %v1484
    %v1486 = vxor.u32 %v1478, 2147483648
    %v1487 = vmul.f32 %v1486, 1.442695
    %v1488 = vpow.pop %v1487
    %v1489 = vadd.f32 %v1488, 1.0
    %v1490 = vrcp.pop %v1489
    %v1491 = vmul.f32 1.0, %v1490
    %v1492 = vadd.f32 %v1472, %v1279
    %v1493 = vmul.f32 %v1485, %v1492
    %v1494 = vadd.f32 %v1479, %v1493
    %v1495 = vtanh.pop %v1494
    %v1496 = vsub.f32 %v1287, %v1495
    %v1497 = vmul.f32 %v1491, %v1496
    %v1498 = vadd.f32 %v1495, %v1497
    %v1499 = vld [vmem:[#allocation2 + $0x30] sm:$0xff]
    %v1500 = vld [vmem:[#allocation2 + $0x38] sm:$0xff]
    %v1501 = vld [vmem:[#allocation2 + $0x40] sm:$0xff]
    %v1502 = vadd.f32 %v1499, %v1349
    %v1503 = vxor.u32 %v1502, 2147483648
    %v1504 = vmul.f32 %v1503, 1.442695
    %v1505 = vpow.pop %v1504
    %v1506 = vadd.f32 %v1505, 1.0
    %v1507 = vrcp.pop %v1506
    %v1508 = vmul.f32 1.0, %v1507
    %v1509 = vadd.f32 %v1500, %v1351
    %v1510 = vxor.u32 %v1509, 2147483648
    %v1511 = vmul.f32 %v1510, 1.442695
    %v1512 = vpow.pop %v1511
    %v1513 = vadd.f32 %v1512, 1.0
    %v1514 = vrcp.pop %v1513
    %v1515 = vmul.f32 1.0, %v1514
    %v1516 = vadd.f32 %v1390, %v367
    %v1517 = vmul.f32 %v1508, %v1516
    %v1518 = vadd.f32 %v1501, %v1517
    %v1519 = vtanh.pop %v1518
    %v1520 = vsub.f32 %v1311, %v1519
    %v1521 = vmul.f32 %v1515, %v1520
    %v1522 = vadd.f32 %v1519, %v1521
    %v1523 = vpack.c.bf16 %v1522, %v1522
    %v1524 = vpack.c.bf16 %v1498, %v1498
    %1525 = vmatprep.subr.bf16.mxu0 %v857
    %1526 = vmatpush1.bf16.msra.mxu0 %v856
    %1527 = vmatprep.subr.bf16.mxu0 %v864
    %1528 = vmatpush1.bf16.msra.mxu0 %v863
    %1529 = vmatprep.subr.bf16.mxu0 %v871
    %1530 = vmatpush1.bf16.msra.mxu0 %v870
    %1531 = vmatprep.subr.bf16.mxu0 %v878
    %1532 = vmatpush1.bf16.msra.mxu0 %v877
    %1533 = vmatprep.subr.bf16.mxu0 %v885
    %1534 = vmatpush1.bf16.msra.mxu0 %v884
    %1535 = vmatprep.subr.bf16.mxu0 %v892
    %1536 = vmatpush1.bf16.msra.mxu0 %v891
    %1537 = vmatprep.subr.bf16.mxu0 %v899
    %1538 = vmatpush1.bf16.msra.mxu0 %v898
    %1539 = vmatprep.subr.bf16.mxu0 %v906
    %1540 = vmatpush1.bf16.msra.mxu0 %v905
    %1541 = vmatprep.subr.bf16.mxu0 %v913
    %1542 = vmatpush1.bf16.msra.mxu0 %v912
    %1543 = vmatprep.subr.bf16.mxu0 %v920
    %1544 = vmatpush1.bf16.msra.mxu0 %v919
    %1545 = vmatprep.subr.bf16.mxu0 %v927
    %1546 = vmatpush1.bf16.msra.mxu0 %v926
    %1547 = vmatprep.subr.bf16.mxu0 %v934
    %1548 = vmatpush1.bf16.msra.mxu0 %v933
    %1549 = vmatprep.subr.bf16.mxu0 %v941
    %1550 = vmatpush1.bf16.msra.mxu0 %v940
    %1551 = vmatprep.subr.bf16.mxu0 %v948
    %1552 = vmatpush1.bf16.msra.mxu0 %v947
    %1553 = vmatprep.subr.bf16.mxu0 %v955
    %1554 = vmatpush1.bf16.msra.mxu0 %v954
    %1555 = vmatprep.subr.bf16.mxu0 %v962
    %1556 = vmatpush1.bf16.msra.mxu0 %v961
    %1557 = vmatprep.mubr.bf16.mxu0 %v1524
    %1558 = vmatmul.mubr.bf16.gmra.mrb[0].mxu0 %v1523
    %v1559 = vpop.f32.mrb[0].mxu0
    %v1560 = vadd.f32 0.0, %v1559
    %v1561 = vpop.f32.mrb[0].mxu0
    %v1562 = vadd.f32 0.0, %v1561
    %v1563 = vpop.f32.mrb[0].mxu0
    %v1564 = vpop.f32.mrb[0].mxu0
    %1565 = vdwg.mxu0
    %1566 = vmatprep.subr.bf16.mxu0 %v859
    %1567 = vmatpush1.bf16.msra.mxu0 %v858
    %1568 = vmatprep.subr.bf16.mxu0 %v866
    %1569 = vmatpush1.bf16.msra.mxu0 %v865
    %1570 = vmatprep.subr.bf16.mxu0 %v873
    %1571 = vmatpush1.bf16.msra.mxu0 %v872
    %1572 = vmatprep.subr.bf16.mxu0 %v880
    %1573 = vmatpush1.bf16.msra.mxu0 %v879
    %1574 = vmatprep.subr.bf16.mxu0 %v887
    %1575 = vmatpush1.bf16.msra.mxu0 %v886
    %1576 = vmatprep.subr.bf16.mxu0 %v894
    %1577 = vmatpush1.bf16.msra.mxu0 %v893
    %1578 = vmatprep.subr.bf16.mxu0 %v901
    %1579 = vmatpush1.bf16.msra.mxu0 %v900
    %1580 = vmatprep.subr.bf16.mxu0 %v908
    %1581 = vmatpush1.bf16.msra.mxu0 %v907
    %1582 = vmatprep.subr.bf16.mxu0 %v915
    %1583 = vmatpush1.bf16.msra.mxu0 %v914
    %1584 = vmatprep.subr.bf16.mxu0 %v922
    %1585 = vmatpush1.bf16.msra.mxu0 %v921
    %1586 = vmatprep.subr.bf16.mxu0 %v929
    %1587 = vmatpush1.bf16.msra.mxu0 %v928
    %1588 = vmatprep.subr.bf16.mxu0 %v936
    %1589 = vmatpush1.bf16.msra.mxu0 %v935
    %1590 = vmatprep.subr.bf16.mxu0 %v943
    %1591 = vmatpush1.bf16.msra.mxu0 %v942
    %1592 = vmatprep.subr.bf16.mxu0 %v950
    %1593 = vmatpush1.bf16.msra.mxu0 %v949
    %1594 = vmatprep.subr.bf16.mxu0 %v957
    %1595 = vmatpush1.bf16.msra.mxu0 %v956
    %1596 = vmatprep.subr.bf16.mxu0 %v964
    %1597 = vmatpush1.bf16.msra.mxu0 %v963
    %1598 = vmatprep.mubr.bf16.mxu0 %v1524
    %1599 = vmatmul.mubr.bf16.gmra.mrb[0].mxu0 %v1523
    %v1600 = vpop.f32.mrb[0].mxu0
    %v1601 = vadd.f32 0.0, %v1600
    %v1602 = vpop.f32.mrb[0].mxu0
    %v1603 = vadd.f32 0.0, %v1602
    %v1604 = vpop.f32.mrb[0].mxu0
    %v1605 = vpop.f32.mrb[0].mxu0
    %1606 = vdwg.mxu0
    %1607 = vmatprep.subr.bf16.mxu0 %v861
    %1608 = vmatpush1.bf16.msra.mxu0 %v860
    %1609 = vmatprep.subr.bf16.mxu0 %v868
    %1610 = vmatpush1.bf16.msra.mxu0 %v867
    %1611 = vmatprep.subr.bf16.mxu0 %v875
    %1612 = vmatpush1.bf16.msra.mxu0 %v874
    %1613 = vmatprep.subr.bf16.mxu0 %v882
    %1614 = vmatpush1.bf16.msra.mxu0 %v881
    %1615 = vmatprep.subr.bf16.mxu0 %v889
    %1616 = vmatpush1.bf16.msra.mxu0 %v888
    %1617 = vmatprep.subr.bf16.mxu0 %v896
    %1618 = vmatpush1.bf16.msra.mxu0 %v895
    %1619 = vmatprep.subr.bf16.mxu0 %v903
    %1620 = vmatpush1.bf16.msra.mxu0 %v902
    %1621 = vmatprep.subr.bf16.mxu0 %v910
    %1622 = vmatpush1.bf16.msra.mxu0 %v909
    %1623 = vmatprep.subr.bf16.mxu0 %v917
    %1624 = vmatpush1.bf16.msra.mxu0 %v916
    %1625 = vmatprep.subr.bf16.mxu0 %v924
    %1626 = vmatpush1.bf16.msra.mxu0 %v923
    %1627 = vmatprep.subr.bf16.mxu0 %v931
    %1628 = vmatpush1.bf16.msra.mxu0 %v930
    %1629 = vmatprep.subr.bf16.mxu0 %v938
    %1630 = vmatpush1.bf16.msra.mxu0 %v937
    %1631 = vmatprep.subr.bf16.mxu0 %v945
    %1632 = vmatpush1.bf16.msra.mxu0 %v944
    %1633 = vmatprep.subr.bf16.mxu0 %v952
    %1634 = vmatpush1.bf16.msra.mxu0 %v951
    %1635 = vmatprep.subr.bf16.mxu0 %v959
    %1636 = vmatpush1.bf16.msra.mxu0 %v958
    %1637 = vmatprep.subr.bf16.mxu0 %v966
    %1638 = vmatpush1.bf16.msra.mxu0 %v965
    %1639 = vmatprep.mubr.bf16.mxu0 %v1524
    %1640 = vmatmul.mubr.bf16.gmra.mrb[0].mxu0 %v1523
    %v1641 = vpop.f32.mrb[0].mxu0
    %v1642 = vadd.f32 0.0, %v1641
    %v1643 = vpop.f32.mrb[0].mxu0
    %v1644 = vadd.f32 0.0, %v1643
    %v1645 = vpop.f32.mrb[0].mxu0
    %v1646 = vpop.f32.mrb[0].mxu0
    %1647 = vdwg.mxu0
    %1648 = vmatprep.subr.bf16.mxu0 0
    %1649 = vmatpush1.bf16.msra.mxu0 %v862
    %1650 = vmatprep.subr.bf16.mxu0 0
    %1651 = vmatpush1.bf16.msra.mxu0 %v869
    %1652 = vmatprep.subr.bf16.mxu0 0
    %1653 = vmatpush1.bf16.msra.mxu0 %v876
    %1654 = vmatprep.subr.bf16.mxu0 0
    %1655 = vmatpush1.bf16.msra.mxu0 %v883
    %1656 = vmatprep.subr.bf16.mxu0 0
    %1657 = vmatpush1.bf16.msra.mxu0 %v890
    %1658 = vmatprep.subr.bf16.mxu0 0
    %1659 = vmatpush1.bf16.msra.mxu0 %v897
    %1660 = vmatprep.subr.bf16.mxu0 0
    %1661 = vmatpush1.bf16.msra.mxu0 %v904
    %1662 = vmatprep.subr.bf16.mxu0 0
    %1663 = vmatpush1.bf16.msra.mxu0 %v911
    %1664 = vmatprep.subr.bf16.mxu0 0
    %1665 = vmatpush1.bf16.msra.mxu0 %v918
    %1666 = vmatprep.subr.bf16.mxu0 0
    %1667 = vmatpush1.bf16.msra.mxu0 %v925
    %1668 = vmatprep.subr.bf16.mxu0 0
    %1669 = vmatpush1.bf16.msra.mxu0 %v932
    %1670 = vmatprep.subr.bf16.mxu0 0
    %1671 = vmatpush1.bf16.msra.mxu0 %v939
    %1672 = vmatprep.subr.bf16.mxu0 0
    %1673 = vmatpush1.bf16.msra.mxu0 %v946
    %1674 = vmatprep.subr.bf16.mxu0 0
    %1675 = vmatpush1.bf16.msra.mxu0 %v953
    %1676 = vmatprep.subr.bf16.mxu0 0
    %1677 = vmatpush1.bf16.msra.mxu0 %v960
    %1678 = vmatprep.subr.bf16.mxu0 0
    %1679 = vmatpush1.bf16.msra.mxu0 %v967
    %1680 = vmatprep.mubr.bf16.mxu0 %v1524
    %1681 = vmatmul.mubr.bf16.gmra.mrb[0].mxu0 %v1523
    %v1682 = vpop.f32.mrb[0].mxu0
    %v1683 = vadd.f32 0.0, %v1682
    %v1684 = vpop.f32.mrb[0].mxu0
    %v1685 = vpop.f32.mrb[0].mxu0
    %v1686 = vpop.f32.mrb[0].mxu0
    %1687 = vdwg.mxu0
    %v1688 = vadd.f32 %v1603, %v1247
    %v1689 = vadd.f32 %v1642, %v1251
    %v1690 = vadd.f32 %v1644, %v1260
    %v1691 = vxor.u32 %v1688, 2147483648
    %v1692 = vmul.f32 %v1691, 1.442695
    %v1693 = vpow.pop %v1692
    %v1694 = vadd.f32 %v1693, 1.0
    %v1695 = vrcp.pop %v1694
    %v1696 = vmul.f32 1.0, %v1695
    %v1697 = vxor.u32 %v1689, 2147483648
    %v1698 = vmul.f32 %v1697, 1.442695
    %v1699 = vpow.pop %v1698
    %v1700 = vadd.f32 %v1699, 1.0
    %v1701 = vrcp.pop %v1700
    %v1702 = vmul.f32 1.0, %v1701
    %v1703 = vadd.f32 %v1683, %v1279
    %v1704 = vmul.f32 %v1696, %v1703
    %v1705 = vadd.f32 %v1690, %v1704
    %v1706 = vtanh.pop %v1705
    %v1707 = vsub.f32 %v1498, %v1706
    %v1708 = vmul.f32 %v1702, %v1707
    %v1709 = vadd.f32 %v1706, %v1708
    %v1710 = vld [vmem:[#allocation2 + $0x48] sm:$0xff]
    %v1711 = vld [vmem:[#allocation2 + $0x50] sm:$0xff]
    %v1712 = vld [vmem:[#allocation2 + $0x58] sm:$0xff]
    %v1713 = vadd.f32 %v1710, %v1560
    %v1714 = vxor.u32 %v1713, 2147483648
    %v1715 = vmul.f32 %v1714, 1.442695
    %v1716 = vpow.pop %v1715
    %v1717 = vadd.f32 %v1716, 1.0
    %v1718 = vrcp.pop %v1717
    %v1719 = vmul.f32 1.0, %v1718
    %v1720 = vadd.f32 %v1711, %v1562
    %v1721 = vxor.u32 %v1720, 2147483648
    %v1722 = vmul.f32 %v1721, 1.442695
    %v1723 = vpow.pop %v1722
    %v1724 = vadd.f32 %v1723, 1.0
    %v1725 = vrcp.pop %v1724
    %v1726 = vmul.f32 1.0, %v1725
    %v1727 = vadd.f32 %v1601, %v367
    %v1728 = vmul.f32 %v1719, %v1727
    %v1729 = vadd.f32 %v1712, %v1728
    %v1730 = vtanh.pop %v1729
    %v1731 = vsub.f32 %v1522, %v1730
    %v1732 = vmul.f32 %v1726, %v1731
    %v1733 = vadd.f32 %v1730, %v1732
    %v1734 = vpack.c.bf16 %v1733, %v1733
    %v1735 = vpack.c.bf16 %v1709, %v1709
    %1736 = vmatprep.subr.bf16.mxu0 %v857
    %1737 = vmatpush1.bf16.msra.mxu0 %v856
    %1738 = vmatprep.subr.bf16.mxu0 %v864
    %1739 = vmatpush1.bf16.msra.mxu0 %v863
    %1740 = vmatprep.subr.bf16.mxu0 %v871
    %1741 = vmatpush1.bf16.msra.mxu0 %v870
    %1742 = vmatprep.subr.bf16.mxu0 %v878
    %1743 = vmatpush1.bf16.msra.mxu0 %v877
    %1744 = vmatprep.subr.bf16.mxu0 %v885
    %1745 = vmatpush1.bf16.msra.mxu0 %v884
    %1746 = vmatprep.subr.bf16.mxu0 %v892
    %1747 = vmatpush1.bf16.msra.mxu0 %v891
    %1748 = vmatprep.subr.bf16.mxu0 %v899
    %1749 = vmatpush1.bf16.msra.mxu0 %v898
    %1750 = vmatprep.subr.bf16.mxu0 %v906
    %1751 = vmatpush1.bf16.msra.mxu0 %v905
    %1752 = vmatprep.subr.bf16.mxu0 %v913
    %1753 = vmatpush1.bf16.msra.mxu0 %v912
    %1754 = vmatprep.subr.bf16.mxu0 %v920
    %1755 = vmatpush1.bf16.msra.mxu0 %v919
    %1756 = vmatprep.subr.bf16.mxu0 %v927
    %1757 = vmatpush1.bf16.msra.mxu0 %v926
    %1758 = vmatprep.subr.bf16.mxu0 %v934
    %1759 = vmatpush1.bf16.msra.mxu0 %v933
    %1760 = vmatprep.subr.bf16.mxu0 %v941
    %1761 = vmatpush1.bf16.msra.mxu0 %v940
    %1762 = vmatprep.subr.bf16.mxu0 %v948
    %1763 = vmatpush1.bf16.msra.mxu0 %v947
    %1764 = vmatprep.subr.bf16.mxu0 %v955
    %1765 = vmatpush1.bf16.msra.mxu0 %v954
    %1766 = vmatprep.subr.bf16.mxu0 %v962
    %1767 = vmatpush1.bf16.msra.mxu0 %v961
    %1768 = vmatprep.mubr.bf16.mxu0 %v1735
    %1769 = vmatmul.mubr.bf16.gmra.mrb[0].mxu0 %v1734
    %v1770 = vpop.f32.mrb[0].mxu0
    %v1771 = vadd.f32 0.0, %v1770
    %v1772 = vpop.f32.mrb[0].mxu0
    %v1773 = vadd.f32 0.0, %v1772
    %v1774 = vpop.f32.mrb[0].mxu0
    %v1775 = vpop.f32.mrb[0].mxu0
    %1776 = vdwg.mxu0
    %1777 = vmatprep.subr.bf16.mxu0 %v859
    %1778 = vmatpush1.bf16.msra.mxu0 %v858
    %1779 = vmatprep.subr.bf16.mxu0 %v866
    %1780 = vmatpush1.bf16.msra.mxu0 %v865
    %1781 = vmatprep.subr.bf16.mxu0 %v873
    %1782 = vmatpush1.bf16.msra.mxu0 %v872
    %1783 = vmatprep.subr.bf16.mxu0 %v880
    %1784 = vmatpush1.bf16.msra.mxu0 %v879
    %1785 = vmatprep.subr.bf16.mxu0 %v887
    %1786 = vmatpush1.bf16.msra.mxu0 %v886
    %1787 = vmatprep.subr.bf16.mxu0 %v894
    %1788 = vmatpush1.bf16.msra.mxu0 %v893
    %1789 = vmatprep.subr.bf16.mxu0 %v901
    %1790 = vmatpush1.bf16.msra.mxu0 %v900
    %1791 = vmatprep.subr.bf16.mxu0 %v908
    %1792 = vmatpush1.bf16.msra.mxu0 %v907
    %1793 = vmatprep.subr.bf16.mxu0 %v915
    %1794 = vmatpush1.bf16.msra.mxu0 %v914
    %1795 = vmatprep.subr.bf16.mxu0 %v922
    %1796 = vmatpush1.bf16.msra.mxu0 %v921
    %1797 = vmatprep.subr.bf16.mxu0 %v929
    %1798 = vmatpush1.bf16.msra.mxu0 %v928
    %1799 = vmatprep.subr.bf16.mxu0 %v936
    %1800 = vmatpush1.bf16.msra.mxu0 %v935
    %1801 = vmatprep.subr.bf16.mxu0 %v943
    %1802 = vmatpush1.bf16.msra.mxu0 %v942
    %1803 = vmatprep.subr.bf16.mxu0 %v950
    %1804 = vmatpush1.bf16.msra.mxu0 %v949
    %1805 = vmatprep.subr.bf16.mxu0 %v957
    %1806 = vmatpush1.bf16.msra.mxu0 %v956
    %1807 = vmatprep.subr.bf16.mxu0 %v964
    %1808 = vmatpush1.bf16.msra.mxu0 %v963
    %1809 = vmatprep.mubr.bf16.mxu0 %v1735
    %1810 = vmatmul.mubr.bf16.gmra.mrb[0].mxu0 %v1734
    %v1811 = vpop.f32.mrb[0].mxu0
    %v1812 = vadd.f32 0.0, %v1811
    %v1813 = vpop.f32.mrb[0].mxu0
    %v1814 = vadd.f32 0.0, %v1813
    %v1815 = vpop.f32.mrb[0].mxu0
    %v1816 = vpop.f32.mrb[0].mxu0
    %1817 = vdwg.mxu0
    %1818 = vmatprep.subr.bf16.mxu0 %v861
    %1819 = vmatpush1.bf16.msra.mxu0 %v860
    %1820 = vmatprep.subr.bf16.mxu0 %v868
    %1821 = vmatpush1.bf16.msra.mxu0 %v867
    %1822 = vmatprep.subr.bf16.mxu0 %v875
    %1823 = vmatpush1.bf16.msra.mxu0 %v874
    %1824 = vmatprep.subr.bf16.mxu0 %v882
    %1825 = vmatpush1.bf16.msra.mxu0 %v881
    %1826 = vmatprep.subr.bf16.mxu0 %v889
    %1827 = vmatpush1.bf16.msra.mxu0 %v888
    %1828 = vmatprep.subr.bf16.mxu0 %v896
    %1829 = vmatpush1.bf16.msra.mxu0 %v895
    %1830 = vmatprep.subr.bf16.mxu0 %v903
    %1831 = vmatpush1.bf16.msra.mxu0 %v902
    %1832 = vmatprep.subr.bf16.mxu0 %v910
    %1833 = vmatpush1.bf16.msra.mxu0 %v909
    %1834 = vmatprep.subr.bf16.mxu0 %v917
    %1835 = vmatpush1.bf16.msra.mxu0 %v916
    %1836 = vmatprep.subr.bf16.mxu0 %v924
    %1837 = vmatpush1.bf16.msra.mxu0 %v923
    %1838 = vmatprep.subr.bf16.mxu0 %v931
    %1839 = vmatpush1.bf16.msra.mxu0 %v930
    %1840 = vmatprep.subr.bf16.mxu0 %v938
    %1841 = vmatpush1.bf16.msra.mxu0 %v937
    %1842 = vmatprep.subr.bf16.mxu0 %v945
    %1843 = vmatpush1.bf16.msra.mxu0 %v944
    %1844 = vmatprep.subr.bf16.mxu0 %v952
    %1845 = vmatpush1.bf16.msra.mxu0 %v951
    %1846 = vmatprep.subr.bf16.mxu0 %v959
    %1847 = vmatpush1.bf16.msra.mxu0 %v958
    %1848 = vmatprep.subr.bf16.mxu0 %v966
    %1849 = vmatpush1.bf16.msra.mxu0 %v965
    %1850 = vmatprep.mubr.bf16.mxu0 %v1735
    %1851 = vmatmul.mubr.bf16.gmra.mrb[0].mxu0 %v1734
    %v1852 = vpop.f32.mrb[0].mxu0
    %v1853 = vadd.f32 0.0, %v1852
    %v1854 = vpop.f32.mrb[0].mxu0
    %v1855 = vadd.f32 0.0, %v1854
    %v1856 = vpop.f32.mrb[0].mxu0
    %v1857 = vpop.f32.mrb[0].mxu0
    %1858 = vdwg.mxu0
    %1859 = vmatprep.subr.bf16.mxu0 0
    %1860 = vmatpush1.bf16.msra.mxu0 %v862
    %1861 = vmatprep.subr.bf16.mxu0 0
    %1862 = vmatpush1.bf16.msra.mxu0 %v869
    %1863 = vmatprep.subr.bf16.mxu0 0
    %1864 = vmatpush1.bf16.msra.mxu0 %v876
    %1865 = vmatprep.subr.bf16.mxu0 0
    %1866 = vmatpush1.bf16.msra.mxu0 %v883
    %1867 = vmatprep.subr.bf16.mxu0 0
    %1868 = vmatpush1.bf16.msra.mxu0 %v890
    %1869 = vmatprep.subr.bf16.mxu0 0
    %1870 = vmatpush1.bf16.msra.mxu0 %v897
    %1871 = vmatprep.subr.bf16.mxu0 0
    %1872 = vmatpush1.bf16.msra.mxu0 %v904
    %1873 = vmatprep.subr.bf16.mxu0 0
    %1874 = vmatpush1.bf16.msra.mxu0 %v911
    %1875 = vmatprep.subr.bf16.mxu0 0
    %1876 = vmatpush1.bf16.msra.mxu0 %v918
    %1877 = vmatprep.subr.bf16.mxu0 0
    %1878 = vmatpush1.bf16.msra.mxu0 %v925
    %1879 = vmatprep.subr.bf16.mxu0 0
    %1880 = vmatpush1.bf16.msra.mxu0 %v932
    %1881 = vmatprep.subr.bf16.mxu0 0
    %1882 = vmatpush1.bf16.msra.mxu0 %v939
    %1883 = vmatprep.subr.bf16.mxu0 0
    %1884 = vmatpush1.bf16.msra.mxu0 %v946
    %1885 = vmatprep.subr.bf16.mxu0 0
    %1886 = vmatpush1.bf16.msra.mxu0 %v953
    %1887 = vmatprep.subr.bf16.mxu0 0
    %1888 = vmatpush1.bf16.msra.mxu0 %v960
    %1889 = vmatprep.subr.bf16.mxu0 0
    %1890 = vmatpush1.bf16.msra.mxu0 %v967
    %1891 = vmatprep.mubr.bf16.mxu0 %v1735
    %1892 = vmatmul.mubr.bf16.gmra.mrb[0].mxu0 %v1734
    %v1893 = vpop.f32.mrb[0].mxu0
    %v1894 = vadd.f32 0.0, %v1893
    %v1895 = vpop.f32.mrb[0].mxu0
    %v1896 = vpop.f32.mrb[0].mxu0
    %v1897 = vpop.f32.mrb[0].mxu0
    %1898 = vdwg.mxu0
    %v1899 = vadd.f32 %v1814, %v1247
    %v1900 = vadd.f32 %v1853, %v1251
    %v1901 = vadd.f32 %v1855, %v1260
    %v1902 = vxor.u32 %v1899, 2147483648
    %v1903 = vmul.f32 %v1902, 1.442695
    %v1904 = vpow.pop %v1903
    %v1905 = vadd.f32 %v1904, 1.0
    %v1906 = vrcp.pop %v1905
    %v1907 = vmul.f32 1.0, %v1906
    %v1908 = vxor.u32 %v1900, 2147483648
    %v1909 = vmul.f32 %v1908, 1.442695
    %v1910 = vpow.pop %v1909
    %v1911 = vadd.f32 %v1910, 1.0
    %v1912 = vrcp.pop %v1911
    %v1913 = vmul.f32 1.0, %v1912
    %v1914 = vadd.f32 %v1894, %v1279
    %v1915 = vmul.f32 %v1907, %v1914
    %v1916 = vadd.f32 %v1901, %v1915
    %v1917 = vtanh.pop %v1916
    %v1918 = vsub.f32 %v1709, %v1917
    %v1919 = vmul.f32 %v1913, %v1918
    %v1920 = vadd.f32 %v1917, %v1919
    %v1921 = vld [vmem:[#allocation2 + $0x60] sm:$0xff]
    %v1922 = vld [vmem:[#allocation2 + $0x68] sm:$0xff]
    %v1923 = vld [vmem:[#allocation2 + $0x70] sm:$0xff]
    %v1924 = vadd.f32 %v1921, %v1771
    %v1925 = vxor.u32 %v1924, 2147483648
    %v1926 = vmul.f32 %v1925, 1.442695
    %v1927 = vpow.pop %v1926
    %v1928 = vadd.f32 %v1927, 1.0
    %v1929 = vrcp.pop %v1928
    %v1930 = vmul.f32 1.0, %v1929
    %v1931 = vadd.f32 %v1922, %v1773
    %v1932 = vxor.u32 %v1931, 2147483648
    %v1933 = vmul.f32 %v1932, 1.442695
    %v1934 = vpow.pop %v1933
    %v1935 = vadd.f32 %v1934, 1.0
    %v1936 = vrcp.pop %v1935
    %v1937 = vmul.f32 1.0, %v1936
    %v1938 = vadd.f32 %v1812, %v367
    %v1939 = vmul.f32 %v1930, %v1938
    %v1940 = vadd.f32 %v1923, %v1939
    %v1941 = vtanh.pop %v1940
    %v1942 = vsub.f32 %v1733, %v1941
    %v1943 = vmul.f32 %v1937, %v1942
    %v1944 = vadd.f32 %v1941, %v1943
    %v1945 = vpack.c.bf16 %v1944, %v1944
    %v1946 = vpack.c.bf16 %v1920, %v1920
    %1947 = vmatprep.subr.bf16.mxu0 %v857
    %1948 = vmatpush1.bf16.msra.mxu0 %v856
    %1949 = vmatprep.subr.bf16.mxu0 %v864
    %1950 = vmatpush1.bf16.msra.mxu0 %v863
    %1951 = vmatprep.subr.bf16.mxu0 %v871
    %1952 = vmatpush1.bf16.msra.mxu0 %v870
    %1953 = vmatprep.subr.bf16.mxu0 %v878
    %1954 = vmatpush1.bf16.msra.mxu0 %v877
    %1955 = vmatprep.subr.bf16.mxu0 %v885
    %1956 = vmatpush1.bf16.msra.mxu0 %v884
    %1957 = vmatprep.subr.bf16.mxu0 %v892
    %1958 = vmatpush1.bf16.msra.mxu0 %v891
    %1959 = vmatprep.subr.bf16.mxu0 %v899
    %1960 = vmatpush1.bf16.msra.mxu0 %v898
    %1961 = vmatprep.subr.bf16.mxu0 %v906
    %1962 = vmatpush1.bf16.msra.mxu0 %v905
    %1963 = vmatprep.subr.bf16.mxu0 %v913
    %1964 = vmatpush1.bf16.msra.mxu0 %v912
    %1965 = vmatprep.subr.bf16.mxu0 %v920
    %1966 = vmatpush1.bf16.msra.mxu0 %v919
    %1967 = vmatprep.subr.bf16.mxu0 %v927
    %1968 = vmatpush1.bf16.msra.mxu0 %v926
    %1969 = vmatprep.subr.bf16.mxu0 %v934
    %1970 = vmatpush1.bf16.msra.mxu0 %v933
    %1971 = vmatprep.subr.bf16.mxu0 %v941
    %1972 = vmatpush1.bf16.msra.mxu0 %v940
    %1973 = vmatprep.subr.bf16.mxu0 %v948
    %1974 = vmatpush1.bf16.msra.mxu0 %v947
    %1975 = vmatprep.subr.bf16.mxu0 %v955
    %1976 = vmatpush1.bf16.msra.mxu0 %v954
    %1977 = vmatprep.subr.bf16.mxu0 %v962
    %1978 = vmatpush1.bf16.msra.mxu0 %v961
    %1979 = vmatprep.mubr.bf16.mxu0 %v1946
    %1980 = vmatmul.mubr.bf16.gmra.mrb[0].mxu0 %v1945
    %v1981 = vpop.f32.mrb[0].mxu0
    %v1982 = vadd.f32 0.0, %v1981
    %v1983 = vpop.f32.mrb[0].mxu0
    %v1984 = vadd.f32 0.0, %v1983
    %v1985 = vpop.f32.mrb[0].mxu0
    %v1986 = vpop.f32.mrb[0].mxu0
    %1987 = vdwg.mxu0
    %1988 = vmatprep.subr.bf16.mxu0 %v859
    %1989 = vmatpush1.bf16.msra.mxu0 %v858
    %1990 = vmatprep.subr.bf16.mxu0 %v866
    %1991 = vmatpush1.bf16.msra.mxu0 %v865
    %1992 = vmatprep.subr.bf16.mxu0 %v873
    %1993 = vmatpush1.bf16.msra.mxu0 %v872
    %1994 = vmatprep.subr.bf16.mxu0 %v880
    %1995 = vmatpush1.bf16.msra.mxu0 %v879
    %1996 = vmatprep.subr.bf16.mxu0 %v887
    %1997 = vmatpush1.bf16.msra.mxu0 %v886
    %1998 = vmatprep.subr.bf16.mxu0 %v894
    %1999 = vmatpush1.bf16.msra.mxu0 %v893
    %2000 = vmatprep.subr.bf16.mxu0 %v901
    %2001 = vmatpush1.bf16.msra.mxu0 %v900
    %2002 = vmatprep.subr.bf16.mxu0 %v908
    %2003 = vmatpush1.bf16.msra.mxu0 %v907
    %2004 = vmatprep.subr.bf16.mxu0 %v915
    %2005 = vmatpush1.bf16.msra.mxu0 %v914
    %2006 = vmatprep.subr.bf16.mxu0 %v922
    %2007 = vmatpush1.bf16.msra.mxu0 %v921
    %2008 = vmatprep.subr.bf16.mxu0 %v929
    %2009 = vmatpush1.bf16.msra.mxu0 %v928
    %2010 = vmatprep.subr.bf16.mxu0 %v936
    %2011 = vmatpush1.bf16.msra.mxu0 %v935
    %2012 = vmatprep.subr.bf16.mxu0 %v943
    %2013 = vmatpush1.bf16.msra.mxu0 %v942
    %2014 = vmatprep.subr.bf16.mxu0 %v950
    %2015 = vmatpush1.bf16.msra.mxu0 %v949
    %2016 = vmatprep.subr.bf16.mxu0 %v957
    %2017 = vmatpush1.bf16.msra.mxu0 %v956
    %2018 = vmatprep.subr.bf16.mxu0 %v964
    %2019 = vmatpush1.bf16.msra.mxu0 %v963
    %2020 = vmatprep.mubr.bf16.mxu0 %v1946
    %2021 = vmatmul.mubr.bf16.gmra.mrb[0].mxu0 %v1945
    %v2022 = vpop.f32.mrb[0].mxu0
    %v2023 = vadd.f32 0.0, %v2022
    %v2024 = vpop.f32.mrb[0].mxu0
    %v2025 = vadd.f32 0.0, %v2024
    %v2026 = vpop.f32.mrb[0].mxu0
    %v2027 = vpop.f32.mrb[0].mxu0
    %2028 = vdwg.mxu0
    %2029 = vmatprep.subr.bf16.mxu0 %v861
    %2030 = vmatpush1.bf16.msra.mxu0 %v860
    %2031 = vmatprep.subr.bf16.mxu0 %v868
    %2032 = vmatpush1.bf16.msra.mxu0 %v867
    %2033 = vmatprep.subr.bf16.mxu0 %v875
    %2034 = vmatpush1.bf16.msra.mxu0 %v874
    %2035 = vmatprep.subr.bf16.mxu0 %v882
    %2036 = vmatpush1.bf16.msra.mxu0 %v881
    %2037 = vmatprep.subr.bf16.mxu0 %v889
    %2038 = vmatpush1.bf16.msra.mxu0 %v888
    %2039 = vmatprep.subr.bf16.mxu0 %v896
    %2040 = vmatpush1.bf16.msra.mxu0 %v895
    %2041 = vmatprep.subr.bf16.mxu0 %v903
    %2042 = vmatpush1.bf16.msra.mxu0 %v902
    %2043 = vmatprep.subr.bf16.mxu0 %v910
    %2044 = vmatpush1.bf16.msra.mxu0 %v909
    %2045 = vmatprep.subr.bf16.mxu0 %v917
    %2046 = vmatpush1.bf16.msra.mxu0 %v916
    %2047 = vmatprep.subr.bf16.mxu0 %v924
    %2048 = vmatpush1.bf16.msra.mxu0 %v923
    %2049 = vmatprep.subr.bf16.mxu0 %v931
    %2050 = vmatpush1.bf16.msra.mxu0 %v930
    %2051 = vmatprep.subr.bf16.mxu0 %v938
    %2052 = vmatpush1.bf16.msra.mxu0 %v937
    %2053 = vmatprep.subr.bf16.mxu0 %v945
    %2054 = vmatpush1.bf16.msra.mxu0 %v944
    %2055 = vmatprep.subr.bf16.mxu0 %v952
    %2056 = vmatpush1.bf16.msra.mxu0 %v951
    %2057 = vmatprep.subr.bf16.mxu0 %v959
    %2058 = vmatpush1.bf16.msra.mxu0 %v958
    %2059 = vmatprep.subr.bf16.mxu0 %v966
    %2060 = vmatpush1.bf16.msra.mxu0 %v965
    %2061 = vmatprep.mubr.bf16.mxu0 %v1946
    %2062 = vmatmul.mubr.bf16.gmra.mrb[0].mxu0 %v1945
    %v2063 = vpop.f32.mrb[0].mxu0
    %v2064 = vadd.f32 0.0, %v2063
    %v2065 = vpop.f32.mrb[0].mxu0
    %v2066 = vadd.f32 0.0, %v2065
    %v2067 = vpop.f32.mrb[0].mxu0
    %v2068 = vpop.f32.mrb[0].mxu0
    %2069 = vdwg.mxu0
    %2070 = vmatprep.subr.bf16.mxu0 0
    %2071 = vmatpush1.bf16.msra.mxu0 %v862
    %2072 = vmatprep.subr.bf16.mxu0 0
    %2073 = vmatpush1.bf16.msra.mxu0 %v869
    %2074 = vmatprep.subr.bf16.mxu0 0
    %2075 = vmatpush1.bf16.msra.mxu0 %v876
    %2076 = vmatprep.subr.bf16.mxu0 0
    %2077 = vmatpush1.bf16.msra.mxu0 %v883
    %2078 = vmatprep.subr.bf16.mxu0 0
    %2079 = vmatpush1.bf16.msra.mxu0 %v890
    %2080 = vmatprep.subr.bf16.mxu0 0
    %2081 = vmatpush1.bf16.msra.mxu0 %v897
    %2082 = vmatprep.subr.bf16.mxu0 0
    %2083 = vmatpush1.bf16.msra.mxu0 %v904
    %2084 = vmatprep.subr.bf16.mxu0 0
    %2085 = vmatpush1.bf16.msra.mxu0 %v911
    %2086 = vmatprep.subr.bf16.mxu0 0
    %2087 = vmatpush1.bf16.msra.mxu0 %v918
    %2088 = vmatprep.subr.bf16.mxu0 0
    %2089 = vmatpush1.bf16.msra.mxu0 %v925
    %2090 = vmatprep.subr.bf16.mxu0 0
    %2091 = vmatpush1.bf16.msra.mxu0 %v932
    %2092 = vmatprep.subr.bf16.mxu0 0
    %2093 = vmatpush1.bf16.msra.mxu0 %v939
    %2094 = vmatprep.subr.bf16.mxu0 0
    %2095 = vmatpush1.bf16.msra.mxu0 %v946
    %2096 = vmatprep.subr.bf16.mxu0 0
    %2097 = vmatpush1.bf16.msra.mxu0 %v953
    %2098 = vmatprep.subr.bf16.mxu0 0
    %2099 = vmatpush1.bf16.msra.mxu0 %v960
    %2100 = vmatprep.subr.bf16.mxu0 0
    %2101 = vmatpush1.bf16.msra.mxu0 %v967
    %2102 = vmatprep.mubr.bf16.mxu0 %v1946
    %2103 = vmatmul.mubr.bf16.gmra.mrb[0].mxu0 %v1945
    %v2104 = vpop.f32.mrb[0].mxu0
    %v2105 = vadd.f32 0.0, %v2104
    %v2106 = vpop.f32.mrb[0].mxu0
    %v2107 = vpop.f32.mrb[0].mxu0
    %v2108 = vpop.f32.mrb[0].mxu0
    %2109 = vdwg.mxu0
    %v2110 = vadd.f32 %v2025, %v1247
    %v2111 = vadd.f32 %v2064, %v1251
    %v2112 = vadd.f32 %v2066, %v1260
    %v2113 = vxor.u32 %v2110, 2147483648
    %v2114 = vmul.f32 %v2113, 1.442695
    %v2115 = vpow.pop %v2114
    %v2116 = vadd.f32 %v2115, 1.0
    %v2117 = vrcp.pop %v2116
    %v2118 = vmul.f32 1.0, %v2117
    %v2119 = vxor.u32 %v2111, 2147483648
    %v2120 = vmul.f32 %v2119, 1.442695
    %v2121 = vpow.pop %v2120
    %v2122 = vadd.f32 %v2121, 1.0
    %v2123 = vrcp.pop %v2122
    %v2124 = vmul.f32 1.0, %v2123
    %v2125 = vadd.f32 %v2105, %v1279
    %v2126 = vmul.f32 %v2118, %v2125
    %v2127 = vadd.f32 %v2112, %v2126
    %v2128 = vtanh.pop %v2127
    %v2129 = vsub.f32 %v1920, %v2128
    %v2130 = vmul.f32 %v2124, %v2129
    %v2131 = vadd.f32 %v2128, %v2130
    %v2132 = vld [vmem:[#allocation2 + $0x78] sm:$0xff]
    %v2133 = vld [vmem:[#allocation2 + $0x80] sm:$0xff]
    %v2134 = vld [vmem:[#allocation2 + $0x88] sm:$0xff]
    %v2135 = vadd.f32 %v2132, %v1982
    %v2136 = vxor.u32 %v2135, 2147483648
    %v2137 = vmul.f32 %v2136, 1.442695
    %v2138 = vpow.pop %v2137
    %v2139 = vadd.f32 %v2138, 1.0
    %v2140 = vrcp.pop %v2139
    %v2141 = vmul.f32 1.0, %v2140
    %v2142 = vadd.f32 %v2133, %v1984
    %v2143 = vxor.u32 %v2142, 2147483648
    %v2144 = vmul.f32 %v2143, 1.442695
    %v2145 = vpow.pop %v2144
    %v2146 = vadd.f32 %v2145, 1.0
    %v2147 = vrcp.pop %v2146
    %v2148 = vmul.f32 1.0, %v2147
    %v2149 = vadd.f32 %v2023, %v367
    %v2150 = vmul.f32 %v2141, %v2149
    %v2151 = vadd.f32 %v2134, %v2150
    %v2152 = vtanh.pop %v2151
    %v2153 = vsub.f32 %v1944, %v2152
    %v2154 = vmul.f32 %v2148, %v2153
    %v2155 = vadd.f32 %v2152, %v2154
    %v2156 = vpack.c.bf16 %v2155, %v2155
    %v2157 = vpack.c.bf16 %v2131, %v2131
    %2158 = vmatprep.subr.bf16.mxu0 %v857
    %2159 = vmatpush1.bf16.msra.mxu0 %v856
    %2160 = vmatprep.subr.bf16.mxu0 %v864
    %2161 = vmatpush1.bf16.msra.mxu0 %v863
    %2162 = vmatprep.subr.bf16.mxu0 %v871
    %2163 = vmatpush1.bf16.msra.mxu0 %v870
    %2164 = vmatprep.subr.bf16.mxu0 %v878
    %2165 = vmatpush1.bf16.msra.mxu0 %v877
    %2166 = vmatprep.subr.bf16.mxu0 %v885
    %2167 = vmatpush1.bf16.msra.mxu0 %v884
    %2168 = vmatprep.subr.bf16.mxu0 %v892
    %2169 = vmatpush1.bf16.msra.mxu0 %v891
    %2170 = vmatprep.subr.bf16.mxu0 %v899
    %2171 = vmatpush1.bf16.msra.mxu0 %v898
    %2172 = vmatprep.subr.bf16.mxu0 %v906
    %2173 = vmatpush1.bf16.msra.mxu0 %v905
    %2174 = vmatprep.subr.bf16.mxu0 %v913
    %2175 = vmatpush1.bf16.msra.mxu0 %v912
    %2176 = vmatprep.subr.bf16.mxu0 %v920
    %2177 = vmatpush1.bf16.msra.mxu0 %v919
    %2178 = vmatprep.subr.bf16.mxu0 %v927
    %2179 = vmatpush1.bf16.msra.mxu0 %v926
    %2180 = vmatprep.subr.bf16.mxu0 %v934
    %2181 = vmatpush1.bf16.msra.mxu0 %v933
    %2182 = vmatprep.subr.bf16.mxu0 %v941
    %2183 = vmatpush1.bf16.msra.mxu0 %v940
    %2184 = vmatprep.subr.bf16.mxu0 %v948
    %2185 = vmatpush1.bf16.msra.mxu0 %v947
    %2186 = vmatprep.subr.bf16.mxu0 %v955
    %2187 = vmatpush1.bf16.msra.mxu0 %v954
    %2188 = vmatprep.subr.bf16.mxu0 %v962
    %2189 = vmatpush1.bf16.msra.mxu0 %v961
    %2190 = vmatprep.mubr.bf16.mxu0 %v2157
    %2191 = vmatmul.mubr.bf16.gmra.mrb[0].mxu0 %v2156
    %v2192 = vpop.f32.mrb[0].mxu0
    %v2193 = vadd.f32 0.0, %v2192
    %v2194 = vpop.f32.mrb[0].mxu0
    %v2195 = vadd.f32 0.0, %v2194
    %v2196 = vpop.f32.mrb[0].mxu0
    %v2197 = vpop.f32.mrb[0].mxu0
    %2198 = vdwg.mxu0
    %2199 = vmatprep.subr.bf16.mxu0 %v859
    %2200 = vmatpush1.bf16.msra.mxu0 %v858
    %2201 = vmatprep.subr.bf16.mxu0 %v866
    %2202 = vmatpush1.bf16.msra.mxu0 %v865
    %2203 = vmatprep.subr.bf16.mxu0 %v873
    %2204 = vmatpush1.bf16.msra.mxu0 %v872
    %2205 = vmatprep.subr.bf16.mxu0 %v880
    %2206 = vmatpush1.bf16.msra.mxu0 %v879
    %2207 = vmatprep.subr.bf16.mxu0 %v887
    %2208 = vmatpush1.bf16.msra.mxu0 %v886
    %2209 = vmatprep.subr.bf16.mxu0 %v894
    %2210 = vmatpush1.bf16.msra.mxu0 %v893
    %2211 = vmatprep.subr.bf16.mxu0 %v901
    %2212 = vmatpush1.bf16.msra.mxu0 %v900
    %2213 = vmatprep.subr.bf16.mxu0 %v908
    %2214 = vmatpush1.bf16.msra.mxu0 %v907
    %2215 = vmatprep.subr.bf16.mxu0 %v915
    %2216 = vmatpush1.bf16.msra.mxu0 %v914
    %2217 = vmatprep.subr.bf16.mxu0 %v922
    %2218 = vmatpush1.bf16.msra.mxu0 %v921
    %2219 = vmatprep.subr.bf16.mxu0 %v929
    %2220 = vmatpush1.bf16.msra.mxu0 %v928
    %2221 = vmatprep.subr.bf16.mxu0 %v936
    %2222 = vmatpush1.bf16.msra.mxu0 %v935
    %2223 = vmatprep.subr.bf16.mxu0 %v943
    %2224 = vmatpush1.bf16.msra.mxu0 %v942
    %2225 = vmatprep.subr.bf16.mxu0 %v950
    %2226 = vmatpush1.bf16.msra.mxu0 %v949
    %2227 = vmatprep.subr.bf16.mxu0 %v957
    %2228 = vmatpush1.bf16.msra.mxu0 %v956
    %2229 = vmatprep.subr.bf16.mxu0 %v964
    %2230 = vmatpush1.bf16.msra.mxu0 %v963
    %2231 = vmatprep.mubr.bf16.mxu0 %v2157
    %2232 = vmatmul.mubr.bf16.gmra.mrb[0].mxu0 %v2156
    %v2233 = vpop.f32.mrb[0].mxu0
    %v2234 = vadd.f32 0.0, %v2233
    %v2235 = vpop.f32.mrb[0].mxu0
    %v2236 = vadd.f32 0.0, %v2235
    %v2237 = vpop.f32.mrb[0].mxu0
    %v2238 = vpop.f32.mrb[0].mxu0
    %2239 = vdwg.mxu0
    %2240 = vmatprep.subr.bf16.mxu0 %v861
    %2241 = vmatpush1.bf16.msra.mxu0 %v860
    %2242 = vmatprep.subr.bf16.mxu0 %v868
    %2243 = vmatpush1.bf16.msra.mxu0 %v867
    %2244 = vmatprep.subr.bf16.mxu0 %v875
    %2245 = vmatpush1.bf16.msra.mxu0 %v874
    %2246 = vmatprep.subr.bf16.mxu0 %v882
    %2247 = vmatpush1.bf16.msra.mxu0 %v881
    %2248 = vmatprep.subr.bf16.mxu0 %v889
    %2249 = vmatpush1.bf16.msra.mxu0 %v888
    %2250 = vmatprep.subr.bf16.mxu0 %v896
    %2251 = vmatpush1.bf16.msra.mxu0 %v895
    %2252 = vmatprep.subr.bf16.mxu0 %v903
    %2253 = vmatpush1.bf16.msra.mxu0 %v902
    %2254 = vmatprep.subr.bf16.mxu0 %v910
    %2255 = vmatpush1.bf16.msra.mxu0 %v909
    %2256 = vmatprep.subr.bf16.mxu0 %v917
    %2257 = vmatpush1.bf16.msra.mxu0 %v916
    %2258 = vmatprep.subr.bf16.mxu0 %v924
    %2259 = vmatpush1.bf16.msra.mxu0 %v923
    %2260 = vmatprep.subr.bf16.mxu0 %v931
    %2261 = vmatpush1.bf16.msra.mxu0 %v930
    %2262 = vmatprep.subr.bf16.mxu0 %v938
    %2263 = vmatpush1.bf16.msra.mxu0 %v937
    %2264 = vmatprep.subr.bf16.mxu0 %v945
    %2265 = vmatpush1.bf16.msra.mxu0 %v944
    %2266 = vmatprep.subr.bf16.mxu0 %v952
    %2267 = vmatpush1.bf16.msra.mxu0 %v951
    %2268 = vmatprep.subr.bf16.mxu0 %v959
    %2269 = vmatpush1.bf16.msra.mxu0 %v958
    %2270 = vmatprep.subr.bf16.mxu0 %v966
    %2271 = vmatpush1.bf16.msra.mxu0 %v965
    %2272 = vmatprep.mubr.bf16.mxu0 %v2157
    %2273 = vmatmul.mubr.bf16.gmra.mrb[0].mxu0 %v2156
    %v2274 = vpop.f32.mrb[0].mxu0
    %v2275 = vadd.f32 0.0, %v2274
    %v2276 = vpop.f32.mrb[0].mxu0
    %v2277 = vadd.f32 0.0, %v2276
    %v2278 = vpop.f32.mrb[0].mxu0
    %v2279 = vpop.f32.mrb[0].mxu0
    %2280 = vdwg.mxu0
    %2281 = vmatprep.subr.bf16.mxu0 0
    %2282 = vmatpush1.bf16.msra.mxu0 %v862
    %2283 = vmatprep.subr.bf16.mxu0 0
    %2284 = vmatpush1.bf16.msra.mxu0 %v869
    %2285 = vmatprep.subr.bf16.mxu0 0
    %2286 = vmatpush1.bf16.msra.mxu0 %v876
    %2287 = vmatprep.subr.bf16.mxu0 0
    %2288 = vmatpush1.bf16.msra.mxu0 %v883
    %2289 = vmatprep.subr.bf16.mxu0 0
    %2290 = vmatpush1.bf16.msra.mxu0 %v890
    %2291 = vmatprep.subr.bf16.mxu0 0
    %2292 = vmatpush1.bf16.msra.mxu0 %v897
    %2293 = vmatprep.subr.bf16.mxu0 0
    %2294 = vmatpush1.bf16.msra.mxu0 %v904
    %2295 = vmatprep.subr.bf16.mxu0 0
    %2296 = vmatpush1.bf16.msra.mxu0 %v911
    %2297 = vmatprep.subr.bf16.mxu0 0
    %2298 = vmatpush1.bf16.msra.mxu0 %v918
    %2299 = vmatprep.subr.bf16.mxu0 0
    %2300 = vmatpush1.bf16.msra.mxu0 %v925
    %2301 = vmatprep.subr.bf16.mxu0 0
    %2302 = vmatpush1.bf16.msra.mxu0 %v932
    %2303 = vmatprep.subr.bf16.mxu0 0
    %2304 = vmatpush1.bf16.msra.mxu0 %v939
    %2305 = vmatprep.subr.bf16.mxu0 0
    %2306 = vmatpush1.bf16.msra.mxu0 %v946
    %2307 = vmatprep.subr.bf16.mxu0 0
    %2308 = vmatpush1.bf16.msra.mxu0 %v953
    %2309 = vmatprep.subr.bf16.mxu0 0
    %2310 = vmatpush1.bf16.msra.mxu0 %v960
    %2311 = vmatprep.subr.bf16.mxu0 0
    %2312 = vmatpush1.bf16.msra.mxu0 %v967
    %2313 = vmatprep.mubr.bf16.mxu0 %v2157
    %2314 = vmatmul.mubr.bf16.gmra.mrb[0].mxu0 %v2156
    %v2315 = vpop.f32.mrb[0].mxu0
    %v2316 = vadd.f32 0.0, %v2315
    %v2317 = vpop.f32.mrb[0].mxu0
    %v2318 = vpop.f32.mrb[0].mxu0
    %v2319 = vpop.f32.mrb[0].mxu0
    %2320 = vdwg.mxu0
    %v2321 = vadd.f32 %v2236, %v1247
    %v2322 = vadd.f32 %v2275, %v1251
    %v2323 = vadd.f32 %v2277, %v1260
    %v2324 = vxor.u32 %v2321, 2147483648
    %v2325 = vmul.f32 %v2324, 1.442695
    %v2326 = vpow.pop %v2325
    %v2327 = vadd.f32 %v2326, 1.0
    %v2328 = vrcp.pop %v2327
    %v2329 = vmul.f32 1.0, %v2328
    %v2330 = vxor.u32 %v2322, 2147483648
    %v2331 = vmul.f32 %v2330, 1.442695
    %v2332 = vpow.pop %v2331
    %v2333 = vadd.f32 %v2332, 1.0
    %v2334 = vrcp.pop %v2333
    %v2335 = vmul.f32 1.0, %v2334
    %v2336 = vadd.f32 %v2316, %v1279
    %v2337 = vmul.f32 %v2329, %v2336
    %v2338 = vadd.f32 %v2323, %v2337
    %v2339 = vtanh.pop %v2338
    %v2340 = vsub.f32 %v2131, %v2339
    %v2341 = vmul.f32 %v2335, %v2340
    %v2342 = vadd.f32 %v2339, %v2341
    %v2343 = vld [vmem:[#allocation2 + $0x90] sm:$0xff]
    %v2344 = vld [vmem:[#allocation2 + $0x98] sm:$0xff]
    %v2345 = vld [vmem:[#allocation2 + $0xa0] sm:$0xff]
    %v2346 = vadd.f32 %v2343, %v2193
    %v2347 = vxor.u32 %v2346, 2147483648
    %v2348 = vmul.f32 %v2347, 1.442695
    %v2349 = vpow.pop %v2348
    %v2350 = vadd.f32 %v2349, 1.0
    %v2351 = vrcp.pop %v2350
    %v2352 = vmul.f32 1.0, %v2351
    %v2353 = vadd.f32 %v2344, %v2195
    %v2354 = vxor.u32 %v2353, 2147483648
    %v2355 = vmul.f32 %v2354, 1.442695
    %v2356 = vpow.pop %v2355
    %v2357 = vadd.f32 %v2356, 1.0
    %v2358 = vrcp.pop %v2357
    %v2359 = vmul.f32 1.0, %v2358
    %v2360 = vadd.f32 %v2234, %v367
    %v2361 = vmul.f32 %v2352, %v2360
    %v2362 = vadd.f32 %v2345, %v2361
    %v2363 = vtanh.pop %v2362
    %v2364 = vsub.f32 %v2155, %v2363
    %v2365 = vmul.f32 %v2359, %v2364
    %v2366 = vadd.f32 %v2363, %v2365
    %v2367 = vpack.c.bf16 %v2366, %v2366
    %v2368 = vpack.c.bf16 %v2342, %v2342
    %2369 = vmatprep.subr.bf16.mxu0 %v857
    %2370 = vmatpush1.bf16.msra.mxu0 %v856
    %2371 = vmatprep.subr.bf16.mxu0 %v864
    %2372 = vmatpush1.bf16.msra.mxu0 %v863
    %2373 = vmatprep.subr.bf16.mxu0 %v871
    %2374 = vmatpush1.bf16.msra.mxu0 %v870
    %2375 = vmatprep.subr.bf16.mxu0 %v878
    %2376 = vmatpush1.bf16.msra.mxu0 %v877
    %2377 = vmatprep.subr.bf16.mxu0 %v885
    %2378 = vmatpush1.bf16.msra.mxu0 %v884
    %2379 = vmatprep.subr.bf16.mxu0 %v892
    %2380 = vmatpush1.bf16.msra.mxu0 %v891
    %2381 = vmatprep.subr.bf16.mxu0 %v899
    %2382 = vmatpush1.bf16.msra.mxu0 %v898
    %2383 = vmatprep.subr.bf16.mxu0 %v906
    %2384 = vmatpush1.bf16.msra.mxu0 %v905
    %2385 = vmatprep.subr.bf16.mxu0 %v913
    %2386 = vmatpush1.bf16.msra.mxu0 %v912
    %2387 = vmatprep.subr.bf16.mxu0 %v920
    %2388 = vmatpush1.bf16.msra.mxu0 %v919
    %2389 = vmatprep.subr.bf16.mxu0 %v927
    %2390 = vmatpush1.bf16.msra.mxu0 %v926
    %2391 = vmatprep.subr.bf16.mxu0 %v934
    %2392 = vmatpush1.bf16.msra.mxu0 %v933
    %2393 = vmatprep.subr.bf16.mxu0 %v941
    %2394 = vmatpush1.bf16.msra.mxu0 %v940
    %2395 = vmatprep.subr.bf16.mxu0 %v948
    %2396 = vmatpush1.bf16.msra.mxu0 %v947
    %2397 = vmatprep.subr.bf16.mxu0 %v955
    %2398 = vmatpush1.bf16.msra.mxu0 %v954
    %2399 = vmatprep.subr.bf16.mxu0 %v962
    %2400 = vmatpush1.bf16.msra.mxu0 %v961
    %2401 = vmatprep.mubr.bf16.mxu0 %v2368
    %2402 = vmatmul.mubr.bf16.gmra.mrb[0].mxu0 %v2367
    %v2403 = vpop.f32.mrb[0].mxu0
    %v2404 = vadd.f32 0.0, %v2403
    %v2405 = vpop.f32.mrb[0].mxu0
    %v2406 = vadd.f32 0.0, %v2405
    %v2407 = vpop.f32.mrb[0].mxu0
    %v2408 = vpop.f32.mrb[0].mxu0
    %2409 = vdwg.mxu0
    %2410 = vmatprep.subr.bf16.mxu0 %v859
    %2411 = vmatpush1.bf16.msra.mxu0 %v858
    %2412 = vmatprep.subr.bf16.mxu0 %v866
    %2413 = vmatpush1.bf16.msra.mxu0 %v865
    %2414 = vmatprep.subr.bf16.mxu0 %v873
    %2415 = vmatpush1.bf16.msra.mxu0 %v872
    %2416 = vmatprep.subr.bf16.mxu0 %v880
    %2417 = vmatpush1.bf16.msra.mxu0 %v879
    %2418 = vmatprep.subr.bf16.mxu0 %v887
    %2419 = vmatpush1.bf16.msra.mxu0 %v886
    %2420 = vmatprep.subr.bf16.mxu0 %v894
    %2421 = vmatpush1.bf16.msra.mxu0 %v893
    %2422 = vmatprep.subr.bf16.mxu0 %v901
    %2423 = vmatpush1.bf16.msra.mxu0 %v900
    %2424 = vmatprep.subr.bf16.mxu0 %v908
    %2425 = vmatpush1.bf16.msra.mxu0 %v907
    %2426 = vmatprep.subr.bf16.mxu0 %v915
    %2427 = vmatpush1.bf16.msra.mxu0 %v914
    %2428 = vmatprep.subr.bf16.mxu0 %v922
    %2429 = vmatpush1.bf16.msra.mxu0 %v921
    %2430 = vmatprep.subr.bf16.mxu0 %v929
    %2431 = vmatpush1.bf16.msra.mxu0 %v928
    %2432 = vmatprep.subr.bf16.mxu0 %v936
    %2433 = vmatpush1.bf16.msra.mxu0 %v935
    %2434 = vmatprep.subr.bf16.mxu0 %v943
    %2435 = vmatpush1.bf16.msra.mxu0 %v942
    %2436 = vmatprep.subr.bf16.mxu0 %v950
    %2437 = vmatpush1.bf16.msra.mxu0 %v949
    %2438 = vmatprep.subr.bf16.mxu0 %v957
    %2439 = vmatpush1.bf16.msra.mxu0 %v956
    %2440 = vmatprep.subr.bf16.mxu0 %v964
    %2441 = vmatpush1.bf16.msra.mxu0 %v963
    %2442 = vmatprep.mubr.bf16.mxu0 %v2368
    %2443 = vmatmul.mubr.bf16.gmra.mrb[0].mxu0 %v2367
    %v2444 = vpop.f32.mrb[0].mxu0
    %v2445 = vadd.f32 0.0, %v2444
    %v2446 = vpop.f32.mrb[0].mxu0
    %v2447 = vadd.f32 0.0, %v2446
    %v2448 = vpop.f32.mrb[0].mxu0
    %v2449 = vpop.f32.mrb[0].mxu0
    %2450 = vdwg.mxu0
    %2451 = vmatprep.subr.bf16.mxu0 %v861
    %2452 = vmatpush1.bf16.msra.mxu0 %v860
    %2453 = vmatprep.subr.bf16.mxu0 %v868
    %2454 = vmatpush1.bf16.msra.mxu0 %v867
    %2455 = vmatprep.subr.bf16.mxu0 %v875
    %2456 = vmatpush1.bf16.msra.mxu0 %v874
    %2457 = vmatprep.subr.bf16.mxu0 %v882
    %2458 = vmatpush1.bf16.msra.mxu0 %v881
    %2459 = vmatprep.subr.bf16.mxu0 %v889
    %2460 = vmatpush1.bf16.msra.mxu0 %v888
    %2461 = vmatprep.subr.bf16.mxu0 %v896
    %2462 = vmatpush1.bf16.msra.mxu0 %v895
    %2463 = vmatprep.subr.bf16.mxu0 %v903
    %2464 = vmatpush1.bf16.msra.mxu0 %v902
    %2465 = vmatprep.subr.bf16.mxu0 %v910
    %2466 = vmatpush1.bf16.msra.mxu0 %v909
    %2467 = vmatprep.subr.bf16.mxu0 %v917
    %2468 = vmatpush1.bf16.msra.mxu0 %v916
    %2469 = vmatprep.subr.bf16.mxu0 %v924
    %2470 = vmatpush1.bf16.msra.mxu0 %v923
    %2471 = vmatprep.subr.bf16.mxu0 %v931
    %2472 = vmatpush1.bf16.msra.mxu0 %v930
    %2473 = vmatprep.subr.bf16.mxu0 %v938
    %2474 = vmatpush1.bf16.msra.mxu0 %v937
    %2475 = vmatprep.subr.bf16.mxu0 %v945
    %2476 = vmatpush1.bf16.msra.mxu0 %v944
    %2477 = vmatprep.subr.bf16.mxu0 %v952
    %2478 = vmatpush1.bf16.msra.mxu0 %v951
    %2479 = vmatprep.subr.bf16.mxu0 %v959
    %2480 = vmatpush1.bf16.msra.mxu0 %v958
    %2481 = vmatprep.subr.bf16.mxu0 %v966
    %2482 = vmatpush1.bf16.msra.mxu0 %v965
    %2483 = vmatprep.mubr.bf16.mxu0 %v2368
    %2484 = vmatmul.mubr.bf16.gmra.mrb[0].mxu0 %v2367
    %v2485 = vpop.f32.mrb[0].mxu0
    %v2486 = vadd.f32 0.0, %v2485
    %v2487 = vpop.f32.mrb[0].mxu0
    %v2488 = vadd.f32 0.0, %v2487
    %v2489 = vpop.f32.mrb[0].mxu0
    %v2490 = vpop.f32.mrb[0].mxu0
    %2491 = vdwg.mxu0
    %2492 = vmatprep.subr.bf16.mxu0 0
    %2493 = vmatpush1.bf16.msra.mxu0 %v862
    %2494 = vmatprep.subr.bf16.mxu0 0
    %2495 = vmatpush1.bf16.msra.mxu0 %v869
    %2496 = vmatprep.subr.bf16.mxu0 0
    %2497 = vmatpush1.bf16.msra.mxu0 %v876
    %2498 = vmatprep.subr.bf16.mxu0 0
    %2499 = vmatpush1.bf16.msra.mxu0 %v883
    %2500 = vmatprep.subr.bf16.mxu0 0
    %2501 = vmatpush1.bf16.msra.mxu0 %v890
    %2502 = vmatprep.subr.bf16.mxu0 0
    %2503 = vmatpush1.bf16.msra.mxu0 %v897
    %2504 = vmatprep.subr.bf16.mxu0 0
    %2505 = vmatpush1.bf16.msra.mxu0 %v904
    %2506 = vmatprep.subr.bf16.mxu0 0
    %2507 = vmatpush1.bf16.msra.mxu0 %v911
    %2508 = vmatprep.subr.bf16.mxu0 0
    %2509 = vmatpush1.bf16.msra.mxu0 %v918
    %2510 = vmatprep.subr.bf16.mxu0 0
    %2511 = vmatpush1.bf16.msra.mxu0 %v925
    %2512 = vmatprep.subr.bf16.mxu0 0
    %2513 = vmatpush1.bf16.msra.mxu0 %v932
    %2514 = vmatprep.subr.bf16.mxu0 0
    %2515 = vmatpush1.bf16.msra.mxu0 %v939
    %2516 = vmatprep.subr.bf16.mxu0 0
    %2517 = vmatpush1.bf16.msra.mxu0 %v946
    %2518 = vmatprep.subr.bf16.mxu0 0
    %2519 = vmatpush1.bf16.msra.mxu0 %v953
    %2520 = vmatprep.subr.bf16.mxu0 0
    %2521 = vmatpush1.bf16.msra.mxu0 %v960
    %2522 = vmatprep.subr.bf16.mxu0 0
    %2523 = vmatpush1.bf16.msra.mxu0 %v967
    %2524 = vmatprep.mubr.bf16.mxu0 %v2368
    %2525 = vmatmul.mubr.bf16.gmra.mrb[0].mxu0 %v2367
    %v2526 = vpop.f32.mrb[0].mxu0
    %v2527 = vadd.f32 0.0, %v2526
    %v2528 = vpop.f32.mrb[0].mxu0
    %v2529 = vpop.f32.mrb[0].mxu0
    %v2530 = vpop.f32.mrb[0].mxu0
    %2531 = vdwg.mxu0
    %v2532 = vadd.f32 %v2447, %v1247
    %v2533 = vadd.f32 %v2486, %v1251
    %v2534 = vadd.f32 %v2488, %v1260
    %v2535 = vxor.u32 %v2532, 2147483648
    %v2536 = vmul.f32 %v2535, 1.442695
    %v2537 = vpow.pop %v2536
    %v2538 = vadd.f32 %v2537, 1.0
    %v2539 = vrcp.pop %v2538
    %v2540 = vmul.f32 1.0, %v2539
    %v2541 = vxor.u32 %v2533, 2147483648
    %v2542 = vmul.f32 %v2541, 1.442695
    %v2543 = vpow.pop %v2542
    %v2544 = vadd.f32 %v2543, 1.0
    %v2545 = vrcp.pop %v2544
    %v2546 = vmul.f32 1.0, %v2545
    %v2547 = vadd.f32 %v2527, %v1279
    %v2548 = vmul.f32 %v2540, %v2547
    %v2549 = vadd.f32 %v2534, %v2548
    %v2550 = vtanh.pop %v2549
    %v2551 = vsub.f32 %v2342, %v2550
    %v2552 = vmul.f32 %v2546, %v2551
    %v2553 = vadd.f32 %v2550, %v2552
    %v2554 = vld [vmem:[#allocation2 + $0xa8] sm:$0xff]
    %v2555 = vld [vmem:[#allocation2 + $0xb0] sm:$0xff]
    %v2556 = vld [vmem:[#allocation2 + $0xb8] sm:$0xff]
    %v2557 = vadd.f32 %v2554, %v2404
    %v2558 = vxor.u32 %v2557, 2147483648
    %v2559 = vmul.f32 %v2558, 1.442695
    %v2560 = vpow.pop %v2559
    %v2561 = vadd.f32 %v2560, 1.0
    %v2562 = vrcp.pop %v2561
    %v2563 = vmul.f32 1.0, %v2562
    %v2564 = vadd.f32 %v2555, %v2406
    %v2565 = vxor.u32 %v2564, 2147483648
    %v2566 = vmul.f32 %v2565, 1.442695
    %v2567 = vpow.pop %v2566
    %v2568 = vadd.f32 %v2567, 1.0
    %v2569 = vrcp.pop %v2568
    %v2570 = vmul.f32 1.0, %v2569
    %v2571 = vadd.f32 %v2445, %v367
    %v2572 = vmul.f32 %v2563, %v2571
    %v2573 = vadd.f32 %v2556, %v2572
    %v2574 = vtanh.pop %v2573
    %v2575 = vsub.f32 %v2366, %v2574
    %v2576 = vmul.f32 %v2570, %v2575
    %v2577 = vadd.f32 %v2574, %v2576
    %v2578 = vpack.c.bf16 %v2577, %v2577
    %v2579 = vpack.c.bf16 %v2553, %v2553
    %2580 = vmatprep.subr.bf16.mxu0 %v859
    %2581 = vmatpush1.bf16.msra.mxu0 %v858
    %2582 = vmatprep.subr.bf16.mxu0 %v866
    %2583 = vmatpush1.bf16.msra.mxu0 %v865
    %2584 = vmatprep.subr.bf16.mxu0 %v873
    %2585 = vmatpush1.bf16.msra.mxu0 %v872
    %2586 = vmatprep.subr.bf16.mxu0 %v880
    %2587 = vmatpush1.bf16.msra.mxu0 %v879
    %2588 = vmatprep.subr.bf16.mxu0 %v887
    %2589 = vmatpush1.bf16.msra.mxu0 %v886
    %2590 = vmatprep.subr.bf16.mxu0 %v894
    %2591 = vmatpush1.bf16.msra.mxu0 %v893
    %2592 = vmatprep.subr.bf16.mxu0 %v901
    %2593 = vmatpush1.bf16.msra.mxu0 %v900
    %2594 = vmatprep.subr.bf16.mxu0 %v908
    %2595 = vmatpush1.bf16.msra.mxu0 %v907
    %2596 = vmatprep.subr.bf16.mxu0 %v915
    %2597 = vmatpush1.bf16.msra.mxu0 %v914
    %2598 = vmatprep.subr.bf16.mxu0 %v922
    %2599 = vmatpush1.bf16.msra.mxu0 %v921
    %2600 = vmatprep.subr.bf16.mxu0 %v929
    %2601 = vmatpush1.bf16.msra.mxu0 %v928
    %2602 = vmatprep.subr.bf16.mxu0 %v936
    %2603 = vmatpush1.bf16.msra.mxu0 %v935
    %2604 = vmatprep.subr.bf16.mxu0 %v943
    %2605 = vmatpush1.bf16.msra.mxu0 %v942
    %2606 = vmatprep.subr.bf16.mxu0 %v950
    %2607 = vmatpush1.bf16.msra.mxu0 %v949
    %2608 = vmatprep.subr.bf16.mxu0 %v957
    %2609 = vmatpush1.bf16.msra.mxu0 %v956
    %2610 = vmatprep.subr.bf16.mxu0 %v964
    %2611 = vmatpush1.bf16.msra.mxu0 %v963
    %2612 = vmatprep.mubr.bf16.mxu0 %v2579
    %2613 = vmatmul.mubr.bf16.gmra.mrb[0].mxu0 %v2578
    %v2614 = vpop.f32.mrb[0].mxu0
    %v2615 = vpop.f32.mrb[0].mxu0
    %v2616 = vadd.f32 0.0, %v2615
    %v2617 = vpop.f32.mrb[0].mxu0
    %v2618 = vpop.f32.mrb[0].mxu0
    %2619 = vdwg.mxu0
    %2620 = vmatprep.subr.bf16.mxu0 %v861
    %2621 = vmatpush1.bf16.msra.mxu0 %v860
    %2622 = vmatprep.subr.bf16.mxu0 %v868
    %2623 = vmatpush1.bf16.msra.mxu0 %v867
    %2624 = vmatprep.subr.bf16.mxu0 %v875
    %2625 = vmatpush1.bf16.msra.mxu0 %v874
    %2626 = vmatprep.subr.bf16.mxu0 %v882
    %2627 = vmatpush1.bf16.msra.mxu0 %v881
    %2628 = vmatprep.subr.bf16.mxu0 %v889
    %2629 = vmatpush1.bf16.msra.mxu0 %v888
    %2630 = vmatprep.subr.bf16.mxu0 %v896
    %2631 = vmatpush1.bf16.msra.mxu0 %v895
    %2632 = vmatprep.subr.bf16.mxu0 %v903
    %2633 = vmatpush1.bf16.msra.mxu0 %v902
    %2634 = vmatprep.subr.bf16.mxu0 %v910
    %2635 = vmatpush1.bf16.msra.mxu0 %v909
    %2636 = vmatprep.subr.bf16.mxu0 %v917
    %2637 = vmatpush1.bf16.msra.mxu0 %v916
    %2638 = vmatprep.subr.bf16.mxu0 %v924
    %2639 = vmatpush1.bf16.msra.mxu0 %v923
    %2640 = vmatprep.subr.bf16.mxu0 %v931
    %2641 = vmatpush1.bf16.msra.mxu0 %v930
    %2642 = vmatprep.subr.bf16.mxu0 %v938
    %2643 = vmatpush1.bf16.msra.mxu0 %v937
    %2644 = vmatprep.subr.bf16.mxu0 %v945
    %2645 = vmatpush1.bf16.msra.mxu0 %v944
    %2646 = vmatprep.subr.bf16.mxu0 %v952
    %2647 = vmatpush1.bf16.msra.mxu0 %v951
    %2648 = vmatprep.subr.bf16.mxu0 %v959
    %2649 = vmatpush1.bf16.msra.mxu0 %v958
    %2650 = vmatprep.subr.bf16.mxu0 %v966
    %2651 = vmatpush1.bf16.msra.mxu0 %v965
    %2652 = vmatprep.mubr.bf16.mxu0 %v2579
    %2653 = vmatmul.mubr.bf16.gmra.mrb[0].mxu0 %v2578
    %v2654 = vpop.f32.mrb[0].mxu0
    %v2655 = vadd.f32 0.0, %v2654
    %v2656 = vpop.f32.mrb[0].mxu0
    %v2657 = vadd.f32 0.0, %v2656
    %v2658 = vpop.f32.mrb[0].mxu0
    %v2659 = vpop.f32.mrb[0].mxu0
    %2660 = vdwg.mxu0
    %2661 = vmatprep.subr.bf16.mxu0 0
    %2662 = vmatpush1.bf16.msra.mxu0 %v862
    %2663 = vmatprep.subr.bf16.mxu0 0
    %2664 = vmatpush1.bf16.msra.mxu0 %v869
    %2665 = vmatprep.subr.bf16.mxu0 0
    %2666 = vmatpush1.bf16.msra.mxu0 %v876
    %2667 = vmatprep.subr.bf16.mxu0 0
    %2668 = vmatpush1.bf16.msra.mxu0 %v883
    %2669 = vmatprep.subr.bf16.mxu0 0
    %2670 = vmatpush1.bf16.msra.mxu0 %v890
    %2671 = vmatprep.subr.bf16.mxu0 0
    %2672 = vmatpush1.bf16.msra.mxu0 %v897
    %2673 = vmatprep.subr.bf16.mxu0 0
    %2674 = vmatpush1.bf16.msra.mxu0 %v904
    %2675 = vmatprep.subr.bf16.mxu0 0
    %2676 = vmatpush1.bf16.msra.mxu0 %v911
    %2677 = vmatprep.subr.bf16.mxu0 0
    %2678 = vmatpush1.bf16.msra.mxu0 %v918
    %2679 = vmatprep.subr.bf16.mxu0 0
    %2680 = vmatpush1.bf16.msra.mxu0 %v925
    %2681 = vmatprep.subr.bf16.mxu0 0
    %2682 = vmatpush1.bf16.msra.mxu0 %v932
    %2683 = vmatprep.subr.bf16.mxu0 0
    %2684 = vmatpush1.bf16.msra.mxu0 %v939
    %2685 = vmatprep.subr.bf16.mxu0 0
    %2686 = vmatpush1.bf16.msra.mxu0 %v946
    %2687 = vmatprep.subr.bf16.mxu0 0
    %2688 = vmatpush1.bf16.msra.mxu0 %v953
    %2689 = vmatprep.subr.bf16.mxu0 0
    %2690 = vmatpush1.bf16.msra.mxu0 %v960
    %2691 = vmatprep.subr.bf16.mxu0 0
    %2692 = vmatpush1.bf16.msra.mxu0 %v967
    %2693 = vmatprep.mubr.bf16.mxu0 %v2579
    %2694 = vmatmul.mubr.bf16.gmra.mrb[0].mxu0 %v2578
    %v2695 = vpop.f32.mrb[0].mxu0
    %v2696 = vadd.f32 0.0, %v2695
    %v2697 = vpop.f32.mrb[0].mxu0
    %v2698 = vpop.f32.mrb[0].mxu0
    %v2699 = vpop.f32.mrb[0].mxu0
    %2700 = vdwg.mxu0
    %v2701 = vadd.f32 %v2616, %v1247
    %v2702 = vadd.f32 %v2655, %v1251
    %v2703 = vadd.f32 %v2657, %v1260
    %v2704 = vxor.u32 %v2701, 2147483648
    %v2705 = vmul.f32 %v2704, 1.442695
    %v2706 = vpow.pop %v2705
    %v2707 = vadd.f32 %v2706, 1.0
    %v2708 = vrcp.pop %v2707
    %v2709 = vmul.f32 1.0, %v2708
    %v2710 = vxor.u32 %v2702, 2147483648
    %v2711 = vmul.f32 %v2710, 1.442695
    %v2712 = vpow.pop %v2711
    %v2713 = vadd.f32 %v2712, 1.0
    %v2714 = vrcp.pop %v2713
    %v2715 = vmul.f32 1.0, %v2714
    %v2716 = vadd.f32 %v2696, %v1279
    %v2717 = vmul.f32 %v2709, %v2716
    %v2718 = vadd.f32 %v2703, %v2717
    %v2719 = vtanh.pop %v2718
    %v2720 = vsub.f32 %v2553, %v2719
    %v2721 = vmul.f32 %v2715, %v2720
    %v2722 = vadd.f32 %v2719, %v2721
    %v2723 = vpack.c.bf16 %v2722, %v2722
    %v2724 = vld [vmem:[#allocation5] sm:$0xf]
    %v2725 = vld [vmem:[#allocation5 + $0x4] sm:$0xf]
    %v2726 = vld [vmem:[#allocation5 + $0x8] sm:$0xf]
    %v2727 = vld [vmem:[#allocation5 + $0xc] sm:$0xf]
    %v2728 = vld [vmem:[#allocation5 + $0x10] sm:$0xf]
    %v2729 = vld [vmem:[#allocation5 + $0x14] sm:$0xf]
    %v2730 = vld [vmem:[#allocation5 + $0x18] sm:$0xf]
    %v2731 = vld [vmem:[#allocation5 + $0x1c] sm:$0xf]
    %v2732 = vld [vmem:[#allocation5 + $0x20] sm:$0xf]
    %v2733 = vld [vmem:[#allocation5 + $0x24] sm:$0xf]
    %v2734 = vld [vmem:[#allocation5 + $0x28] sm:$0xf]
    %v2735 = vld [vmem:[#allocation5 + $0x2c] sm:$0xf]
    %v2736 = vld [vmem:[#allocation5 + $0x30] sm:$0xf]
    %v2737 = vld [vmem:[#allocation5 + $0x34] sm:$0xf]
    %v2738 = vld [vmem:[#allocation5 + $0x38] sm:$0xf]
    %v2739 = vld [vmem:[#allocation5 + $0x3c] sm:$0xf]
    %v2740 = vld [vmem:[%s9] sm:$0x1]
    %v2742 = vlaneseq
    %v2743 = vshrl.u32 %v2742, 7
    %v2744 = vsub.s32 0, %v2743
    %v2745 = vrot.slane %v2740, %v2744
    %v2763 = vunpack.c.l.b16 %v2724
    %v2764 = vunpack.c.l.b16 %v2725
    %v2765 = vunpack.c.l.b16 %v2726
    %v2766 = vunpack.c.l.b16 %v2727
    %v2767 = vunpack.c.l.b16 %v2728
    %v2768 = vunpack.c.l.b16 %v2729
    %v2769 = vunpack.c.l.b16 %v2730
    %v2770 = vunpack.c.l.b16 %v2731
    %v2771 = vunpack.c.l.b16 %v2732
    %v2772 = vunpack.c.l.b16 %v2733
    %v2773 = vunpack.c.l.b16 %v2734
    %v2774 = vunpack.c.l.b16 %v2735
    %v2775 = vunpack.c.l.b16 %v2736
    %v2776 = vunpack.c.l.b16 %v2737
    %v2777 = vunpack.c.l.b16 %v2738
    %v2778 = vunpack.c.l.b16 %v2739
    %v2779 = vpack.c.b16 %v2764, %v2763
    %v2780 = vpack.c.b16 %v2766, %v2765
    %v2781 = vpack.c.b16 %v2768, %v2767
    %v2782 = vpack.c.b16 %v2770, %v2769
    %v2783 = vpack.c.b16 %v2772, %v2771
    %v2784 = vpack.c.b16 %v2774, %v2773
    %v2785 = vpack.c.b16 %v2776, %v2775
    %v2786 = vpack.c.b16 %v2778, %v2777
    %2795 = vmatprep.subr.bf16.mxu0 0
    %2796 = vmatpush1.bf16.msra.mxu0 %v2779
    %2797 = vmatprep.subr.bf16.mxu0 0
    %2798 = vmatpush1.bf16.msra.mxu0 %v2780
    %2799 = vmatprep.subr.bf16.mxu0 0
    %2800 = vmatpush1.bf16.msra.mxu0 %v2781
    %2801 = vmatprep.subr.bf16.mxu0 0
    %2802 = vmatpush1.bf16.msra.mxu0 %v2782
    %2803 = vmatprep.subr.bf16.mxu0 0
    %2804 = vmatpush1.bf16.msra.mxu0 %v2783
    %2805 = vmatprep.subr.bf16.mxu0 0
    %2806 = vmatpush1.bf16.msra.mxu0 %v2784
    %2807 = vmatprep.subr.bf16.mxu0 0
    %2808 = vmatpush1.bf16.msra.mxu0 %v2785
    %2809 = vmatprep.subr.bf16.mxu0 0
    %2810 = vmatpush1.bf16.msra.mxu0 %v2786
    %2811 = vmatprep.subr.bf16.mxu0 0
    %2812 = vmatpush1.bf16.msra.mxu0 0
    %2813 = vmatprep.subr.bf16.mxu0 0
    %2814 = vmatpush1.bf16.msra.mxu0 0
    %2815 = vmatprep.subr.bf16.mxu0 0
    %2816 = vmatpush1.bf16.msra.mxu0 0
    %2817 = vmatprep.subr.bf16.mxu0 0
    %2818 = vmatpush1.bf16.msra.mxu0 0
    %2819 = vmatprep.subr.bf16.mxu0 0
    %2820 = vmatpush1.bf16.msra.mxu0 0
    %2821 = vmatprep.subr.bf16.mxu0 0
    %2822 = vmatpush1.bf16.msra.mxu0 0
    %2823 = vmatprep.subr.bf16.mxu0 0
    %2824 = vmatpush1.bf16.msra.mxu0 0
    %2825 = vmatprep.subr.bf16.mxu0 0
    %2826 = vmatpush1.bf16.msra.mxu0 0
    %2827 = vmatprep.mubr.bf16.mxu0 0
    %2828 = vmatmul.mubr.bf16.gmra.mrb[0].mxu0 %v2723
    %v2829 = vpop.f32.mrb[0].mxu0
    %v2830 = vadd.f32 %v2745, %v2829
    %v2831 = vpop.f32.mrb[0].mxu0
    %v2832 = vpop.f32.mrb[0].mxu0
    %v2833 = vpop.f32.mrb[0].mxu0
    %2834 = vdwg.mxu0
    %2835 = vst [vmem:[%s10] sm:$0xff] %v2830
    // Predicated region
    $region50: #{simple_gru_forward.1} parent=1 // pred_check
      _
    $region51: #{simple_gru_forward.1} parent=1 // pred_check_branch
      %2837 = sbr.rel (0) target = $region53
    $region52: #{simple_gru_forward.1} parent=1 // pred_region
      _
    $region53: #{simple_gru_forward.1} parent=1 // pred_fallthru
      _
    // Predicated region
    $region54: #{simple_gru_forward.1} parent=1 // pred_check
      _
    $region55: #{simple_gru_forward.1} parent=1 // pred_check_branch
      %2839 = sbr.rel (0) target = $region57
    $region56: #{simple_gru_forward.1} parent=1 // pred_region
      _
    $region57: #{simple_gru_forward.1} parent=1 // pred_fallthru
      _
    %2840 = vsyncpa [#allocation4], 1
    %2841 = vsyncpa [#allocation6], 1

</llo_original>
